<compile_context>
chip_gen: v7x
topology: tpu7x:2x2x1
jax: 0.10.0
libtpu: 0.0.40
codegen_flags: <defaults>
</compile_context>

<pallas_src>
import numpy as np
import jax
import jax.numpy as jnp
from jax import lax
from jax.experimental import pallas as pl
from jax.experimental.pallas import tpu as pltpu

LANE = 128


def _round_up(x, m):
    return ((x + m - 1) // m) * m


def convpool_assa_kernel(f_ref, p_ref, w_ref, b_ref, o_ref):
    """One row-tile of ConvPool('assa', reduction='max').

    f_ref: (T, S, C)  neighborhood features, bf16
    p_ref: (T, S, 3)  relative positions, f32
    w_ref: (C, Cp)    1x1-conv weight with BN scale folded in, f32 (Cp = C_out padded to 128)
    b_ref: (1, Cp)    folded BN bias, f32
    o_ref: (T, Cp)    max-reduced output, f32 (lane-dense)
    """
    T, S, C = f_ref.shape
    rep = C // 3

    # Channel-group masks implementing the 'assa' repeat_interleave position embedding:
    #   pos_emb[:, c] = rel_pos[:, 0] if c < rep, rel_pos[:, 1] if rep <= c < 2*rep, else rel_pos[:, 2]
    col = lax.broadcasted_iota(jnp.int32, (1, C), 1)
    m0 = (col < rep).astype(jnp.float32)
    m1 = jnp.logical_and(col >= rep, col < 2 * rep).astype(jnp.float32)
    m2 = (col >= 2 * rep).astype(jnp.float32)

    w_bf = w_ref[...].astype(jnp.bfloat16)  # hoisted once per grid step

    # Unrolled loop over the small, static neighborhood axis with a running max:
    # keeps the live footprint at (T, Cp) instead of a (T*S, Cp) intermediate + reshape.
    acc = None
    for s in range(S):
        f_s = f_ref[:, s, :].astype(jnp.float32)          # (T, C)  bf16 -> f32 (v5e-safe VPU math)
        p_s = p_ref[:, s, :]                              # (T, 3)
        pos_emb = p_s[:, 0:1] * m0 + p_s[:, 1:2] * m1 + p_s[:, 2:3] * m2   # (T, C), exact select
        agg = (f_s * pos_emb).astype(jnp.bfloat16)        # 'assa': pos_emb * neighborhood_features
        # 1x1 Conv2d (bias-free) with BN scale pre-folded; bf16 MXU inputs, f32 accumulation.
        # TODO(synk): K=C (e.g. 9) badly underfills the MXU; kernel is HBM-bound so left as-is.
        y = jnp.dot(agg, w_bf, preferred_element_type=jnp.float32)         # (T, Cp)
        acc = y if acc is None else jnp.maximum(acc, y)
    # max_s(ReLU(x_s + b)) == ReLU(max_s(x_s) + b): apply bias + ReLU once, after the reduction.
    o_ref[...] = jnp.maximum(acc + b_ref[...], 0.0)


def _pick_tile_rows(R, S, vmem_budget_bytes=12 * 1024 * 1024):
    """Largest row-tile fitting a conservative VMEM budget (safe for v7x's 64 MiB physical VMEM).

    Accounts for the (8/16, 128) tiled VMEM layout that small trailing dims get padded to,
    and for the double-buffered input/output pipeline.
    """
    feat_row = _round_up(S, 16) * LANE * 2        # bf16 neighborhood features
    pos_row = _round_up(S, 8) * LANE * 4          # f32 relative positions
    out_row = LANE * 4                            # f32 output tile
    per_row = 2 * (feat_row + pos_row) + 2 * out_row
    cap = max(8, (vmem_budget_bytes // per_row) // 8 * 8)
    cap = min(cap, 1024)
    return min(cap, _round_up(R, 8))


def convpool_assa_pallas(feats, rel_pos, w_folded, bn_bias):
    """feats: (R, S, C); rel_pos: (R, S, 3); w_folded: (C, C_out); bn_bias: (1, C_out) -> (R, C_out) f32."""
    R, S, C = feats.shape
    C_out = w_folded.shape[1]
    c_pad = _round_up(C_out, LANE)          # lane-dense output -> unmasked vector stores
    tile = _pick_tile_rows(R, S)
    r_pad = _round_up(R, tile)

    if r_pad != R:                           # zero-pad rows: no R % tile_rows restriction
        feats = jnp.pad(feats, ((0, r_pad - R), (0, 0), (0, 0)))
        rel_pos = jnp.pad(rel_pos, ((0, r_pad - R), (0, 0), (0, 0)))
    w_p = jnp.pad(w_folded.astype(jnp.float32), ((0, 0), (0, c_pad - C_out)))
    b_p = jnp.pad(bn_bias.astype(jnp.float32), ((0, 0), (0, c_pad - C_out)))

    grid = (r_pad // tile,)                  # "parallel": lets v7x shard row-tiles across both TCs
    out = pl.pallas_call(
        convpool_assa_kernel,
        out_shape=jax.ShapeDtypeStruct((r_pad, c_pad), jnp.float32),
        grid_spec=pltpu.PrefetchScalarGridSpec(
            num_scalar_prefetch=0,
            grid=grid,
            in_specs=[
                pl.BlockSpec((tile, S, C), lambda i: (i, 0, 0)),
                pl.BlockSpec((tile, S, 3), lambda i: (i, 0, 0)),
                pl.BlockSpec((C, c_pad), lambda i: (0, 0)),
                pl.BlockSpec((1, c_pad), lambda i: (0, 0)),
            ],
            out_specs=pl.BlockSpec((tile, c_pad), lambda i: (i, 0)),
        ),
        compiler_params=pltpu.CompilerParams(
            dimension_semantics=("parallel",),
            vmem_limit_bytes=32 * 1024 * 1024,
        ),
    )(feats, rel_pos, w_p, b_p)
    return out[:R, :C_out]


def knn_group(query_xyz, support_xyz, support_features, nsample):
    """Simple kNN grouper (stands in for build_grouper's ball-query/kNN).

    query_xyz:        [B, npoint, 3]
    support_xyz:      [B, N, 3]
    support_features: [B, C, N]
    returns: neighborhood_features [B, npoint, nsample, C] (channel-last),
             relative_position     [B, npoint, nsample, 3] (channel-last)
    """
    B = query_xyz.shape[0]
    d2 = jnp.sum((query_xyz[:, :, None, :] - support_xyz[:, None, :, :]) ** 2, axis=-1)
    _, idx = lax.top_k(-d2, nsample)
    b_idx = jnp.arange(B)[:, None, None]
    grouped_xyz = support_xyz[b_idx, idx, :]
    rel_pos = grouped_xyz - query_xyz[:, :, None, :]
    feats_nl = jnp.transpose(support_features, (0, 2, 1))
    nbr_feats = feats_nl[b_idx, idx, :]
    return nbr_feats, rel_pos


def local_aggregation_forward(query_xyz, support_xyz, support_features, params, *, nsample):
    """Full LocalAggregation (ConvPool / 'assa' / 'max') forward -> [B, C_out, npoint]."""
    B, C, N = support_features.shape
    npoint = query_xyz.shape[1]
    assert C >= 3, "assa path for C<3 (attention = sum(rel_pos)) not implemented"
    # TODO(synk): the grouper (ball-query/kNN gather) stays in plain JAX; a scalar-prefetch /
    #             manual-DMA gather inside the kernel would avoid materializing nbr_feats in HBM.
    nbr_feats, rel_pos = knn_group(query_xyz, support_xyz, support_features, nsample)

    R = B * npoint
    # bf16 storage of the big neighborhood tensor halves HBM/DMA bytes on a mem-bound kernel.
    feats_k = nbr_feats.reshape(R, nsample, C).astype(jnp.bfloat16)
    # position embedding ('assa' repeat_interleave) is built inside the kernel from the raw
    # 3-channel relative positions, so no [R, nsample, C] pos_emb tensor ever hits HBM.
    pos_k = rel_pos.reshape(R, nsample, 3).astype(jnp.float32)

    out = convpool_assa_pallas(feats_k, pos_k, params["w_folded"], params["bn_bias"])   # [R, C_out]
    C_out = params["w_folded"].shape[1]
    out = out.reshape(B, npoint, C_out)
    return jnp.transpose(out, (0, 2, 1))                  # [B, C_out, npoint]


def reference_forward(query_xyz, support_xyz, support_features, params, *, nsample):
    """Pure-JAX reference following the PyTorch op order (conv -> BN -> ReLU -> max-pool).

    Uses the same bf16 rounding points as the kernel (feats storage, MXU inputs) so the
    comparison isolates kernel plumbing from the chosen storage precision.
    """
    B, C, N = support_features.shape
    nbr_feats, rel_pos = knn_group(query_xyz, support_xyz, support_features, nsample)
    repeats = C // 3
    rep_idx = np.array([0] * repeats + [1] * repeats + [2] * (C - 2 * repeats), dtype=np.int32)
    pe = rel_pos[..., rep_idx]                                        # [B, npoint, S, C]
    nf = nbr_feats.astype(jnp.bfloat16).astype(jnp.float32)           # kernel stores feats in bf16
    agg = (pe * nf).astype(jnp.bfloat16).astype(jnp.float32)          # kernel feeds the MXU in bf16
    w = params["w_folded"].astype(jnp.bfloat16).astype(jnp.float32)   # [C, C_out], BN scale folded
    y = jnp.einsum("bpsc,co->bpso", agg, w, precision=lax.Precision.HIGHEST)
    y = y + params["bn_bias"][0][None, None, None, :]
    y = jnp.maximum(y, 0.0)                                           # ReLU before pooling
    out = jnp.max(y, axis=2)                                          # max over nsample
    return jnp.transpose(out, (0, 2, 1))                              # [B, C_out, npoint]


if __name__ == "__main__":
    key = jax.random.PRNGKey(0)
    B, N, npoint, nsample = 2, 64, 16, 8
    C, C_out = 9, 16

    k1, k2, k3 = jax.random.split(key, 3)
    support_xyz = jax.random.uniform(k1, (B, N, 3), dtype=jnp.float32)
    query_xyz = support_xyz[:, :npoint, :]                 # queries = subset of support (like FPS output)
    support_features = jax.random.normal(k2, (B, C, N), dtype=jnp.float32)

    # Conv2d(C -> C_out, 1x1, bias=False) + BatchNorm2d (eval mode), BN scale folded into the weight.
    w_conv = jax.random.normal(k3, (C_out, C), dtype=jnp.float32) * 0.1    # torch layout [C_out, C, 1, 1]
    gamma = jnp.ones((C_out,), jnp.float32)
    beta = 0.1 * jnp.arange(C_out, dtype=jnp.float32)
    run_mean = 0.01 * jnp.arange(C_out, dtype=jnp.float32)
    run_var = jnp.ones((C_out,), jnp.float32) + 0.05 * jnp.arange(C_out, dtype=jnp.float32)
    eps = 1e-5
    bn_scale = gamma / jnp.sqrt(run_var + eps)
    bn_bias = beta - run_mean * bn_scale
    params = {
        "w_folded": jnp.transpose(w_conv) * bn_scale[None, :],   # [C, C_out] = conv_weight^T * bn_scale
        "bn_bias": bn_bias[None, :],                             # [1, C_out]
    }

    out = local_aggregation_forward(query_xyz, support_xyz, support_features, params, nsample=nsample)
    out = jax.block_until_ready(out)

    ref = reference_forward(query_xyz, support_xyz, support_features, params, nsample=nsample)
    ref = jax.block_until_ready(ref)

    assert out.shape == (B, C_out, npoint), out.shape
    np.testing.assert_allclose(np.asarray(out), np.asarray(ref), rtol=2e-3, atol=2e-3)
    print("KERNEL_OK")
</pallas_src>

<mosaic_0001>
module attributes {stable_mosaic.version = 11 : i64} {
  func.func @convpool_assa_kernel(%arg0: i32, %arg1: memref<32x8x9xbf16, #tpu.memory_space<vmem>>, %arg2: memref<32x8x3xf32, #tpu.memory_space<vmem>>, %arg3: memref<9x128xf32, #tpu.memory_space<vmem>>, %arg4: memref<1x128xf32, #tpu.memory_space<vmem>>, %arg5: memref<32x128xf32, #tpu.memory_space<vmem>>) attributes {dimension_semantics = [#tpu.dimension_semantics<parallel>], iteration_bounds = array<i64: 1>, scalar_prefetch = 0 : i64, scratch_operands = 0 : i64, tpu.core_type = #tpu.core_type<tc>, window_params = [{transform_indices = @transform_0, window_bounds = array<i64: 32, 8, 9>}, {transform_indices = @transform_1, window_bounds = array<i64: 32, 8, 3>}, {pipeline_mode = #tpu.pipeline_mode<synchronous>, transform_indices = @transform_2, window_bounds = array<i64: 9, 128>}, {pipeline_mode = #tpu.pipeline_mode<synchronous>, transform_indices = @transform_3, window_bounds = array<i64: 1, 128>}, {transform_indices = @transform_4, window_bounds = array<i64: 32, 128>}]} {
    %0 = tpu.iota {dimensions = array<i32: 1>} : vector<1x9xi32>
    %c3_i32 = arith.constant 3 : i32
    %1 = vector.broadcast %c3_i32 : i32 to vector<1x9xi32>
    %2 = arith.cmpi slt, %0, %1 : vector<1x9xi32>
    %3 = arith.extui %2 : vector<1x9xi1> to vector<1x9xi32>
    %4 = arith.sitofp %3 : vector<1x9xi32> to vector<1x9xf32>
    %c3_i32_0 = arith.constant 3 : i32
    %5 = vector.broadcast %c3_i32_0 : i32 to vector<1x9xi32>
    %6 = arith.cmpi sge, %0, %5 : vector<1x9xi32>
    %c6_i32 = arith.constant 6 : i32
    %7 = vector.broadcast %c6_i32 : i32 to vector<1x9xi32>
    %8 = arith.cmpi slt, %0, %7 : vector<1x9xi32>
    %9 = arith.andi %6, %8 : vector<1x9xi1>
    %10 = arith.extui %9 : vector<1x9xi1> to vector<1x9xi32>
    %11 = arith.sitofp %10 : vector<1x9xi32> to vector<1x9xf32>
    %c6_i32_1 = arith.constant 6 : i32
    %12 = vector.broadcast %c6_i32_1 : i32 to vector<1x9xi32>
    %13 = arith.cmpi sge, %0, %12 : vector<1x9xi32>
    %14 = arith.extui %13 : vector<1x9xi1> to vector<1x9xi32>
    %15 = arith.sitofp %14 : vector<1x9xi32> to vector<1x9xf32>
    %c0 = arith.constant 0 : index
    %c0_2 = arith.constant 0 : index
    %16 = vector.load %arg3[%c0, %c0_2] : memref<9x128xf32, #tpu.memory_space<vmem>>, vector<9x128xf32>
    %17 = arith.truncf %16 : vector<9x128xf32> to vector<9x128xbf16>
    %c0_3 = arith.constant 0 : index
    %c0_4 = arith.constant 0 : index
    %c0_5 = arith.constant 0 : index
    %18 = vector.load %arg1[%c0_3, %c0_4, %c0_5] : memref<32x8x9xbf16, #tpu.memory_space<vmem>>, vector<32x1x9xbf16>
    %19 = vector.shape_cast %18 : vector<32x1x9xbf16> to vector<32x9xbf16>
    %20 = arith.extf %19 : vector<32x9xbf16> to vector<32x9xf32>
    %c0_6 = arith.constant 0 : index
    %c0_7 = arith.constant 0 : index
    %c0_8 = arith.constant 0 : index
    %21 = vector.load %arg2[%c0_6, %c0_7, %c0_8] : memref<32x8x3xf32, #tpu.memory_space<vmem>>, vector<32x1x3xf32>
    %22 = vector.shape_cast %21 : vector<32x1x3xf32> to vector<32x3xf32>
    %23 = vector.extract_strided_slice %22 {offsets = [0, 0], sizes = [32, 1], strides = [1, 1]} : vector<32x3xf32> to vector<32x1xf32>
    %24 = vector.broadcast %23 : vector<32x1xf32> to vector<32x9xf32>
    %25 = vector.broadcast %4 : vector<1x9xf32> to vector<32x9xf32>
    %26 = arith.mulf %24, %25 : vector<32x9xf32>
    %27 = vector.extract_strided_slice %22 {offsets = [0, 1], sizes = [32, 1], strides = [1, 1]} : vector<32x3xf32> to vector<32x1xf32>
    %28 = vector.broadcast %27 : vector<32x1xf32> to vector<32x9xf32>
    %29 = vector.broadcast %11 : vector<1x9xf32> to vector<32x9xf32>
    %30 = arith.mulf %28, %29 : vector<32x9xf32>
    %31 = arith.addf %26, %30 : vector<32x9xf32>
    %32 = vector.extract_strided_slice %22 {offsets = [0, 2], sizes = [32, 1], strides = [1, 1]} : vector<32x3xf32> to vector<32x1xf32>
    %33 = vector.broadcast %32 : vector<32x1xf32> to vector<32x9xf32>
    %34 = vector.broadcast %15 : vector<1x9xf32> to vector<32x9xf32>
    %35 = arith.mulf %33, %34 : vector<32x9xf32>
    %36 = arith.addf %31, %35 : vector<32x9xf32>
    %37 = arith.mulf %20, %36 : vector<32x9xf32>
    %38 = arith.truncf %37 : vector<32x9xf32> to vector<32x9xbf16>
    %cst = arith.constant dense<0.000000e+00> : vector<32x128xf32>
    %39 = tpu.matmul %38, %17, %cst {dimension_numbers = #tpu.dot_dimension_numbers<[1], [0], [0], [1], [0, 0, 1, 1], [], []>} : vector<32x9xbf16>, vector<9x128xbf16>, vector<32x128xf32> -> vector<32x128xf32>
    %c0_9 = arith.constant 0 : index
    %c1 = arith.constant 1 : index
    %c0_10 = arith.constant 0 : index
    %40 = vector.load %arg1[%c0_9, %c1, %c0_10] : memref<32x8x9xbf16, #tpu.memory_space<vmem>>, vector<32x1x9xbf16>
    %41 = vector.shape_cast %40 : vector<32x1x9xbf16> to vector<32x9xbf16>
    %42 = arith.extf %41 : vector<32x9xbf16> to vector<32x9xf32>
    %c0_11 = arith.constant 0 : index
    %c1_12 = arith.constant 1 : index
    %c0_13 = arith.constant 0 : index
    %43 = vector.load %arg2[%c0_11, %c1_12, %c0_13] : memref<32x8x3xf32, #tpu.memory_space<vmem>>, vector<32x1x3xf32>
    %44 = vector.shape_cast %43 : vector<32x1x3xf32> to vector<32x3xf32>
    %45 = vector.extract_strided_slice %44 {offsets = [0, 0], sizes = [32, 1], strides = [1, 1]} : vector<32x3xf32> to vector<32x1xf32>
    %46 = vector.broadcast %45 : vector<32x1xf32> to vector<32x9xf32>
    %47 = vector.broadcast %4 : vector<1x9xf32> to vector<32x9xf32>
    %48 = arith.mulf %46, %47 : vector<32x9xf32>
    %49 = vector.extract_strided_slice %44 {offsets = [0, 1], sizes = [32, 1], strides = [1, 1]} : vector<32x3xf32> to vector<32x1xf32>
    %50 = vector.broadcast %49 : vector<32x1xf32> to vector<32x9xf32>
    %51 = vector.broadcast %11 : vector<1x9xf32> to vector<32x9xf32>
    %52 = arith.mulf %50, %51 : vector<32x9xf32>
    %53 = arith.addf %48, %52 : vector<32x9xf32>
    %54 = vector.extract_strided_slice %44 {offsets = [0, 2], sizes = [32, 1], strides = [1, 1]} : vector<32x3xf32> to vector<32x1xf32>
    %55 = vector.broadcast %54 : vector<32x1xf32> to vector<32x9xf32>
    %56 = vector.broadcast %15 : vector<1x9xf32> to vector<32x9xf32>
    %57 = arith.mulf %55, %56 : vector<32x9xf32>
    %58 = arith.addf %53, %57 : vector<32x9xf32>
    %59 = arith.mulf %42, %58 : vector<32x9xf32>
    %60 = arith.truncf %59 : vector<32x9xf32> to vector<32x9xbf16>
    %cst_14 = arith.constant dense<0.000000e+00> : vector<32x128xf32>
    %61 = tpu.matmul %60, %17, %cst_14 {dimension_numbers = #tpu.dot_dimension_numbers<[1], [0], [0], [1], [0, 0, 1, 1], [], []>} : vector<32x9xbf16>, vector<9x128xbf16>, vector<32x128xf32> -> vector<32x128xf32>
    %62 = arith.maximumf %39, %61 : vector<32x128xf32>
    %c0_15 = arith.constant 0 : index
    %c2 = arith.constant 2 : index
    %c0_16 = arith.constant 0 : index
    %63 = vector.load %arg1[%c0_15, %c2, %c0_16] : memref<32x8x9xbf16, #tpu.memory_space<vmem>>, vector<32x1x9xbf16>
    %64 = vector.shape_cast %63 : vector<32x1x9xbf16> to vector<32x9xbf16>
    %65 = arith.extf %64 : vector<32x9xbf16> to vector<32x9xf32>
    %c0_17 = arith.constant 0 : index
    %c2_18 = arith.constant 2 : index
    %c0_19 = arith.constant 0 : index
    %66 = vector.load %arg2[%c0_17, %c2_18, %c0_19] : memref<32x8x3xf32, #tpu.memory_space<vmem>>, vector<32x1x3xf32>
    %67 = vector.shape_cast %66 : vector<32x1x3xf32> to vector<32x3xf32>
    %68 = vector.extract_strided_slice %67 {offsets = [0, 0], sizes = [32, 1], strides = [1, 1]} : vector<32x3xf32> to vector<32x1xf32>
    %69 = vector.broadcast %68 : vector<32x1xf32> to vector<32x9xf32>
    %70 = vector.broadcast %4 : vector<1x9xf32> to vector<32x9xf32>
    %71 = arith.mulf %69, %70 : vector<32x9xf32>
    %72 = vector.extract_strided_slice %67 {offsets = [0, 1], sizes = [32, 1], strides = [1, 1]} : vector<32x3xf32> to vector<32x1xf32>
    %73 = vector.broadcast %72 : vector<32x1xf32> to vector<32x9xf32>
    %74 = vector.broadcast %11 : vector<1x9xf32> to vector<32x9xf32>
    %75 = arith.mulf %73, %74 : vector<32x9xf32>
    %76 = arith.addf %71, %75 : vector<32x9xf32>
    %77 = vector.extract_strided_slice %67 {offsets = [0, 2], sizes = [32, 1], strides = [1, 1]} : vector<32x3xf32> to vector<32x1xf32>
    %78 = vector.broadcast %77 : vector<32x1xf32> to vector<32x9xf32>
    %79 = vector.broadcast %15 : vector<1x9xf32> to vector<32x9xf32>
    %80 = arith.mulf %78, %79 : vector<32x9xf32>
    %81 = arith.addf %76, %80 : vector<32x9xf32>
    %82 = arith.mulf %65, %81 : vector<32x9xf32>
    %83 = arith.truncf %82 : vector<32x9xf32> to vector<32x9xbf16>
    %cst_20 = arith.constant dense<0.000000e+00> : vector<32x128xf32>
    %84 = tpu.matmul %83, %17, %cst_20 {dimension_numbers = #tpu.dot_dimension_numbers<[1], [0], [0], [1], [0, 0, 1, 1], [], []>} : vector<32x9xbf16>, vector<9x128xbf16>, vector<32x128xf32> -> vector<32x128xf32>
    %85 = arith.maximumf %62, %84 : vector<32x128xf32>
    %c0_21 = arith.constant 0 : index
    %c3 = arith.constant 3 : index
    %c0_22 = arith.constant 0 : index
    %86 = vector.load %arg1[%c0_21, %c3, %c0_22] : memref<32x8x9xbf16, #tpu.memory_space<vmem>>, vector<32x1x9xbf16>
    %87 = vector.shape_cast %86 : vector<32x1x9xbf16> to vector<32x9xbf16>
    %88 = arith.extf %87 : vector<32x9xbf16> to vector<32x9xf32>
    %c0_23 = arith.constant 0 : index
    %c3_24 = arith.constant 3 : index
    %c0_25 = arith.constant 0 : index
    %89 = vector.load %arg2[%c0_23, %c3_24, %c0_25] : memref<32x8x3xf32, #tpu.memory_space<vmem>>, vector<32x1x3xf32>
    %90 = vector.shape_cast %89 : vector<32x1x3xf32> to vector<32x3xf32>
    %91 = vector.extract_strided_slice %90 {offsets = [0, 0], sizes = [32, 1], strides = [1, 1]} : vector<32x3xf32> to vector<32x1xf32>
    %92 = vector.broadcast %91 : vector<32x1xf32> to vector<32x9xf32>
    %93 = vector.broadcast %4 : vector<1x9xf32> to vector<32x9xf32>
    %94 = arith.mulf %92, %93 : vector<32x9xf32>
    %95 = vector.extract_strided_slice %90 {offsets = [0, 1], sizes = [32, 1], strides = [1, 1]} : vector<32x3xf32> to vector<32x1xf32>
    %96 = vector.broadcast %95 : vector<32x1xf32> to vector<32x9xf32>
    %97 = vector.broadcast %11 : vector<1x9xf32> to vector<32x9xf32>
    %98 = arith.mulf %96, %97 : vector<32x9xf32>
    %99 = arith.addf %94, %98 : vector<32x9xf32>
    %100 = vector.extract_strided_slice %90 {offsets = [0, 2], sizes = [32, 1], strides = [1, 1]} : vector<32x3xf32> to vector<32x1xf32>
    %101 = vector.broadcast %100 : vector<32x1xf32> to vector<32x9xf32>
    %102 = vector.broadcast %15 : vector<1x9xf32> to vector<32x9xf32>
    %103 = arith.mulf %101, %102 : vector<32x9xf32>
    %104 = arith.addf %99, %103 : vector<32x9xf32>
    %105 = arith.mulf %88, %104 : vector<32x9xf32>
    %106 = arith.truncf %105 : vector<32x9xf32> to vector<32x9xbf16>
    %cst_26 = arith.constant dense<0.000000e+00> : vector<32x128xf32>
    %107 = tpu.matmul %106, %17, %cst_26 {dimension_numbers = #tpu.dot_dimension_numbers<[1], [0], [0], [1], [0, 0, 1, 1], [], []>} : vector<32x9xbf16>, vector<9x128xbf16>, vector<32x128xf32> -> vector<32x128xf32>
    %108 = arith.maximumf %85, %107 : vector<32x128xf32>
    %c0_27 = arith.constant 0 : index
    %c4 = arith.constant 4 : index
    %c0_28 = arith.constant 0 : index
    %109 = vector.load %arg1[%c0_27, %c4, %c0_28] : memref<32x8x9xbf16, #tpu.memory_space<vmem>>, vector<32x1x9xbf16>
    %110 = vector.shape_cast %109 : vector<32x1x9xbf16> to vector<32x9xbf16>
    %111 = arith.extf %110 : vector<32x9xbf16> to vector<32x9xf32>
    %c0_29 = arith.constant 0 : index
    %c4_30 = arith.constant 4 : index
    %c0_31 = arith.constant 0 : index
    %112 = vector.load %arg2[%c0_29, %c4_30, %c0_31] : memref<32x8x3xf32, #tpu.memory_space<vmem>>, vector<32x1x3xf32>
    %113 = vector.shape_cast %112 : vector<32x1x3xf32> to vector<32x3xf32>
    %114 = vector.extract_strided_slice %113 {offsets = [0, 0], sizes = [32, 1], strides = [1, 1]} : vector<32x3xf32> to vector<32x1xf32>
    %115 = vector.broadcast %114 : vector<32x1xf32> to vector<32x9xf32>
    %116 = vector.broadcast %4 : vector<1x9xf32> to vector<32x9xf32>
    %117 = arith.mulf %115, %116 : vector<32x9xf32>
    %118 = vector.extract_strided_slice %113 {offsets = [0, 1], sizes = [32, 1], strides = [1, 1]} : vector<32x3xf32> to vector<32x1xf32>
    %119 = vector.broadcast %118 : vector<32x1xf32> to vector<32x9xf32>
    %120 = vector.broadcast %11 : vector<1x9xf32> to vector<32x9xf32>
    %121 = arith.mulf %119, %120 : vector<32x9xf32>
    %122 = arith.addf %117, %121 : vector<32x9xf32>
    %123 = vector.extract_strided_slice %113 {offsets = [0, 2], sizes = [32, 1], strides = [1, 1]} : vector<32x3xf32> to vector<32x1xf32>
    %124 = vector.broadcast %123 : vector<32x1xf32> to vector<32x9xf32>
    %125 = vector.broadcast %15 : vector<1x9xf32> to vector<32x9xf32>
    %126 = arith.mulf %124, %125 : vector<32x9xf32>
    %127 = arith.addf %122, %126 : vector<32x9xf32>
    %128 = arith.mulf %111, %127 : vector<32x9xf32>
    %129 = arith.truncf %128 : vector<32x9xf32> to vector<32x9xbf16>
    %cst_32 = arith.constant dense<0.000000e+00> : vector<32x128xf32>
    %130 = tpu.matmul %129, %17, %cst_32 {dimension_numbers = #tpu.dot_dimension_numbers<[1], [0], [0], [1], [0, 0, 1, 1], [], []>} : vector<32x9xbf16>, vector<9x128xbf16>, vector<32x128xf32> -> vector<32x128xf32>
    %131 = arith.maximumf %108, %130 : vector<32x128xf32>
    %c0_33 = arith.constant 0 : index
    %c5 = arith.constant 5 : index
    %c0_34 = arith.constant 0 : index
    %132 = vector.load %arg1[%c0_33, %c5, %c0_34] : memref<32x8x9xbf16, #tpu.memory_space<vmem>>, vector<32x1x9xbf16>
    %133 = vector.shape_cast %132 : vector<32x1x9xbf16> to vector<32x9xbf16>
    %134 = arith.extf %133 : vector<32x9xbf16> to vector<32x9xf32>
    %c0_35 = arith.constant 0 : index
    %c5_36 = arith.constant 5 : index
    %c0_37 = arith.constant 0 : index
    %135 = vector.load %arg2[%c0_35, %c5_36, %c0_37] : memref<32x8x3xf32, #tpu.memory_space<vmem>>, vector<32x1x3xf32>
    %136 = vector.shape_cast %135 : vector<32x1x3xf32> to vector<32x3xf32>
    %137 = vector.extract_strided_slice %136 {offsets = [0, 0], sizes = [32, 1], strides = [1, 1]} : vector<32x3xf32> to vector<32x1xf32>
    %138 = vector.broadcast %137 : vector<32x1xf32> to vector<32x9xf32>
    %139 = vector.broadcast %4 : vector<1x9xf32> to vector<32x9xf32>
    %140 = arith.mulf %138, %139 : vector<32x9xf32>
    %141 = vector.extract_strided_slice %136 {offsets = [0, 1], sizes = [32, 1], strides = [1, 1]} : vector<32x3xf32> to vector<32x1xf32>
    %142 = vector.broadcast %141 : vector<32x1xf32> to vector<32x9xf32>
    %143 = vector.broadcast %11 : vector<1x9xf32> to vector<32x9xf32>
    %144 = arith.mulf %142, %143 : vector<32x9xf32>
    %145 = arith.addf %140, %144 : vector<32x9xf32>
    %146 = vector.extract_strided_slice %136 {offsets = [0, 2], sizes = [32, 1], strides = [1, 1]} : vector<32x3xf32> to vector<32x1xf32>
    %147 = vector.broadcast %146 : vector<32x1xf32> to vector<32x9xf32>
    %148 = vector.broadcast %15 : vector<1x9xf32> to vector<32x9xf32>
    %149 = arith.mulf %147, %148 : vector<32x9xf32>
    %150 = arith.addf %145, %149 : vector<32x9xf32>
    %151 = arith.mulf %134, %150 : vector<32x9xf32>
    %152 = arith.truncf %151 : vector<32x9xf32> to vector<32x9xbf16>
    %cst_38 = arith.constant dense<0.000000e+00> : vector<32x128xf32>
    %153 = tpu.matmul %152, %17, %cst_38 {dimension_numbers = #tpu.dot_dimension_numbers<[1], [0], [0], [1], [0, 0, 1, 1], [], []>} : vector<32x9xbf16>, vector<9x128xbf16>, vector<32x128xf32> -> vector<32x128xf32>
    %154 = arith.maximumf %131, %153 : vector<32x128xf32>
    %c0_39 = arith.constant 0 : index
    %c6 = arith.constant 6 : index
    %c0_40 = arith.constant 0 : index
    %155 = vector.load %arg1[%c0_39, %c6, %c0_40] : memref<32x8x9xbf16, #tpu.memory_space<vmem>>, vector<32x1x9xbf16>
    %156 = vector.shape_cast %155 : vector<32x1x9xbf16> to vector<32x9xbf16>
    %157 = arith.extf %156 : vector<32x9xbf16> to vector<32x9xf32>
    %c0_41 = arith.constant 0 : index
    %c6_42 = arith.constant 6 : index
    %c0_43 = arith.constant 0 : index
    %158 = vector.load %arg2[%c0_41, %c6_42, %c0_43] : memref<32x8x3xf32, #tpu.memory_space<vmem>>, vector<32x1x3xf32>
    %159 = vector.shape_cast %158 : vector<32x1x3xf32> to vector<32x3xf32>
    %160 = vector.extract_strided_slice %159 {offsets = [0, 0], sizes = [32, 1], strides = [1, 1]} : vector<32x3xf32> to vector<32x1xf32>
    %161 = vector.broadcast %160 : vector<32x1xf32> to vector<32x9xf32>
    %162 = vector.broadcast %4 : vector<1x9xf32> to vector<32x9xf32>
    %163 = arith.mulf %161, %162 : vector<32x9xf32>
    %164 = vector.extract_strided_slice %159 {offsets = [0, 1], sizes = [32, 1], strides = [1, 1]} : vector<32x3xf32> to vector<32x1xf32>
    %165 = vector.broadcast %164 : vector<32x1xf32> to vector<32x9xf32>
    %166 = vector.broadcast %11 : vector<1x9xf32> to vector<32x9xf32>
    %167 = arith.mulf %165, %166 : vector<32x9xf32>
    %168 = arith.addf %163, %167 : vector<32x9xf32>
    %169 = vector.extract_strided_slice %159 {offsets = [0, 2], sizes = [32, 1], strides = [1, 1]} : vector<32x3xf32> to vector<32x1xf32>
    %170 = vector.broadcast %169 : vector<32x1xf32> to vector<32x9xf32>
    %171 = vector.broadcast %15 : vector<1x9xf32> to vector<32x9xf32>
    %172 = arith.mulf %170, %171 : vector<32x9xf32>
    %173 = arith.addf %168, %172 : vector<32x9xf32>
    %174 = arith.mulf %157, %173 : vector<32x9xf32>
    %175 = arith.truncf %174 : vector<32x9xf32> to vector<32x9xbf16>
    %cst_44 = arith.constant dense<0.000000e+00> : vector<32x128xf32>
    %176 = tpu.matmul %175, %17, %cst_44 {dimension_numbers = #tpu.dot_dimension_numbers<[1], [0], [0], [1], [0, 0, 1, 1], [], []>} : vector<32x9xbf16>, vector<9x128xbf16>, vector<32x128xf32> -> vector<32x128xf32>
    %177 = arith.maximumf %154, %176 : vector<32x128xf32>
    %c0_45 = arith.constant 0 : index
    %c7 = arith.constant 7 : index
    %c0_46 = arith.constant 0 : index
    %178 = vector.load %arg1[%c0_45, %c7, %c0_46] : memref<32x8x9xbf16, #tpu.memory_space<vmem>>, vector<32x1x9xbf16>
    %179 = vector.shape_cast %178 : vector<32x1x9xbf16> to vector<32x9xbf16>
    %180 = arith.extf %179 : vector<32x9xbf16> to vector<32x9xf32>
    %c0_47 = arith.constant 0 : index
    %c7_48 = arith.constant 7 : index
    %c0_49 = arith.constant 0 : index
    %181 = vector.load %arg2[%c0_47, %c7_48, %c0_49] : memref<32x8x3xf32, #tpu.memory_space<vmem>>, vector<32x1x3xf32>
    %182 = vector.shape_cast %181 : vector<32x1x3xf32> to vector<32x3xf32>
    %183 = vector.extract_strided_slice %182 {offsets = [0, 0], sizes = [32, 1], strides = [1, 1]} : vector<32x3xf32> to vector<32x1xf32>
    %184 = vector.broadcast %183 : vector<32x1xf32> to vector<32x9xf32>
    %185 = vector.broadcast %4 : vector<1x9xf32> to vector<32x9xf32>
    %186 = arith.mulf %184, %185 : vector<32x9xf32>
    %187 = vector.extract_strided_slice %182 {offsets = [0, 1], sizes = [32, 1], strides = [1, 1]} : vector<32x3xf32> to vector<32x1xf32>
    %188 = vector.broadcast %187 : vector<32x1xf32> to vector<32x9xf32>
    %189 = vector.broadcast %11 : vector<1x9xf32> to vector<32x9xf32>
    %190 = arith.mulf %188, %189 : vector<32x9xf32>
    %191 = arith.addf %186, %190 : vector<32x9xf32>
    %192 = vector.extract_strided_slice %182 {offsets = [0, 2], sizes = [32, 1], strides = [1, 1]} : vector<32x3xf32> to vector<32x1xf32>
    %193 = vector.broadcast %192 : vector<32x1xf32> to vector<32x9xf32>
    %194 = vector.broadcast %15 : vector<1x9xf32> to vector<32x9xf32>
    %195 = arith.mulf %193, %194 : vector<32x9xf32>
    %196 = arith.addf %191, %195 : vector<32x9xf32>
    %197 = arith.mulf %180, %196 : vector<32x9xf32>
    %198 = arith.truncf %197 : vector<32x9xf32> to vector<32x9xbf16>
    %cst_50 = arith.constant dense<0.000000e+00> : vector<32x128xf32>
    %199 = tpu.matmul %198, %17, %cst_50 {dimension_numbers = #tpu.dot_dimension_numbers<[1], [0], [0], [1], [0, 0, 1, 1], [], []>} : vector<32x9xbf16>, vector<9x128xbf16>, vector<32x128xf32> -> vector<32x128xf32>
    %200 = arith.maximumf %177, %199 : vector<32x128xf32>
    %c0_51 = arith.constant 0 : index
    %c0_52 = arith.constant 0 : index
    %201 = vector.load %arg4[%c0_51, %c0_52] : memref<1x128xf32, #tpu.memory_space<vmem>>, vector<1x128xf32>
    %202 = vector.broadcast %201 : vector<1x128xf32> to vector<32x128xf32>
    %203 = arith.addf %200, %202 : vector<32x128xf32>
    %cst_53 = arith.constant 0.000000e+00 : f32
    %204 = vector.broadcast %cst_53 : f32 to vector<32x128xf32>
    %205 = arith.maximumf %203, %204 : vector<32x128xf32>
    %c0_54 = arith.constant 0 : index
    %c0_55 = arith.constant 0 : index
    %206 = vector.load %arg5[%c0_54, %c0_55] : memref<32x128xf32, #tpu.memory_space<vmem>>, vector<32x128xf32>
    tpu.vector_store %arg5[%c0_54, %c0_55], %205 {strides = array<i32>} : memref<32x128xf32, #tpu.memory_space<vmem>>, vector<32x128xf32>,
    return
  }
  func.func @transform_0(%arg0: i32) -> (i32, i32, i32) {
    %c0_i32 = arith.constant 0 : i32
    %c0_i32_0 = arith.constant 0 : i32
    %c0_i32_1 = arith.constant 0 : i32
    return %arg0, %c0_i32, %c0_i32_0 : i32, i32, i32
  }
  func.func @transform_1(%arg0: i32) -> (i32, i32, i32) {
    %c0_i32 = arith.constant 0 : i32
    %c0_i32_0 = arith.constant 0 : i32
    %c0_i32_1 = arith.constant 0 : i32
    return %arg0, %c0_i32, %c0_i32_0 : i32, i32, i32
  }
  func.func @transform_2(%arg0: i32) -> (i32, i32) {
    %c0_i32 = arith.constant 0 : i32
    %c0_i32_0 = arith.constant 0 : i32
    %c0_i32_1 = arith.constant 0 : i32
    return %c0_i32, %c0_i32_0 : i32, i32
  }
  func.func @transform_3(%arg0: i32) -> (i32, i32) {
    %c0_i32 = arith.constant 0 : i32
    %c0_i32_0 = arith.constant 0 : i32
    %c0_i32_1 = arith.constant 0 : i32
    return %c0_i32, %c0_i32_0 : i32, i32
  }
  func.func @transform_4(%arg0: i32) -> (i32, i32) {
    %c0_i32 = arith.constant 0 : i32
    %c0_i32_0 = arith.constant 0 : i32
    return %arg0, %c0_i32 : i32, i32
  }
}

</mosaic_0001>

<llo_original>
// kernel: tpu_custom_call.1
$region0: #{tpu_custom_call.1}
  #allocation0 [shape = 'u32[]', space=smem, size = 0x4, offset = 0x4, fixed_abs, tag = 'smem constant byte address 0x4 - core index']
  #allocation1 [shape = 'u32[144,128]{1,0:T(1,128)}', space=vmem, size = 0x12000, scoped, tag = 'internal scratch']
  %s0 = inlined_call_operand.vmem [shape: bf16[32,8,9], index: 0, kind: input, shape index: {}]
  %s1 = inlined_call_operand.vmem [shape: f32[32,8,3], index: 1, kind: input, shape index: {}]
  %s2 = inlined_call_operand.vmem [shape: f32[9,128], index: 2, kind: input, shape index: {}]
  %s3 = inlined_call_operand.vmem [shape: f32[1,128], index: 3, kind: input, shape index: {}]
  %s4 = inlined_call_operand.hbm [shape: f32[32,128], index: 4, kind: output, shape index: {}]
  %s5 = sld [smem:[#allocation0]]
  $region26: #{tpu_custom_call.1} parent=0
    _
  %s7 = ssub.s32 1, %s5
  %s8 = scalar_select 0, %s7, %s5
  $region1: #{tpu_custom_call.1} parent=0
    #allocation2 [shape = 'u8[16384]{0}', space=vmem, size = 0x4000, scoped, tag = 'output window, operand 0, single buffered']
    #allocation3 [shape = 's32[1]{0}', space=sflag, size = 0x4, scoped, tag = 'scoped memory for tpu_custom_call.1']
    %9 = vsyncpa [#allocation3], 0
    // Predicated region
    $region2: #{tpu_custom_call.1} parent=1 // pred_check
      _
    $region3: #{tpu_custom_call.1} parent=1 // pred_check_branch
      %11 = sbr.rel (0) target = $region5
    $region4: #{tpu_custom_call.1} parent=1 // pred_region
      _
    $region5: #{tpu_custom_call.1} parent=1 // pred_fallthru
      _
    // Predicated region
    $region6: #{tpu_custom_call.1} parent=1 // pred_check
      _
    $region7: #{tpu_custom_call.1} parent=1 // pred_check_branch
      %13 = sbr.rel (0) target = $region9
    $region8: #{tpu_custom_call.1} parent=1 // pred_region
      _
    $region9: #{tpu_custom_call.1} parent=1 // pred_fallthru
      _
    // Predicated region
    $region10: #{tpu_custom_call.1} parent=1 // pred_check
      _
    $region11: #{tpu_custom_call.1} parent=1 // pred_check_branch
      %15 = sbr.rel (0) target = $region13
    $region12: #{tpu_custom_call.1} parent=1 // pred_region
      _
    $region13: #{tpu_custom_call.1} parent=1 // pred_fallthru
      _
    // Predicated region
    $region14: #{tpu_custom_call.1} parent=1 // pred_check
      _
    $region15: #{tpu_custom_call.1} parent=1 // pred_check_branch
      %17 = sbr.rel (0) target = $region17
    $region16: #{tpu_custom_call.1} parent=1 // pred_region
      _
    $region17: #{tpu_custom_call.1} parent=1 // pred_fallthru
      _
    %v19 = vlaneseq
    %v20 = vand.u32 %v19, 127
    %vm21 = vcmp.lt.s32.totalorder %v20, 3
    %v22 = vsel %vm21, 1, 0
    %v23 = vcvt.s32.f32 %v22
    %vm24 = vcmp.ge.s32.totalorder %v20, 3
    %vm25 = vcmp.lt.s32.totalorder %v20, 6
    %vm26 = vmand %vm24, %vm25
    %v27 = vsel %vm26, 1, 0
    %v28 = vcvt.s32.f32 %v27
    %vm29 = vcmp.ge.s32.totalorder %v20, 6
    %v30 = vsel %vm29, 1, 0
    %v31 = vcvt.s32.f32 %v30
    %v32 = vld [vmem:[%s2] sm:$0xff]
    %v33 = vld [vmem:[%s2 + $0x8] sm:$0x1]
    %v34 = vpack.c.bf16 %v33, %v32
    %v35 = vld [vmem:[%s0] sm:$0x1]
    %v36 = vld [vmem:[%s0 + $0x4] sm:$0x1]
    %v37 = vld [vmem:[%s0 + $0x8] sm:$0x1]
    %v38 = vld [vmem:[%s0 + $0xc] sm:$0x1]
    %v39 = vld [vmem:[%s0 + $0x10] sm:$0x1]
    %v40 = vld [vmem:[%s0 + $0x14] sm:$0x1]
    %v41 = vld [vmem:[%s0 + $0x18] sm:$0x1]
    %v42 = vld [vmem:[%s0 + $0x1c] sm:$0x1]
    %v43 = vld [vmem:[%s0 + $0x20] sm:$0x1]
    %v44 = vld [vmem:[%s0 + $0x24] sm:$0x1]
    %v45 = vld [vmem:[%s0 + $0x28] sm:$0x1]
    %v46 = vld [vmem:[%s0 + $0x2c] sm:$0x1]
    %v47 = vld [vmem:[%s0 + $0x30] sm:$0x1]
    %v48 = vld [vmem:[%s0 + $0x34] sm:$0x1]
    %v49 = vld [vmem:[%s0 + $0x38] sm:$0x1]
    %v50 = vld [vmem:[%s0 + $0x3c] sm:$0x1]
    %v51 = vld [vmem:[%s0 + $0x40] sm:$0x1]
    %v52 = vld [vmem:[%s0 + $0x44] sm:$0x1]
    %v53 = vld [vmem:[%s0 + $0x48] sm:$0x1]
    %v54 = vld [vmem:[%s0 + $0x4c] sm:$0x1]
    %v55 = vld [vmem:[%s0 + $0x50] sm:$0x1]
    %v56 = vld [vmem:[%s0 + $0x54] sm:$0x1]
    %v57 = vld [vmem:[%s0 + $0x58] sm:$0x1]
    %v58 = vld [vmem:[%s0 + $0x5c] sm:$0x1]
    %v59 = vld [vmem:[%s0 + $0x60] sm:$0x1]
    %v60 = vld [vmem:[%s0 + $0x64] sm:$0x1]
    %v61 = vld [vmem:[%s0 + $0x68] sm:$0x1]
    %v62 = vld [vmem:[%s0 + $0x6c] sm:$0x1]
    %v63 = vld [vmem:[%s0 + $0x70] sm:$0x1]
    %v64 = vld [vmem:[%s0 + $0x74] sm:$0x1]
    %v65 = vld [vmem:[%s0 + $0x78] sm:$0x1]
    %v66 = vld [vmem:[%s0 + $0x7c] sm:$0x1]
    %v67 = vunpack.c.l.bf16 %v35
    %v68 = vunpack.c.l.bf16 %v36
    %v69 = vunpack.c.l.bf16 %v37
    %v70 = vunpack.c.l.bf16 %v38
    %v71 = vunpack.c.l.bf16 %v39
    %v72 = vunpack.c.l.bf16 %v40
    %v73 = vunpack.c.l.bf16 %v41
    %v74 = vunpack.c.l.bf16 %v42
    %v75 = vunpack.c.l.bf16 %v43
    %v76 = vunpack.c.l.bf16 %v44
    %v77 = vunpack.c.l.bf16 %v45
    %v78 = vunpack.c.l.bf16 %v46
    %v79 = vunpack.c.l.bf16 %v47
    %v80 = vunpack.c.l.bf16 %v48
    %v81 = vunpack.c.l.bf16 %v49
    %v82 = vunpack.c.l.bf16 %v50
    %v83 = vunpack.c.l.bf16 %v51
    %v84 = vunpack.c.l.bf16 %v52
    %v85 = vunpack.c.l.bf16 %v53
    %v86 = vunpack.c.l.bf16 %v54
    %v87 = vunpack.c.l.bf16 %v55
    %v88 = vunpack.c.l.bf16 %v56
    %v89 = vunpack.c.l.bf16 %v57
    %v90 = vunpack.c.l.bf16 %v58
    %v91 = vunpack.c.l.bf16 %v59
    %v92 = vunpack.c.l.bf16 %v60
    %v93 = vunpack.c.l.bf16 %v61
    %v94 = vunpack.c.l.bf16 %v62
    %v95 = vunpack.c.l.bf16 %v63
    %v96 = vunpack.c.l.bf16 %v64
    %v97 = vunpack.c.l.bf16 %v65
    %v98 = vunpack.c.l.bf16 %v66
    %v99 = vld [vmem:[%s1] sm:$0x1]
    %v100 = vld [vmem:[%s1 + $0x8] sm:$0x1]
    %v101 = vld [vmem:[%s1 + $0x10] sm:$0x1]
    %v102 = vld [vmem:[%s1 + $0x18] sm:$0x1]
    %v103 = vld [vmem:[%s1 + $0x20] sm:$0x1]
    %v104 = vld [vmem:[%s1 + $0x28] sm:$0x1]
    %v105 = vld [vmem:[%s1 + $0x30] sm:$0x1]
    %v106 = vld [vmem:[%s1 + $0x38] sm:$0x1]
    %v107 = vld [vmem:[%s1 + $0x40] sm:$0x1]
    %v108 = vld [vmem:[%s1 + $0x48] sm:$0x1]
    %v109 = vld [vmem:[%s1 + $0x50] sm:$0x1]
    %v110 = vld [vmem:[%s1 + $0x58] sm:$0x1]
    %v111 = vld [vmem:[%s1 + $0x60] sm:$0x1]
    %v112 = vld [vmem:[%s1 + $0x68] sm:$0x1]
    %v113 = vld [vmem:[%s1 + $0x70] sm:$0x1]
    %v114 = vld [vmem:[%s1 + $0x78] sm:$0x1]
    %v115 = vld [vmem:[%s1 + $0x80] sm:$0x1]
    %v116 = vld [vmem:[%s1 + $0x88] sm:$0x1]
    %v117 = vld [vmem:[%s1 + $0x90] sm:$0x1]
    %v118 = vld [vmem:[%s1 + $0x98] sm:$0x1]
    %v119 = vld [vmem:[%s1 + $0xa0] sm:$0x1]
    %v120 = vld [vmem:[%s1 + $0xa8] sm:$0x1]
    %v121 = vld [vmem:[%s1 + $0xb0] sm:$0x1]
    %v122 = vld [vmem:[%s1 + $0xb8] sm:$0x1]
    %v123 = vld [vmem:[%s1 + $0xc0] sm:$0x1]
    %v124 = vld [vmem:[%s1 + $0xc8] sm:$0x1]
    %v125 = vld [vmem:[%s1 + $0xd0] sm:$0x1]
    %v126 = vld [vmem:[%s1 + $0xd8] sm:$0x1]
    %v127 = vld [vmem:[%s1 + $0xe0] sm:$0x1]
    %v128 = vld [vmem:[%s1 + $0xe8] sm:$0x1]
    %v129 = vld [vmem:[%s1 + $0xf0] sm:$0x1]
    %v130 = vld [vmem:[%s1 + $0xf8] sm:$0x1]
    %132 = vset.pattern.permute.xlu0 0
    %133 = vperm.xlu0 %132, %v99
    %v134 = vpop.permute.xlu0 %133
    %137 = vset.pattern.permute.xlu0 0
    %138 = vperm.xlu0 %137, %v100
    %v139 = vpop.permute.xlu0 %138
    %142 = vset.pattern.permute.xlu0 0
    %143 = vperm.xlu0 %142, %v101
    %v144 = vpop.permute.xlu0 %143
    %147 = vset.pattern.permute.xlu0 0
    %148 = vperm.xlu0 %147, %v102
    %v149 = vpop.permute.xlu0 %148
    %152 = vset.pattern.permute.xlu0 0
    %153 = vperm.xlu0 %152, %v103
    %v154 = vpop.permute.xlu0 %153
    %157 = vset.pattern.permute.xlu0 0
    %158 = vperm.xlu0 %157, %v104
    %v159 = vpop.permute.xlu0 %158
    %162 = vset.pattern.permute.xlu0 0
    %163 = vperm.xlu0 %162, %v105
    %v164 = vpop.permute.xlu0 %163
    %167 = vset.pattern.permute.xlu0 0
    %168 = vperm.xlu0 %167, %v106
    %v169 = vpop.permute.xlu0 %168
    %172 = vset.pattern.permute.xlu0 0
    %173 = vperm.xlu0 %172, %v107
    %v174 = vpop.permute.xlu0 %173
    %177 = vset.pattern.permute.xlu0 0
    %178 = vperm.xlu0 %177, %v108
    %v179 = vpop.permute.xlu0 %178
    %182 = vset.pattern.permute.xlu0 0
    %183 = vperm.xlu0 %182, %v109
    %v184 = vpop.permute.xlu0 %183
    %187 = vset.pattern.permute.xlu0 0
    %188 = vperm.xlu0 %187, %v110
    %v189 = vpop.permute.xlu0 %188
    %192 = vset.pattern.permute.xlu0 0
    %193 = vperm.xlu0 %192, %v111
    %v194 = vpop.permute.xlu0 %193
    %197 = vset.pattern.permute.xlu0 0
    %198 = vperm.xlu0 %197, %v112
    %v199 = vpop.permute.xlu0 %198
    %202 = vset.pattern.permute.xlu0 0
    %203 = vperm.xlu0 %202, %v113
    %v204 = vpop.permute.xlu0 %203
    %207 = vset.pattern.permute.xlu0 0
    %208 = vperm.xlu0 %207, %v114
    %v209 = vpop.permute.xlu0 %208
    %212 = vset.pattern.permute.xlu0 0
    %213 = vperm.xlu0 %212, %v115
    %v214 = vpop.permute.xlu0 %213
    %217 = vset.pattern.permute.xlu0 0
    %218 = vperm.xlu0 %217, %v116
    %v219 = vpop.permute.xlu0 %218
    %222 = vset.pattern.permute.xlu0 0
    %223 = vperm.xlu0 %222, %v117
    %v224 = vpop.permute.xlu0 %223
    %227 = vset.pattern.permute.xlu0 0
    %228 = vperm.xlu0 %227, %v118
    %v229 = vpop.permute.xlu0 %228
    %232 = vset.pattern.permute.xlu0 0
    %233 = vperm.xlu0 %232, %v119
    %v234 = vpop.permute.xlu0 %233
    %237 = vset.pattern.permute.xlu0 0
    %238 = vperm.xlu0 %237, %v120
    %v239 = vpop.permute.xlu0 %238
    %242 = vset.pattern.permute.xlu0 0
    %243 = vperm.xlu0 %242, %v121
    %v244 = vpop.permute.xlu0 %243
    %247 = vset.pattern.permute.xlu0 0
    %248 = vperm.xlu0 %247, %v122
    %v249 = vpop.permute.xlu0 %248
    %252 = vset.pattern.permute.xlu0 0
    %253 = vperm.xlu0 %252, %v123
    %v254 = vpop.permute.xlu0 %253
    %257 = vset.pattern.permute.xlu0 0
    %258 = vperm.xlu0 %257, %v124
    %v259 = vpop.permute.xlu0 %258
    %262 = vset.pattern.permute.xlu0 0
    %263 = vperm.xlu0 %262, %v125
    %v264 = vpop.permute.xlu0 %263
    %267 = vset.pattern.permute.xlu0 0
    %268 = vperm.xlu0 %267, %v126
    %v269 = vpop.permute.xlu0 %268
    %272 = vset.pattern.permute.xlu0 0
    %273 = vperm.xlu0 %272, %v127
    %v274 = vpop.permute.xlu0 %273
    %277 = vset.pattern.permute.xlu0 0
    %278 = vperm.xlu0 %277, %v128
    %v279 = vpop.permute.xlu0 %278
    %282 = vset.pattern.permute.xlu0 0
    %283 = vperm.xlu0 %282, %v129
    %v284 = vpop.permute.xlu0 %283
    %287 = vset.pattern.permute.xlu0 0
    %288 = vperm.xlu0 %287, %v130
    %v289 = vpop.permute.xlu0 %288
    %v291 = vmul.f32 %v134, %v23
    %v292 = vmul.f32 %v139, %v23
    %v293 = vmul.f32 %v144, %v23
    %v294 = vmul.f32 %v149, %v23
    %v295 = vmul.f32 %v154, %v23
    %v296 = vmul.f32 %v159, %v23
    %v297 = vmul.f32 %v164, %v23
    %v298 = vmul.f32 %v169, %v23
    %v299 = vmul.f32 %v174, %v23
    %v300 = vmul.f32 %v179, %v23
    %v301 = vmul.f32 %v184, %v23
    %v302 = vmul.f32 %v189, %v23
    %v303 = vmul.f32 %v194, %v23
    %v304 = vmul.f32 %v199, %v23
    %v305 = vmul.f32 %v204, %v23
    %v306 = vmul.f32 %v209, %v23
    %v307 = vmul.f32 %v214, %v23
    %v308 = vmul.f32 %v219, %v23
    %v309 = vmul.f32 %v224, %v23
    %v310 = vmul.f32 %v229, %v23
    %v311 = vmul.f32 %v234, %v23
    %v312 = vmul.f32 %v239, %v23
    %v313 = vmul.f32 %v244, %v23
    %v314 = vmul.f32 %v249, %v23
    %v315 = vmul.f32 %v254, %v23
    %v316 = vmul.f32 %v259, %v23
    %v317 = vmul.f32 %v264, %v23
    %v318 = vmul.f32 %v269, %v23
    %v319 = vmul.f32 %v274, %v23
    %v320 = vmul.f32 %v279, %v23
    %v321 = vmul.f32 %v284, %v23
    %v322 = vmul.f32 %v289, %v23
    %323 = vset.pattern.permute.xlu0 1
    %324 = vperm.xlu0 %323, %v99
    %v325 = vpop.permute.xlu0 %324
    %327 = vset.pattern.permute.xlu0 1
    %328 = vperm.xlu0 %327, %v100
    %v329 = vpop.permute.xlu0 %328
    %331 = vset.pattern.permute.xlu0 1
    %332 = vperm.xlu0 %331, %v101
    %v333 = vpop.permute.xlu0 %332
    %335 = vset.pattern.permute.xlu0 1
    %336 = vperm.xlu0 %335, %v102
    %v337 = vpop.permute.xlu0 %336
    %339 = vset.pattern.permute.xlu0 1
    %340 = vperm.xlu0 %339, %v103
    %v341 = vpop.permute.xlu0 %340
    %343 = vset.pattern.permute.xlu0 1
    %344 = vperm.xlu0 %343, %v104
    %v345 = vpop.permute.xlu0 %344
    %347 = vset.pattern.permute.xlu0 1
    %348 = vperm.xlu0 %347, %v105
    %v349 = vpop.permute.xlu0 %348
    %351 = vset.pattern.permute.xlu0 1
    %352 = vperm.xlu0 %351, %v106
    %v353 = vpop.permute.xlu0 %352
    %355 = vset.pattern.permute.xlu0 1
    %356 = vperm.xlu0 %355, %v107
    %v357 = vpop.permute.xlu0 %356
    %359 = vset.pattern.permute.xlu0 1
    %360 = vperm.xlu0 %359, %v108
    %v361 = vpop.permute.xlu0 %360
    %363 = vset.pattern.permute.xlu0 1
    %364 = vperm.xlu0 %363, %v109
    %v365 = vpop.permute.xlu0 %364
    %367 = vset.pattern.permute.xlu0 1
    %368 = vperm.xlu0 %367, %v110
    %v369 = vpop.permute.xlu0 %368
    %371 = vset.pattern.permute.xlu0 1
    %372 = vperm.xlu0 %371, %v111
    %v373 = vpop.permute.xlu0 %372
    %375 = vset.pattern.permute.xlu0 1
    %376 = vperm.xlu0 %375, %v112
    %v377 = vpop.permute.xlu0 %376
    %379 = vset.pattern.permute.xlu0 1
    %380 = vperm.xlu0 %379, %v113
    %v381 = vpop.permute.xlu0 %380
    %383 = vset.pattern.permute.xlu0 1
    %384 = vperm.xlu0 %383, %v114
    %v385 = vpop.permute.xlu0 %384
    %387 = vset.pattern.permute.xlu0 1
    %388 = vperm.xlu0 %387, %v115
    %v389 = vpop.permute.xlu0 %388
    %391 = vset.pattern.permute.xlu0 1
    %392 = vperm.xlu0 %391, %v116
    %v393 = vpop.permute.xlu0 %392
    %395 = vset.pattern.permute.xlu0 1
    %396 = vperm.xlu0 %395, %v117
    %v397 = vpop.permute.xlu0 %396
    %399 = vset.pattern.permute.xlu0 1
    %400 = vperm.xlu0 %399, %v118
    %v401 = vpop.permute.xlu0 %400
    %403 = vset.pattern.permute.xlu0 1
    %404 = vperm.xlu0 %403, %v119
    %v405 = vpop.permute.xlu0 %404
    %407 = vset.pattern.permute.xlu0 1
    %408 = vperm.xlu0 %407, %v120
    %v409 = vpop.permute.xlu0 %408
    %411 = vset.pattern.permute.xlu0 1
    %412 = vperm.xlu0 %411, %v121
    %v413 = vpop.permute.xlu0 %412
    %415 = vset.pattern.permute.xlu0 1
    %416 = vperm.xlu0 %415, %v122
    %v417 = vpop.permute.xlu0 %416
    %419 = vset.pattern.permute.xlu0 1
    %420 = vperm.xlu0 %419, %v123
    %v421 = vpop.permute.xlu0 %420
    %423 = vset.pattern.permute.xlu0 1
    %424 = vperm.xlu0 %423, %v124
    %v425 = vpop.permute.xlu0 %424
    %427 = vset.pattern.permute.xlu0 1
    %428 = vperm.xlu0 %427, %v125
    %v429 = vpop.permute.xlu0 %428
    %431 = vset.pattern.permute.xlu0 1
    %432 = vperm.xlu0 %431, %v126
    %v433 = vpop.permute.xlu0 %432
    %435 = vset.pattern.permute.xlu0 1
    %436 = vperm.xlu0 %435, %v127
    %v437 = vpop.permute.xlu0 %436
    %439 = vset.pattern.permute.xlu0 1
    %440 = vperm.xlu0 %439, %v128
    %v441 = vpop.permute.xlu0 %440
    %443 = vset.pattern.permute.xlu0 1
    %444 = vperm.xlu0 %443, %v129
    %v445 = vpop.permute.xlu0 %444
    %447 = vset.pattern.permute.xlu0 1
    %448 = vperm.xlu0 %447, %v130
    %v449 = vpop.permute.xlu0 %448
    %v451 = vmul.f32 %v325, %v28
    %v452 = vmul.f32 %v329, %v28
    %v453 = vmul.f32 %v333, %v28
    %v454 = vmul.f32 %v337, %v28
    %v455 = vmul.f32 %v341, %v28
    %v456 = vmul.f32 %v345, %v28
    %v457 = vmul.f32 %v349, %v28
    %v458 = vmul.f32 %v353, %v28
    %v459 = vmul.f32 %v357, %v28
    %v460 = vmul.f32 %v361, %v28
    %v461 = vmul.f32 %v365, %v28
    %v462 = vmul.f32 %v369, %v28
    %v463 = vmul.f32 %v373, %v28
    %v464 = vmul.f32 %v377, %v28
    %v465 = vmul.f32 %v381, %v28
    %v466 = vmul.f32 %v385, %v28
    %v467 = vmul.f32 %v389, %v28
    %v468 = vmul.f32 %v393, %v28
    %v469 = vmul.f32 %v397, %v28
    %v470 = vmul.f32 %v401, %v28
    %v471 = vmul.f32 %v405, %v28
    %v472 = vmul.f32 %v409, %v28
    %v473 = vmul.f32 %v413, %v28
    %v474 = vmul.f32 %v417, %v28
    %v475 = vmul.f32 %v421, %v28
    %v476 = vmul.f32 %v425, %v28
    %v477 = vmul.f32 %v429, %v28
    %v478 = vmul.f32 %v433, %v28
    %v479 = vmul.f32 %v437, %v28
    %v480 = vmul.f32 %v441, %v28
    %v481 = vmul.f32 %v445, %v28
    %v482 = vmul.f32 %v449, %v28
    %v483 = vadd.f32 %v291, %v451
    %v484 = vadd.f32 %v292, %v452
    %v485 = vadd.f32 %v293, %v453
    %v486 = vadd.f32 %v294, %v454
    %v487 = vadd.f32 %v295, %v455
    %v488 = vadd.f32 %v296, %v456
    %v489 = vadd.f32 %v297, %v457
    %v490 = vadd.f32 %v298, %v458
    %v491 = vadd.f32 %v299, %v459
    %v492 = vadd.f32 %v300, %v460
    %v493 = vadd.f32 %v301, %v461
    %v494 = vadd.f32 %v302, %v462
    %v495 = vadd.f32 %v303, %v463
    %v496 = vadd.f32 %v304, %v464
    %v497 = vadd.f32 %v305, %v465
    %v498 = vadd.f32 %v306, %v466
    %v499 = vadd.f32 %v307, %v467
    %v500 = vadd.f32 %v308, %v468
    %v501 = vadd.f32 %v309, %v469
    %v502 = vadd.f32 %v310, %v470
    %v503 = vadd.f32 %v311, %v471
    %v504 = vadd.f32 %v312, %v472
    %v505 = vadd.f32 %v313, %v473
    %v506 = vadd.f32 %v314, %v474
    %v507 = vadd.f32 %v315, %v475
    %v508 = vadd.f32 %v316, %v476
    %v509 = vadd.f32 %v317, %v477
    %v510 = vadd.f32 %v318, %v478
    %v511 = vadd.f32 %v319, %v479
    %v512 = vadd.f32 %v320, %v480
    %v513 = vadd.f32 %v321, %v481
    %v514 = vadd.f32 %v322, %v482
    %515 = vset.pattern.permute.xlu0 2
    %516 = vperm.xlu0 %515, %v99
    %v517 = vpop.permute.xlu0 %516
    %519 = vset.pattern.permute.xlu0 2
    %520 = vperm.xlu0 %519, %v100
    %v521 = vpop.permute.xlu0 %520
    %523 = vset.pattern.permute.xlu0 2
    %524 = vperm.xlu0 %523, %v101
    %v525 = vpop.permute.xlu0 %524
    %527 = vset.pattern.permute.xlu0 2
    %528 = vperm.xlu0 %527, %v102
    %v529 = vpop.permute.xlu0 %528
    %531 = vset.pattern.permute.xlu0 2
    %532 = vperm.xlu0 %531, %v103
    %v533 = vpop.permute.xlu0 %532
    %535 = vset.pattern.permute.xlu0 2
    %536 = vperm.xlu0 %535, %v104
    %v537 = vpop.permute.xlu0 %536
    %539 = vset.pattern.permute.xlu0 2
    %540 = vperm.xlu0 %539, %v105
    %v541 = vpop.permute.xlu0 %540
    %543 = vset.pattern.permute.xlu0 2
    %544 = vperm.xlu0 %543, %v106
    %v545 = vpop.permute.xlu0 %544
    %547 = vset.pattern.permute.xlu0 2
    %548 = vperm.xlu0 %547, %v107
    %v549 = vpop.permute.xlu0 %548
    %551 = vset.pattern.permute.xlu0 2
    %552 = vperm.xlu0 %551, %v108
    %v553 = vpop.permute.xlu0 %552
    %555 = vset.pattern.permute.xlu0 2
    %556 = vperm.xlu0 %555, %v109
    %v557 = vpop.permute.xlu0 %556
    %559 = vset.pattern.permute.xlu0 2
    %560 = vperm.xlu0 %559, %v110
    %v561 = vpop.permute.xlu0 %560
    %563 = vset.pattern.permute.xlu0 2
    %564 = vperm.xlu0 %563, %v111
    %v565 = vpop.permute.xlu0 %564
    %567 = vset.pattern.permute.xlu0 2
    %568 = vperm.xlu0 %567, %v112
    %v569 = vpop.permute.xlu0 %568
    %571 = vset.pattern.permute.xlu0 2
    %572 = vperm.xlu0 %571, %v113
    %v573 = vpop.permute.xlu0 %572
    %575 = vset.pattern.permute.xlu0 2
    %576 = vperm.xlu0 %575, %v114
    %v577 = vpop.permute.xlu0 %576
    %579 = vset.pattern.permute.xlu0 2
    %580 = vperm.xlu0 %579, %v115
    %v581 = vpop.permute.xlu0 %580
    %583 = vset.pattern.permute.xlu0 2
    %584 = vperm.xlu0 %583, %v116
    %v585 = vpop.permute.xlu0 %584
    %587 = vset.pattern.permute.xlu0 2
    %588 = vperm.xlu0 %587, %v117
    %v589 = vpop.permute.xlu0 %588
    %591 = vset.pattern.permute.xlu0 2
    %592 = vperm.xlu0 %591, %v118
    %v593 = vpop.permute.xlu0 %592
    %595 = vset.pattern.permute.xlu0 2
    %596 = vperm.xlu0 %595, %v119
    %v597 = vpop.permute.xlu0 %596
    %599 = vset.pattern.permute.xlu0 2
    %600 = vperm.xlu0 %599, %v120
    %v601 = vpop.permute.xlu0 %600
    %603 = vset.pattern.permute.xlu0 2
    %604 = vperm.xlu0 %603, %v121
    %v605 = vpop.permute.xlu0 %604
    %607 = vset.pattern.permute.xlu0 2
    %608 = vperm.xlu0 %607, %v122
    %v609 = vpop.permute.xlu0 %608
    %611 = vset.pattern.permute.xlu0 2
    %612 = vperm.xlu0 %611, %v123
    %v613 = vpop.permute.xlu0 %612
    %615 = vset.pattern.permute.xlu0 2
    %616 = vperm.xlu0 %615, %v124
    %v617 = vpop.permute.xlu0 %616
    %619 = vset.pattern.permute.xlu0 2
    %620 = vperm.xlu0 %619, %v125
    %v621 = vpop.permute.xlu0 %620
    %623 = vset.pattern.permute.xlu0 2
    %624 = vperm.xlu0 %623, %v126
    %v625 = vpop.permute.xlu0 %624
    %627 = vset.pattern.permute.xlu0 2
    %628 = vperm.xlu0 %627, %v127
    %v629 = vpop.permute.xlu0 %628
    %631 = vset.pattern.permute.xlu0 2
    %632 = vperm.xlu0 %631, %v128
    %v633 = vpop.permute.xlu0 %632
    %635 = vset.pattern.permute.xlu0 2
    %636 = vperm.xlu0 %635, %v129
    %v637 = vpop.permute.xlu0 %636
    %639 = vset.pattern.permute.xlu0 2
    %640 = vperm.xlu0 %639, %v130
    %v641 = vpop.permute.xlu0 %640
    %v643 = vmul.f32 %v517, %v31
    %v644 = vmul.f32 %v521, %v31
    %v645 = vmul.f32 %v525, %v31
    %v646 = vmul.f32 %v529, %v31
    %v647 = vmul.f32 %v533, %v31
    %v648 = vmul.f32 %v537, %v31
    %v649 = vmul.f32 %v541, %v31
    %v650 = vmul.f32 %v545, %v31
    %v651 = vmul.f32 %v549, %v31
    %v652 = vmul.f32 %v553, %v31
    %v653 = vmul.f32 %v557, %v31
    %v654 = vmul.f32 %v561, %v31
    %v655 = vmul.f32 %v565, %v31
    %v656 = vmul.f32 %v569, %v31
    %v657 = vmul.f32 %v573, %v31
    %v658 = vmul.f32 %v577, %v31
    %v659 = vmul.f32 %v581, %v31
    %v660 = vmul.f32 %v585, %v31
    %v661 = vmul.f32 %v589, %v31
    %v662 = vmul.f32 %v593, %v31
    %v663 = vmul.f32 %v597, %v31
    %v664 = vmul.f32 %v601, %v31
    %v665 = vmul.f32 %v605, %v31
    %v666 = vmul.f32 %v609, %v31
    %v667 = vmul.f32 %v613, %v31
    %v668 = vmul.f32 %v617, %v31
    %v669 = vmul.f32 %v621, %v31
    %v670 = vmul.f32 %v625, %v31
    %v671 = vmul.f32 %v629, %v31
    %v672 = vmul.f32 %v633, %v31
    %v673 = vmul.f32 %v637, %v31
    %v674 = vmul.f32 %v641, %v31
    %v675 = vadd.f32 %v483, %v643
    %v676 = vadd.f32 %v484, %v644
    %v677 = vadd.f32 %v485, %v645
    %v678 = vadd.f32 %v486, %v646
    %v679 = vadd.f32 %v487, %v647
    %v680 = vadd.f32 %v488, %v648
    %v681 = vadd.f32 %v489, %v649
    %v682 = vadd.f32 %v490, %v650
    %v683 = vadd.f32 %v491, %v651
    %v684 = vadd.f32 %v492, %v652
    %v685 = vadd.f32 %v493, %v653
    %v686 = vadd.f32 %v494, %v654
    %v687 = vadd.f32 %v495, %v655
    %v688 = vadd.f32 %v496, %v656
    %v689 = vadd.f32 %v497, %v657
    %v690 = vadd.f32 %v498, %v658
    %v691 = vadd.f32 %v499, %v659
    %v692 = vadd.f32 %v500, %v660
    %v693 = vadd.f32 %v501, %v661
    %v694 = vadd.f32 %v502, %v662
    %v695 = vadd.f32 %v503, %v663
    %v696 = vadd.f32 %v504, %v664
    %v697 = vadd.f32 %v505, %v665
    %v698 = vadd.f32 %v506, %v666
    %v699 = vadd.f32 %v507, %v667
    %v700 = vadd.f32 %v508, %v668
    %v701 = vadd.f32 %v509, %v669
    %v702 = vadd.f32 %v510, %v670
    %v703 = vadd.f32 %v511, %v671
    %v704 = vadd.f32 %v512, %v672
    %v705 = vadd.f32 %v513, %v673
    %v706 = vadd.f32 %v514, %v674
    %v707 = vmul.f32 %v67, %v675
    %v708 = vmul.f32 %v68, %v676
    %v709 = vmul.f32 %v69, %v677
    %v710 = vmul.f32 %v70, %v678
    %v711 = vmul.f32 %v71, %v679
    %v712 = vmul.f32 %v72, %v680
    %v713 = vmul.f32 %v73, %v681
    %v714 = vmul.f32 %v74, %v682
    %v715 = vmul.f32 %v75, %v683
    %v716 = vmul.f32 %v76, %v684
    %v717 = vmul.f32 %v77, %v685
    %v718 = vmul.f32 %v78, %v686
    %v719 = vmul.f32 %v79, %v687
    %v720 = vmul.f32 %v80, %v688
    %v721 = vmul.f32 %v81, %v689
    %v722 = vmul.f32 %v82, %v690
    %v723 = vmul.f32 %v83, %v691
    %v724 = vmul.f32 %v84, %v692
    %v725 = vmul.f32 %v85, %v693
    %v726 = vmul.f32 %v86, %v694
    %v727 = vmul.f32 %v87, %v695
    %v728 = vmul.f32 %v88, %v696
    %v729 = vmul.f32 %v89, %v697
    %v730 = vmul.f32 %v90, %v698
    %v731 = vmul.f32 %v91, %v699
    %v732 = vmul.f32 %v92, %v700
    %v733 = vmul.f32 %v93, %v701
    %v734 = vmul.f32 %v94, %v702
    %v735 = vmul.f32 %v95, %v703
    %v736 = vmul.f32 %v96, %v704
    %v737 = vmul.f32 %v97, %v705
    %v738 = vmul.f32 %v98, %v706
    %v739 = vpack.c.bf16 %v707, %v707
    %v740 = vpack.c.bf16 %v708, %v708
    %v741 = vpack.c.bf16 %v709, %v709
    %v742 = vpack.c.bf16 %v710, %v710
    %v743 = vpack.c.bf16 %v711, %v711
    %v744 = vpack.c.bf16 %v712, %v712
    %v745 = vpack.c.bf16 %v713, %v713
    %v746 = vpack.c.bf16 %v714, %v714
    %v747 = vpack.c.bf16 %v715, %v715
    %v748 = vpack.c.bf16 %v716, %v716
    %v749 = vpack.c.bf16 %v717, %v717
    %v750 = vpack.c.bf16 %v718, %v718
    %v751 = vpack.c.bf16 %v719, %v719
    %v752 = vpack.c.bf16 %v720, %v720
    %v753 = vpack.c.bf16 %v721, %v721
    %v754 = vpack.c.bf16 %v722, %v722
    %v755 = vpack.c.bf16 %v723, %v723
    %v756 = vpack.c.bf16 %v724, %v724
    %v757 = vpack.c.bf16 %v725, %v725
    %v758 = vpack.c.bf16 %v726, %v726
    %v759 = vpack.c.bf16 %v727, %v727
    %v760 = vpack.c.bf16 %v728, %v728
    %v761 = vpack.c.bf16 %v729, %v729
    %v762 = vpack.c.bf16 %v730, %v730
    %v763 = vpack.c.bf16 %v731, %v731
    %v764 = vpack.c.bf16 %v732, %v732
    %v765 = vpack.c.bf16 %v733, %v733
    %v766 = vpack.c.bf16 %v734, %v734
    %v767 = vpack.c.bf16 %v735, %v735
    %v768 = vpack.c.bf16 %v736, %v736
    %v769 = vpack.c.bf16 %v737, %v737
    %v770 = vpack.c.bf16 %v738, %v738
    %v803 = vunpack.c.l.b16 %v739
    %v804 = vunpack.c.l.b16 %v740
    %v805 = vunpack.c.l.b16 %v741
    %v806 = vunpack.c.l.b16 %v742
    %v807 = vunpack.c.l.b16 %v743
    %v808 = vunpack.c.l.b16 %v744
    %v809 = vunpack.c.l.b16 %v745
    %v810 = vunpack.c.l.b16 %v746
    %v811 = vunpack.c.l.b16 %v747
    %v812 = vunpack.c.l.b16 %v748
    %v813 = vunpack.c.l.b16 %v749
    %v814 = vunpack.c.l.b16 %v750
    %v815 = vunpack.c.l.b16 %v751
    %v816 = vunpack.c.l.b16 %v752
    %v817 = vunpack.c.l.b16 %v753
    %v818 = vunpack.c.l.b16 %v754
    %v819 = vunpack.c.l.b16 %v755
    %v820 = vunpack.c.l.b16 %v756
    %v821 = vunpack.c.l.b16 %v757
    %v822 = vunpack.c.l.b16 %v758
    %v823 = vunpack.c.l.b16 %v759
    %v824 = vunpack.c.l.b16 %v760
    %v825 = vunpack.c.l.b16 %v761
    %v826 = vunpack.c.l.b16 %v762
    %v827 = vunpack.c.l.b16 %v763
    %v828 = vunpack.c.l.b16 %v764
    %v829 = vunpack.c.l.b16 %v765
    %v830 = vunpack.c.l.b16 %v766
    %v831 = vunpack.c.l.b16 %v767
    %v832 = vunpack.c.l.b16 %v768
    %v833 = vunpack.c.l.b16 %v769
    %v834 = vunpack.c.l.b16 %v770
    %v835 = vrot.slane %v804, 7
    %vm836 = vcmask 1041409
    %v837 = vsel %vm836, %v835, %v803
    %v838 = vrot.slane %v805, 6
    %vm839 = vcmask 1042434
    %v840 = vsel %vm839, %v838, %v837
    %v841 = vrot.slane %v806, 5
    %vm842 = vcmask 1043459
    %v843 = vsel %vm842, %v841, %v840
    %v844 = vrot.slane %v807, 4
    %vm845 = vcmask 1044484
    %v846 = vsel %vm845, %v844, %v843
    %v847 = vrot.slane %v808, 3
    %vm848 = vcmask 1045509
    %v849 = vsel %vm848, %v847, %v846
    %v850 = vrot.slane %v809, 2
    %vm851 = vcmask 1046534
    %v852 = vsel %vm851, %v850, %v849
    %v853 = vrot.slane %v810, 1
    %vm854 = vcmask 1047559
    %v855 = vsel %vm854, %v853, %v852
    %v856 = vrot.slane %v812, 7
    %v857 = vsel %vm836, %v856, %v811
    %v858 = vrot.slane %v813, 6
    %v859 = vsel %vm839, %v858, %v857
    %v860 = vrot.slane %v814, 5
    %v861 = vsel %vm842, %v860, %v859
    %v862 = vrot.slane %v815, 4
    %v863 = vsel %vm845, %v862, %v861
    %v864 = vrot.slane %v816, 3
    %v865 = vsel %vm848, %v864, %v863
    %v866 = vrot.slane %v817, 2
    %v867 = vsel %vm851, %v866, %v865
    %v868 = vrot.slane %v818, 1
    %v869 = vsel %vm854, %v868, %v867
    %v870 = vrot.slane %v820, 7
    %v871 = vsel %vm836, %v870, %v819
    %v872 = vrot.slane %v821, 6
    %v873 = vsel %vm839, %v872, %v871
    %v874 = vrot.slane %v822, 5
    %v875 = vsel %vm842, %v874, %v873
    %v876 = vrot.slane %v823, 4
    %v877 = vsel %vm845, %v876, %v875
    %v878 = vrot.slane %v824, 3
    %v879 = vsel %vm848, %v878, %v877
    %v880 = vrot.slane %v825, 2
    %v881 = vsel %vm851, %v880, %v879
    %v882 = vrot.slane %v826, 1
    %v883 = vsel %vm854, %v882, %v881
    %v884 = vrot.slane %v828, 7
    %v885 = vsel %vm836, %v884, %v827
    %v886 = vrot.slane %v829, 6
    %v887 = vsel %vm839, %v886, %v885
    %v888 = vrot.slane %v830, 5
    %v889 = vsel %vm842, %v888, %v887
    %v890 = vrot.slane %v831, 4
    %v891 = vsel %vm845, %v890, %v889
    %v892 = vrot.slane %v832, 3
    %v893 = vsel %vm848, %v892, %v891
    %v894 = vrot.slane %v833, 2
    %v895 = vsel %vm851, %v894, %v893
    %v896 = vrot.slane %v834, 1
    %v897 = vsel %vm854, %v896, %v895
    %v898 = vpack.c.b16 %v869, %v855
    %v899 = vpack.c.b16 %v897, %v883
    %vm900 = vcmask 72704
    %v902 = vsel %vm900, %v898, 0
    %v905 = vsel %vm900, %v899, 0
    %vm907 = vcmask 1043456
    %vm908 = vcmask 1044480
    %v909 = vsel %vm907, 4294967295, 65535
    %v910 = vsel %vm908, %v909, 0
    %v912 = vand.u32 %v34, %v910
    %914 = vmatprep.subr.bf16.mxu0 0
    %915 = vmatpush1.bf16.msra.mxu0 %v912
    %916 = vmatprep.subr.bf16.mxu0 0
    %917 = vmatpush1.bf16.msra.mxu0 0
    %918 = vmatprep.subr.bf16.mxu0 0
    %919 = vmatpush1.bf16.msra.mxu0 0
    %920 = vmatprep.subr.bf16.mxu0 0
    %921 = vmatpush1.bf16.msra.mxu0 0
    %922 = vmatprep.subr.bf16.mxu0 0
    %923 = vmatpush1.bf16.msra.mxu0 0
    %924 = vmatprep.subr.bf16.mxu0 0
    %925 = vmatpush1.bf16.msra.mxu0 0
    %926 = vmatprep.subr.bf16.mxu0 0
    %927 = vmatpush1.bf16.msra.mxu0 0
    %928 = vmatprep.subr.bf16.mxu0 0
    %929 = vmatpush1.bf16.msra.mxu0 0
    %930 = vmatprep.subr.bf16.mxu0 0
    %931 = vmatpush1.bf16.msra.mxu0 0
    %932 = vmatprep.subr.bf16.mxu0 0
    %933 = vmatpush1.bf16.msra.mxu0 0
    %934 = vmatprep.subr.bf16.mxu0 0
    %935 = vmatpush1.bf16.msra.mxu0 0
    %936 = vmatprep.subr.bf16.mxu0 0
    %937 = vmatpush1.bf16.msra.mxu0 0
    %938 = vmatprep.subr.bf16.mxu0 0
    %939 = vmatpush1.bf16.msra.mxu0 0
    %940 = vmatprep.subr.bf16.mxu0 0
    %941 = vmatpush1.bf16.msra.mxu0 0
    %942 = vmatprep.subr.bf16.mxu0 0
    %943 = vmatpush1.bf16.msra.mxu0 0
    %944 = vmatprep.subr.bf16.mxu0 0
    %945 = vmatpush1.bf16.msra.mxu0 0
    %946 = vmatprep.mubr.bf16.mxu0 0
    %947 = vmatmul.mubr.bf16.gmra.mrb[0].mxu0 %v902
    %v948 = vpop.f32.mrb[0].mxu0
    %v949 = vadd.f32 0.0, %v948
    %v950 = vpop.f32.mrb[0].mxu0
    %v951 = vpop.f32.mrb[0].mxu0
    %v952 = vadd.f32 0.0, %v951
    %v953 = vpop.f32.mrb[0].mxu0
    %954 = vmatprep.mubr.bf16.mxu0 0
    %955 = vmatmul.mubr.bf16.gmra.mrb[0].mxu0 %v905
    %v956 = vpop.f32.mrb[0].mxu0
    %v957 = vadd.f32 0.0, %v956
    %v958 = vpop.f32.mrb[0].mxu0
    %v959 = vpop.f32.mrb[0].mxu0
    %v960 = vadd.f32 0.0, %v959
    %v961 = vpop.f32.mrb[0].mxu0
    %962 = vdwg.mxu0
    %v963 = vld [vmem:[%s1 + $0x1] sm:$0x1]
    %v964 = vld [vmem:[%s1 + $0x9] sm:$0x1]
    %v965 = vld [vmem:[%s1 + $0x11] sm:$0x1]
    %v966 = vld [vmem:[%s1 + $0x19] sm:$0x1]
    %v967 = vld [vmem:[%s1 + $0x21] sm:$0x1]
    %v968 = vld [vmem:[%s1 + $0x29] sm:$0x1]
    %v969 = vld [vmem:[%s1 + $0x31] sm:$0x1]
    %v970 = vld [vmem:[%s1 + $0x39] sm:$0x1]
    %v971 = vld [vmem:[%s1 + $0x41] sm:$0x1]
    %v972 = vld [vmem:[%s1 + $0x49] sm:$0x1]
    %v973 = vld [vmem:[%s1 + $0x51] sm:$0x1]
    %v974 = vld [vmem:[%s1 + $0x59] sm:$0x1]
    %v975 = vld [vmem:[%s1 + $0x61] sm:$0x1]
    %v976 = vld [vmem:[%s1 + $0x69] sm:$0x1]
    %v977 = vld [vmem:[%s1 + $0x71] sm:$0x1]
    %v978 = vld [vmem:[%s1 + $0x79] sm:$0x1]
    %v979 = vld [vmem:[%s1 + $0x81] sm:$0x1]
    %v980 = vld [vmem:[%s1 + $0x89] sm:$0x1]
    %v981 = vld [vmem:[%s1 + $0x91] sm:$0x1]
    %v982 = vld [vmem:[%s1 + $0x99] sm:$0x1]
    %v983 = vld [vmem:[%s1 + $0xa1] sm:$0x1]
    %v984 = vld [vmem:[%s1 + $0xa9] sm:$0x1]
    %v985 = vld [vmem:[%s1 + $0xb1] sm:$0x1]
    %v986 = vld [vmem:[%s1 + $0xb9] sm:$0x1]
    %v987 = vld [vmem:[%s1 + $0xc1] sm:$0x1]
    %v988 = vld [vmem:[%s1 + $0xc9] sm:$0x1]
    %v989 = vld [vmem:[%s1 + $0xd1] sm:$0x1]
    %v990 = vld [vmem:[%s1 + $0xd9] sm:$0x1]
    %v991 = vld [vmem:[%s1 + $0xe1] sm:$0x1]
    %v992 = vld [vmem:[%s1 + $0xe9] sm:$0x1]
    %v993 = vld [vmem:[%s1 + $0xf1] sm:$0x1]
    %v994 = vld [vmem:[%s1 + $0xf9] sm:$0x1]
    %996 = vset.pattern.permute.xlu0 0
    %997 = vperm.xlu0 %996, %v963
    %v998 = vpop.permute.xlu0 %997
    %1001 = vset.pattern.permute.xlu0 0
    %1002 = vperm.xlu0 %1001, %v964
    %v1003 = vpop.permute.xlu0 %1002
    %1006 = vset.pattern.permute.xlu0 0
    %1007 = vperm.xlu0 %1006, %v965
    %v1008 = vpop.permute.xlu0 %1007
    %1011 = vset.pattern.permute.xlu0 0
    %1012 = vperm.xlu0 %1011, %v966
    %v1013 = vpop.permute.xlu0 %1012
    %1016 = vset.pattern.permute.xlu0 0
    %1017 = vperm.xlu0 %1016, %v967
    %v1018 = vpop.permute.xlu0 %1017
    %1021 = vset.pattern.permute.xlu0 0
    %1022 = vperm.xlu0 %1021, %v968
    %v1023 = vpop.permute.xlu0 %1022
    %1026 = vset.pattern.permute.xlu0 0
    %1027 = vperm.xlu0 %1026, %v969
    %v1028 = vpop.permute.xlu0 %1027
    %1031 = vset.pattern.permute.xlu0 0
    %1032 = vperm.xlu0 %1031, %v970
    %v1033 = vpop.permute.xlu0 %1032
    %1036 = vset.pattern.permute.xlu0 0
    %1037 = vperm.xlu0 %1036, %v971
    %v1038 = vpop.permute.xlu0 %1037
    %1041 = vset.pattern.permute.xlu0 0
    %1042 = vperm.xlu0 %1041, %v972
    %v1043 = vpop.permute.xlu0 %1042
    %1046 = vset.pattern.permute.xlu0 0
    %1047 = vperm.xlu0 %1046, %v973
    %v1048 = vpop.permute.xlu0 %1047
    %1051 = vset.pattern.permute.xlu0 0
    %1052 = vperm.xlu0 %1051, %v974
    %v1053 = vpop.permute.xlu0 %1052
    %1056 = vset.pattern.permute.xlu0 0
    %1057 = vperm.xlu0 %1056, %v975
    %v1058 = vpop.permute.xlu0 %1057
    %1061 = vset.pattern.permute.xlu0 0
    %1062 = vperm.xlu0 %1061, %v976
    %v1063 = vpop.permute.xlu0 %1062
    %1066 = vset.pattern.permute.xlu0 0
    %1067 = vperm.xlu0 %1066, %v977
    %v1068 = vpop.permute.xlu0 %1067
    %1071 = vset.pattern.permute.xlu0 0
    %1072 = vperm.xlu0 %1071, %v978
    %v1073 = vpop.permute.xlu0 %1072
    %1076 = vset.pattern.permute.xlu0 0
    %1077 = vperm.xlu0 %1076, %v979
    %v1078 = vpop.permute.xlu0 %1077
    %1081 = vset.pattern.permute.xlu0 0
    %1082 = vperm.xlu0 %1081, %v980
    %v1083 = vpop.permute.xlu0 %1082
    %1086 = vset.pattern.permute.xlu0 0
    %1087 = vperm.xlu0 %1086, %v981
    %v1088 = vpop.permute.xlu0 %1087
    %1091 = vset.pattern.permute.xlu0 0
    %1092 = vperm.xlu0 %1091, %v982
    %v1093 = vpop.permute.xlu0 %1092
    %1096 = vset.pattern.permute.xlu0 0
    %1097 = vperm.xlu0 %1096, %v983
    %v1098 = vpop.permute.xlu0 %1097
    %1101 = vset.pattern.permute.xlu0 0
    %1102 = vperm.xlu0 %1101, %v984
    %v1103 = vpop.permute.xlu0 %1102
    %1106 = vset.pattern.permute.xlu0 0
    %1107 = vperm.xlu0 %1106, %v985
    %v1108 = vpop.permute.xlu0 %1107
    %1111 = vset.pattern.permute.xlu0 0
    %1112 = vperm.xlu0 %1111, %v986
    %v1113 = vpop.permute.xlu0 %1112
    %1116 = vset.pattern.permute.xlu0 0
    %1117 = vperm.xlu0 %1116, %v987
    %v1118 = vpop.permute.xlu0 %1117
    %1121 = vset.pattern.permute.xlu0 0
    %1122 = vperm.xlu0 %1121, %v988
    %v1123 = vpop.permute.xlu0 %1122
    %1126 = vset.pattern.permute.xlu0 0
    %1127 = vperm.xlu0 %1126, %v989
    %v1128 = vpop.permute.xlu0 %1127
    %1131 = vset.pattern.permute.xlu0 0
    %1132 = vperm.xlu0 %1131, %v990
    %v1133 = vpop.permute.xlu0 %1132
    %1136 = vset.pattern.permute.xlu0 0
    %1137 = vperm.xlu0 %1136, %v991
    %v1138 = vpop.permute.xlu0 %1137
    %1141 = vset.pattern.permute.xlu0 0
    %1142 = vperm.xlu0 %1141, %v992
    %v1143 = vpop.permute.xlu0 %1142
    %1146 = vset.pattern.permute.xlu0 0
    %1147 = vperm.xlu0 %1146, %v993
    %v1148 = vpop.permute.xlu0 %1147
    %1151 = vset.pattern.permute.xlu0 0
    %1152 = vperm.xlu0 %1151, %v994
    %v1153 = vpop.permute.xlu0 %1152
    %v1155 = vmul.f32 %v998, %v23
    %v1156 = vmul.f32 %v1003, %v23
    %v1157 = vmul.f32 %v1008, %v23
    %v1158 = vmul.f32 %v1013, %v23
    %v1159 = vmul.f32 %v1018, %v23
    %v1160 = vmul.f32 %v1023, %v23
    %v1161 = vmul.f32 %v1028, %v23
    %v1162 = vmul.f32 %v1033, %v23
    %v1163 = vmul.f32 %v1038, %v23
    %v1164 = vmul.f32 %v1043, %v23
    %v1165 = vmul.f32 %v1048, %v23
    %v1166 = vmul.f32 %v1053, %v23
    %v1167 = vmul.f32 %v1058, %v23
    %v1168 = vmul.f32 %v1063, %v23
    %v1169 = vmul.f32 %v1068, %v23
    %v1170 = vmul.f32 %v1073, %v23
    %v1171 = vmul.f32 %v1078, %v23
    %v1172 = vmul.f32 %v1083, %v23
    %v1173 = vmul.f32 %v1088, %v23
    %v1174 = vmul.f32 %v1093, %v23
    %v1175 = vmul.f32 %v1098, %v23
    %v1176 = vmul.f32 %v1103, %v23
    %v1177 = vmul.f32 %v1108, %v23
    %v1178 = vmul.f32 %v1113, %v23
    %v1179 = vmul.f32 %v1118, %v23
    %v1180 = vmul.f32 %v1123, %v23
    %v1181 = vmul.f32 %v1128, %v23
    %v1182 = vmul.f32 %v1133, %v23
    %v1183 = vmul.f32 %v1138, %v23
    %v1184 = vmul.f32 %v1143, %v23
    %v1185 = vmul.f32 %v1148, %v23
    %v1186 = vmul.f32 %v1153, %v23
    %1187 = vset.pattern.permute.xlu0 1
    %1188 = vperm.xlu0 %1187, %v963
    %v1189 = vpop.permute.xlu0 %1188
    %1191 = vset.pattern.permute.xlu0 1
    %1192 = vperm.xlu0 %1191, %v964
    %v1193 = vpop.permute.xlu0 %1192
    %1195 = vset.pattern.permute.xlu0 1
    %1196 = vperm.xlu0 %1195, %v965
    %v1197 = vpop.permute.xlu0 %1196
    %1199 = vset.pattern.permute.xlu0 1
    %1200 = vperm.xlu0 %1199, %v966
    %v1201 = vpop.permute.xlu0 %1200
    %1203 = vset.pattern.permute.xlu0 1
    %1204 = vperm.xlu0 %1203, %v967
    %v1205 = vpop.permute.xlu0 %1204
    %1207 = vset.pattern.permute.xlu0 1
    %1208 = vperm.xlu0 %1207, %v968
    %v1209 = vpop.permute.xlu0 %1208
    %1211 = vset.pattern.permute.xlu0 1
    %1212 = vperm.xlu0 %1211, %v969
    %v1213 = vpop.permute.xlu0 %1212
    %1215 = vset.pattern.permute.xlu0 1
    %1216 = vperm.xlu0 %1215, %v970
    %v1217 = vpop.permute.xlu0 %1216
    %1219 = vset.pattern.permute.xlu0 1
    %1220 = vperm.xlu0 %1219, %v971
    %v1221 = vpop.permute.xlu0 %1220
    %1223 = vset.pattern.permute.xlu0 1
    %1224 = vperm.xlu0 %1223, %v972
    %v1225 = vpop.permute.xlu0 %1224
    %1227 = vset.pattern.permute.xlu0 1
    %1228 = vperm.xlu0 %1227, %v973
    %v1229 = vpop.permute.xlu0 %1228
    %1231 = vset.pattern.permute.xlu0 1
    %1232 = vperm.xlu0 %1231, %v974
    %v1233 = vpop.permute.xlu0 %1232
    %1235 = vset.pattern.permute.xlu0 1
    %1236 = vperm.xlu0 %1235, %v975
    %v1237 = vpop.permute.xlu0 %1236
    %1239 = vset.pattern.permute.xlu0 1
    %1240 = vperm.xlu0 %1239, %v976
    %v1241 = vpop.permute.xlu0 %1240
    %1243 = vset.pattern.permute.xlu0 1
    %1244 = vperm.xlu0 %1243, %v977
    %v1245 = vpop.permute.xlu0 %1244
    %1247 = vset.pattern.permute.xlu0 1
    %1248 = vperm.xlu0 %1247, %v978
    %v1249 = vpop.permute.xlu0 %1248
    %1251 = vset.pattern.permute.xlu0 1
    %1252 = vperm.xlu0 %1251, %v979
    %v1253 = vpop.permute.xlu0 %1252
    %1255 = vset.pattern.permute.xlu0 1
    %1256 = vperm.xlu0 %1255, %v980
    %v1257 = vpop.permute.xlu0 %1256
    %1259 = vset.pattern.permute.xlu0 1
    %1260 = vperm.xlu0 %1259, %v981
    %v1261 = vpop.permute.xlu0 %1260
    %1263 = vset.pattern.permute.xlu0 1
    %1264 = vperm.xlu0 %1263, %v982
    %v1265 = vpop.permute.xlu0 %1264
    %1267 = vset.pattern.permute.xlu0 1
    %1268 = vperm.xlu0 %1267, %v983
    %v1269 = vpop.permute.xlu0 %1268
    %1271 = vset.pattern.permute.xlu0 1
    %1272 = vperm.xlu0 %1271, %v984
    %v1273 = vpop.permute.xlu0 %1272
    %1275 = vset.pattern.permute.xlu0 1
    %1276 = vperm.xlu0 %1275, %v985
    %v1277 = vpop.permute.xlu0 %1276
    %1279 = vset.pattern.permute.xlu0 1
    %1280 = vperm.xlu0 %1279, %v986
    %v1281 = vpop.permute.xlu0 %1280
    %1283 = vset.pattern.permute.xlu0 1
    %1284 = vperm.xlu0 %1283, %v987
    %v1285 = vpop.permute.xlu0 %1284
    %1287 = vset.pattern.permute.xlu0 1
    %1288 = vperm.xlu0 %1287, %v988
    %v1289 = vpop.permute.xlu0 %1288
    %1291 = vset.pattern.permute.xlu0 1
    %1292 = vperm.xlu0 %1291, %v989
    %v1293 = vpop.permute.xlu0 %1292
    %1295 = vset.pattern.permute.xlu0 1
    %1296 = vperm.xlu0 %1295, %v990
    %v1297 = vpop.permute.xlu0 %1296
    %1299 = vset.pattern.permute.xlu0 1
    %1300 = vperm.xlu0 %1299, %v991
    %v1301 = vpop.permute.xlu0 %1300
    %1303 = vset.pattern.permute.xlu0 1
    %1304 = vperm.xlu0 %1303, %v992
    %v1305 = vpop.permute.xlu0 %1304
    %1307 = vset.pattern.permute.xlu0 1
    %1308 = vperm.xlu0 %1307, %v993
    %v1309 = vpop.permute.xlu0 %1308
    %1311 = vset.pattern.permute.xlu0 1
    %1312 = vperm.xlu0 %1311, %v994
    %v1313 = vpop.permute.xlu0 %1312
    %v1315 = vmul.f32 %v1189, %v28
    %v1316 = vmul.f32 %v1193, %v28
    %v1317 = vmul.f32 %v1197, %v28
    %v1318 = vmul.f32 %v1201, %v28
    %v1319 = vmul.f32 %v1205, %v28
    %v1320 = vmul.f32 %v1209, %v28
    %v1321 = vmul.f32 %v1213, %v28
    %v1322 = vmul.f32 %v1217, %v28
    %v1323 = vmul.f32 %v1221, %v28
    %v1324 = vmul.f32 %v1225, %v28
    %v1325 = vmul.f32 %v1229, %v28
    %v1326 = vmul.f32 %v1233, %v28
    %v1327 = vmul.f32 %v1237, %v28
    %v1328 = vmul.f32 %v1241, %v28
    %v1329 = vmul.f32 %v1245, %v28
    %v1330 = vmul.f32 %v1249, %v28
    %v1331 = vmul.f32 %v1253, %v28
    %v1332 = vmul.f32 %v1257, %v28
    %v1333 = vmul.f32 %v1261, %v28
    %v1334 = vmul.f32 %v1265, %v28
    %v1335 = vmul.f32 %v1269, %v28
    %v1336 = vmul.f32 %v1273, %v28
    %v1337 = vmul.f32 %v1277, %v28
    %v1338 = vmul.f32 %v1281, %v28
    %v1339 = vmul.f32 %v1285, %v28
    %v1340 = vmul.f32 %v1289, %v28
    %v1341 = vmul.f32 %v1293, %v28
    %v1342 = vmul.f32 %v1297, %v28
    %v1343 = vmul.f32 %v1301, %v28
    %v1344 = vmul.f32 %v1305, %v28
    %v1345 = vmul.f32 %v1309, %v28
    %v1346 = vmul.f32 %v1313, %v28
    %v1347 = vadd.f32 %v1155, %v1315
    %v1348 = vadd.f32 %v1156, %v1316
    %v1349 = vadd.f32 %v1157, %v1317
    %v1350 = vadd.f32 %v1158, %v1318
    %v1351 = vadd.f32 %v1159, %v1319
    %v1352 = vadd.f32 %v1160, %v1320
    %v1353 = vadd.f32 %v1161, %v1321
    %v1354 = vadd.f32 %v1162, %v1322
    %v1355 = vadd.f32 %v1163, %v1323
    %v1356 = vadd.f32 %v1164, %v1324
    %v1357 = vadd.f32 %v1165, %v1325
    %v1358 = vadd.f32 %v1166, %v1326
    %v1359 = vadd.f32 %v1167, %v1327
    %v1360 = vadd.f32 %v1168, %v1328
    %v1361 = vadd.f32 %v1169, %v1329
    %v1362 = vadd.f32 %v1170, %v1330
    %v1363 = vadd.f32 %v1171, %v1331
    %v1364 = vadd.f32 %v1172, %v1332
    %v1365 = vadd.f32 %v1173, %v1333
    %v1366 = vadd.f32 %v1174, %v1334
    %v1367 = vadd.f32 %v1175, %v1335
    %v1368 = vadd.f32 %v1176, %v1336
    %v1369 = vadd.f32 %v1177, %v1337
    %v1370 = vadd.f32 %v1178, %v1338
    %v1371 = vadd.f32 %v1179, %v1339
    %v1372 = vadd.f32 %v1180, %v1340
    %v1373 = vadd.f32 %v1181, %v1341
    %v1374 = vadd.f32 %v1182, %v1342
    %v1375 = vadd.f32 %v1183, %v1343
    %v1376 = vadd.f32 %v1184, %v1344
    %v1377 = vadd.f32 %v1185, %v1345
    %v1378 = vadd.f32 %v1186, %v1346
    %1379 = vset.pattern.permute.xlu0 2
    %1380 = vperm.xlu0 %1379, %v963
    %v1381 = vpop.permute.xlu0 %1380
    %1383 = vset.pattern.permute.xlu0 2
    %1384 = vperm.xlu0 %1383, %v964
    %v1385 = vpop.permute.xlu0 %1384
    %1387 = vset.pattern.permute.xlu0 2
    %1388 = vperm.xlu0 %1387, %v965
    %v1389 = vpop.permute.xlu0 %1388
    %1391 = vset.pattern.permute.xlu0 2
    %1392 = vperm.xlu0 %1391, %v966
    %v1393 = vpop.permute.xlu0 %1392
    %1395 = vset.pattern.permute.xlu0 2
    %1396 = vperm.xlu0 %1395, %v967
    %v1397 = vpop.permute.xlu0 %1396
    %1399 = vset.pattern.permute.xlu0 2
    %1400 = vperm.xlu0 %1399, %v968
    %v1401 = vpop.permute.xlu0 %1400
    %1403 = vset.pattern.permute.xlu0 2
    %1404 = vperm.xlu0 %1403, %v969
    %v1405 = vpop.permute.xlu0 %1404
    %1407 = vset.pattern.permute.xlu0 2
    %1408 = vperm.xlu0 %1407, %v970
    %v1409 = vpop.permute.xlu0 %1408
    %1411 = vset.pattern.permute.xlu0 2
    %1412 = vperm.xlu0 %1411, %v971
    %v1413 = vpop.permute.xlu0 %1412
    %1415 = vset.pattern.permute.xlu0 2
    %1416 = vperm.xlu0 %1415, %v972
    %v1417 = vpop.permute.xlu0 %1416
    %1419 = vset.pattern.permute.xlu0 2
    %1420 = vperm.xlu0 %1419, %v973
    %v1421 = vpop.permute.xlu0 %1420
    %1423 = vset.pattern.permute.xlu0 2
    %1424 = vperm.xlu0 %1423, %v974
    %v1425 = vpop.permute.xlu0 %1424
    %1427 = vset.pattern.permute.xlu0 2
    %1428 = vperm.xlu0 %1427, %v975
    %v1429 = vpop.permute.xlu0 %1428
    %1431 = vset.pattern.permute.xlu0 2
    %1432 = vperm.xlu0 %1431, %v976
    %v1433 = vpop.permute.xlu0 %1432
    %1435 = vset.pattern.permute.xlu0 2
    %1436 = vperm.xlu0 %1435, %v977
    %v1437 = vpop.permute.xlu0 %1436
    %1439 = vset.pattern.permute.xlu0 2
    %1440 = vperm.xlu0 %1439, %v978
    %v1441 = vpop.permute.xlu0 %1440
    %1443 = vset.pattern.permute.xlu0 2
    %1444 = vperm.xlu0 %1443, %v979
    %v1445 = vpop.permute.xlu0 %1444
    %1447 = vset.pattern.permute.xlu0 2
    %1448 = vperm.xlu0 %1447, %v980
    %v1449 = vpop.permute.xlu0 %1448
    %1451 = vset.pattern.permute.xlu0 2
    %1452 = vperm.xlu0 %1451, %v981
    %v1453 = vpop.permute.xlu0 %1452
    %1455 = vset.pattern.permute.xlu0 2
    %1456 = vperm.xlu0 %1455, %v982
    %v1457 = vpop.permute.xlu0 %1456
    %1459 = vset.pattern.permute.xlu0 2
    %1460 = vperm.xlu0 %1459, %v983
    %v1461 = vpop.permute.xlu0 %1460
    %1463 = vset.pattern.permute.xlu0 2
    %1464 = vperm.xlu0 %1463, %v984
    %v1465 = vpop.permute.xlu0 %1464
    %1467 = vset.pattern.permute.xlu0 2
    %1468 = vperm.xlu0 %1467, %v985
    %v1469 = vpop.permute.xlu0 %1468
    %1471 = vset.pattern.permute.xlu0 2
    %1472 = vperm.xlu0 %1471, %v986
    %v1473 = vpop.permute.xlu0 %1472
    %1475 = vset.pattern.permute.xlu0 2
    %1476 = vperm.xlu0 %1475, %v987
    %v1477 = vpop.permute.xlu0 %1476
    %1479 = vset.pattern.permute.xlu0 2
    %1480 = vperm.xlu0 %1479, %v988
    %v1481 = vpop.permute.xlu0 %1480
    %1483 = vset.pattern.permute.xlu0 2
    %1484 = vperm.xlu0 %1483, %v989
    %v1485 = vpop.permute.xlu0 %1484
    %1487 = vset.pattern.permute.xlu0 2
    %1488 = vperm.xlu0 %1487, %v990
    %v1489 = vpop.permute.xlu0 %1488
    %1491 = vset.pattern.permute.xlu0 2
    %1492 = vperm.xlu0 %1491, %v991
    %v1493 = vpop.permute.xlu0 %1492
    %1495 = vset.pattern.permute.xlu0 2
    %1496 = vperm.xlu0 %1495, %v992
    %v1497 = vpop.permute.xlu0 %1496
    %1499 = vset.pattern.permute.xlu0 2
    %1500 = vperm.xlu0 %1499, %v993
    %v1501 = vpop.permute.xlu0 %1500
    %1503 = vset.pattern.permute.xlu0 2
    %1504 = vperm.xlu0 %1503, %v994
    %v1505 = vpop.permute.xlu0 %1504
    %v1507 = vmul.f32 %v1381, %v31
    %v1508 = vmul.f32 %v1385, %v31
    %v1509 = vmul.f32 %v1389, %v31
    %v1510 = vmul.f32 %v1393, %v31
    %v1511 = vmul.f32 %v1397, %v31
    %v1512 = vmul.f32 %v1401, %v31
    %v1513 = vmul.f32 %v1405, %v31
    %v1514 = vmul.f32 %v1409, %v31
    %v1515 = vmul.f32 %v1413, %v31
    %v1516 = vmul.f32 %v1417, %v31
    %v1517 = vmul.f32 %v1421, %v31
    %v1518 = vmul.f32 %v1425, %v31
    %v1519 = vmul.f32 %v1429, %v31
    %v1520 = vmul.f32 %v1433, %v31
    %v1521 = vmul.f32 %v1437, %v31
    %v1522 = vmul.f32 %v1441, %v31
    %v1523 = vmul.f32 %v1445, %v31
    %v1524 = vmul.f32 %v1449, %v31
    %v1525 = vmul.f32 %v1453, %v31
    %v1526 = vmul.f32 %v1457, %v31
    %v1527 = vmul.f32 %v1461, %v31
    %v1528 = vmul.f32 %v1465, %v31
    %v1529 = vmul.f32 %v1469, %v31
    %v1530 = vmul.f32 %v1473, %v31
    %v1531 = vmul.f32 %v1477, %v31
    %v1532 = vmul.f32 %v1481, %v31
    %v1533 = vmul.f32 %v1485, %v31
    %v1534 = vmul.f32 %v1489, %v31
    %v1535 = vmul.f32 %v1493, %v31
    %v1536 = vmul.f32 %v1497, %v31
    %v1537 = vmul.f32 %v1501, %v31
    %v1538 = vmul.f32 %v1505, %v31
    %v1539 = vadd.f32 %v1347, %v1507
    %v1540 = vadd.f32 %v1348, %v1508
    %v1541 = vadd.f32 %v1349, %v1509
    %v1542 = vadd.f32 %v1350, %v1510
    %v1543 = vadd.f32 %v1351, %v1511
    %v1544 = vadd.f32 %v1352, %v1512
    %v1545 = vadd.f32 %v1353, %v1513
    %v1546 = vadd.f32 %v1354, %v1514
    %v1547 = vadd.f32 %v1355, %v1515
    %v1548 = vadd.f32 %v1356, %v1516
    %v1549 = vadd.f32 %v1357, %v1517
    %v1550 = vadd.f32 %v1358, %v1518
    %v1551 = vadd.f32 %v1359, %v1519
    %v1552 = vadd.f32 %v1360, %v1520
    %v1553 = vadd.f32 %v1361, %v1521
    %v1554 = vadd.f32 %v1362, %v1522
    %v1555 = vadd.f32 %v1363, %v1523
    %v1556 = vadd.f32 %v1364, %v1524
    %v1557 = vadd.f32 %v1365, %v1525
    %v1558 = vadd.f32 %v1366, %v1526
    %v1559 = vadd.f32 %v1367, %v1527
    %v1560 = vadd.f32 %v1368, %v1528
    %v1561 = vadd.f32 %v1369, %v1529
    %v1562 = vadd.f32 %v1370, %v1530
    %v1563 = vadd.f32 %v1371, %v1531
    %v1564 = vadd.f32 %v1372, %v1532
    %v1565 = vadd.f32 %v1373, %v1533
    %v1566 = vadd.f32 %v1374, %v1534
    %v1567 = vadd.f32 %v1375, %v1535
    %v1568 = vadd.f32 %v1376, %v1536
    %v1569 = vadd.f32 %v1377, %v1537
    %v1570 = vadd.f32 %v1378, %v1538
    %v1603 = vrot.slane %v1539, 7
    %v1604 = vrot.slane %v1540, 7
    %v1605 = vrot.slane %v1541, 7
    %v1606 = vrot.slane %v1542, 7
    %v1607 = vrot.slane %v1543, 7
    %v1608 = vrot.slane %v1544, 7
    %v1609 = vrot.slane %v1545, 7
    %v1610 = vrot.slane %v1546, 7
    %v1611 = vrot.slane %v1547, 7
    %v1612 = vrot.slane %v1548, 7
    %v1613 = vrot.slane %v1549, 7
    %v1614 = vrot.slane %v1550, 7
    %v1615 = vrot.slane %v1551, 7
    %v1616 = vrot.slane %v1552, 7
    %v1617 = vrot.slane %v1553, 7
    %v1618 = vrot.slane %v1554, 7
    %v1619 = vrot.slane %v1555, 7
    %v1620 = vrot.slane %v1556, 7
    %v1621 = vrot.slane %v1557, 7
    %v1622 = vrot.slane %v1558, 7
    %v1623 = vrot.slane %v1559, 7
    %v1624 = vrot.slane %v1560, 7
    %v1625 = vrot.slane %v1561, 7
    %v1626 = vrot.slane %v1562, 7
    %v1627 = vrot.slane %v1563, 7
    %v1628 = vrot.slane %v1564, 7
    %v1629 = vrot.slane %v1565, 7
    %v1630 = vrot.slane %v1566, 7
    %v1631 = vrot.slane %v1567, 7
    %v1632 = vrot.slane %v1568, 7
    %v1633 = vrot.slane %v1569, 7
    %v1634 = vrot.slane %v1570, 7
    %v1667 = vmul.f32 %v67, %v1603
    %v1668 = vmul.f32 %v68, %v1604
    %v1669 = vmul.f32 %v69, %v1605
    %v1670 = vmul.f32 %v70, %v1606
    %v1671 = vmul.f32 %v71, %v1607
    %v1672 = vmul.f32 %v72, %v1608
    %v1673 = vmul.f32 %v73, %v1609
    %v1674 = vmul.f32 %v74, %v1610
    %v1675 = vmul.f32 %v75, %v1611
    %v1676 = vmul.f32 %v76, %v1612
    %v1677 = vmul.f32 %v77, %v1613
    %v1678 = vmul.f32 %v78, %v1614
    %v1679 = vmul.f32 %v79, %v1615
    %v1680 = vmul.f32 %v80, %v1616
    %v1681 = vmul.f32 %v81, %v1617
    %v1682 = vmul.f32 %v82, %v1618
    %v1683 = vmul.f32 %v83, %v1619
    %v1684 = vmul.f32 %v84, %v1620
    %v1685 = vmul.f32 %v85, %v1621
    %v1686 = vmul.f32 %v86, %v1622
    %v1687 = vmul.f32 %v87, %v1623
    %v1688 = vmul.f32 %v88, %v1624
    %v1689 = vmul.f32 %v89, %v1625
    %v1690 = vmul.f32 %v90, %v1626
    %v1691 = vmul.f32 %v91, %v1627
    %v1692 = vmul.f32 %v92, %v1628
    %v1693 = vmul.f32 %v93, %v1629
    %v1694 = vmul.f32 %v94, %v1630
    %v1695 = vmul.f32 %v95, %v1631
    %v1696 = vmul.f32 %v96, %v1632
    %v1697 = vmul.f32 %v97, %v1633
    %v1698 = vmul.f32 %v98, %v1634
    %v1699 = vpack.c.bf16 %v1667, %v1667
    %v1700 = vpack.c.bf16 %v1668, %v1668
    %v1701 = vpack.c.bf16 %v1669, %v1669
    %v1702 = vpack.c.bf16 %v1670, %v1670
    %v1703 = vpack.c.bf16 %v1671, %v1671
    %v1704 = vpack.c.bf16 %v1672, %v1672
    %v1705 = vpack.c.bf16 %v1673, %v1673
    %v1706 = vpack.c.bf16 %v1674, %v1674
    %v1707 = vpack.c.bf16 %v1675, %v1675
    %v1708 = vpack.c.bf16 %v1676, %v1676
    %v1709 = vpack.c.bf16 %v1677, %v1677
    %v1710 = vpack.c.bf16 %v1678, %v1678
    %v1711 = vpack.c.bf16 %v1679, %v1679
    %v1712 = vpack.c.bf16 %v1680, %v1680
    %v1713 = vpack.c.bf16 %v1681, %v1681
    %v1714 = vpack.c.bf16 %v1682, %v1682
    %v1715 = vpack.c.bf16 %v1683, %v1683
    %v1716 = vpack.c.bf16 %v1684, %v1684
    %v1717 = vpack.c.bf16 %v1685, %v1685
    %v1718 = vpack.c.bf16 %v1686, %v1686
    %v1719 = vpack.c.bf16 %v1687, %v1687
    %v1720 = vpack.c.bf16 %v1688, %v1688
    %v1721 = vpack.c.bf16 %v1689, %v1689
    %v1722 = vpack.c.bf16 %v1690, %v1690
    %v1723 = vpack.c.bf16 %v1691, %v1691
    %v1724 = vpack.c.bf16 %v1692, %v1692
    %v1725 = vpack.c.bf16 %v1693, %v1693
    %v1726 = vpack.c.bf16 %v1694, %v1694
    %v1727 = vpack.c.bf16 %v1695, %v1695
    %v1728 = vpack.c.bf16 %v1696, %v1696
    %v1729 = vpack.c.bf16 %v1697, %v1697
    %v1730 = vpack.c.bf16 %v1698, %v1698
    %v1763 = vunpack.c.l.b16 %v1699
    %v1764 = vunpack.c.l.b16 %v1700
    %v1765 = vunpack.c.l.b16 %v1701
    %v1766 = vunpack.c.l.b16 %v1702
    %v1767 = vunpack.c.l.b16 %v1703
    %v1768 = vunpack.c.l.b16 %v1704
    %v1769 = vunpack.c.l.b16 %v1705
    %v1770 = vunpack.c.l.b16 %v1706
    %v1771 = vunpack.c.l.b16 %v1707
    %v1772 = vunpack.c.l.b16 %v1708
    %v1773 = vunpack.c.l.b16 %v1709
    %v1774 = vunpack.c.l.b16 %v1710
    %v1775 = vunpack.c.l.b16 %v1711
    %v1776 = vunpack.c.l.b16 %v1712
    %v1777 = vunpack.c.l.b16 %v1713
    %v1778 = vunpack.c.l.b16 %v1714
    %v1779 = vunpack.c.l.b16 %v1715
    %v1780 = vunpack.c.l.b16 %v1716
    %v1781 = vunpack.c.l.b16 %v1717
    %v1782 = vunpack.c.l.b16 %v1718
    %v1783 = vunpack.c.l.b16 %v1719
    %v1784 = vunpack.c.l.b16 %v1720
    %v1785 = vunpack.c.l.b16 %v1721
    %v1786 = vunpack.c.l.b16 %v1722
    %v1787 = vunpack.c.l.b16 %v1723
    %v1788 = vunpack.c.l.b16 %v1724
    %v1789 = vunpack.c.l.b16 %v1725
    %v1790 = vunpack.c.l.b16 %v1726
    %v1791 = vunpack.c.l.b16 %v1727
    %v1792 = vunpack.c.l.b16 %v1728
    %v1793 = vunpack.c.l.b16 %v1729
    %v1794 = vunpack.c.l.b16 %v1730
    %v1795 = vrot.slane %v1763, 1
    %v1796 = vsel %vm836, %v1764, %v1795
    %v1797 = vrot.slane %v1765, 7
    %v1798 = vsel %vm839, %v1797, %v1796
    %v1799 = vrot.slane %v1766, 6
    %v1800 = vsel %vm842, %v1799, %v1798
    %v1801 = vrot.slane %v1767, 5
    %v1802 = vsel %vm845, %v1801, %v1800
    %v1803 = vrot.slane %v1768, 4
    %v1804 = vsel %vm848, %v1803, %v1802
    %v1805 = vrot.slane %v1769, 3
    %v1806 = vsel %vm851, %v1805, %v1804
    %v1807 = vrot.slane %v1770, 2
    %v1808 = vsel %vm854, %v1807, %v1806
    %v1809 = vrot.slane %v1771, 1
    %v1810 = vsel %vm836, %v1772, %v1809
    %v1811 = vrot.slane %v1773, 7
    %v1812 = vsel %vm839, %v1811, %v1810
    %v1813 = vrot.slane %v1774, 6
    %v1814 = vsel %vm842, %v1813, %v1812
    %v1815 = vrot.slane %v1775, 5
    %v1816 = vsel %vm845, %v1815, %v1814
    %v1817 = vrot.slane %v1776, 4
    %v1818 = vsel %vm848, %v1817, %v1816
    %v1819 = vrot.slane %v1777, 3
    %v1820 = vsel %vm851, %v1819, %v1818
    %v1821 = vrot.slane %v1778, 2
    %v1822 = vsel %vm854, %v1821, %v1820
    %v1823 = vrot.slane %v1779, 1
    %v1824 = vsel %vm836, %v1780, %v1823
    %v1825 = vrot.slane %v1781, 7
    %v1826 = vsel %vm839, %v1825, %v1824
    %v1827 = vrot.slane %v1782, 6
    %v1828 = vsel %vm842, %v1827, %v1826
    %v1829 = vrot.slane %v1783, 5
    %v1830 = vsel %vm845, %v1829, %v1828
    %v1831 = vrot.slane %v1784, 4
    %v1832 = vsel %vm848, %v1831, %v1830
    %v1833 = vrot.slane %v1785, 3
    %v1834 = vsel %vm851, %v1833, %v1832
    %v1835 = vrot.slane %v1786, 2
    %v1836 = vsel %vm854, %v1835, %v1834
    %v1837 = vrot.slane %v1787, 1
    %v1838 = vsel %vm836, %v1788, %v1837
    %v1839 = vrot.slane %v1789, 7
    %v1840 = vsel %vm839, %v1839, %v1838
    %v1841 = vrot.slane %v1790, 6
    %v1842 = vsel %vm842, %v1841, %v1840
    %v1843 = vrot.slane %v1791, 5
    %v1844 = vsel %vm845, %v1843, %v1842
    %v1845 = vrot.slane %v1792, 4
    %v1846 = vsel %vm848, %v1845, %v1844
    %v1847 = vrot.slane %v1793, 3
    %v1848 = vsel %vm851, %v1847, %v1846
    %v1849 = vrot.slane %v1794, 2
    %v1850 = vsel %vm854, %v1849, %v1848
    %v1851 = vpack.c.b16 %v1822, %v1808
    %v1852 = vpack.c.b16 %v1850, %v1836
    %v1854 = vsel %vm900, %v1851, 0
    %v1857 = vsel %vm900, %v1852, 0
    %1859 = vmatprep.subr.bf16.mxu0 0
    %1860 = vmatpush1.bf16.msra.mxu0 %v912
    %1861 = vmatprep.subr.bf16.mxu0 0
    %1862 = vmatpush1.bf16.msra.mxu0 0
    %1863 = vmatprep.subr.bf16.mxu0 0
    %1864 = vmatpush1.bf16.msra.mxu0 0
    %1865 = vmatprep.subr.bf16.mxu0 0
    %1866 = vmatpush1.bf16.msra.mxu0 0
    %1867 = vmatprep.subr.bf16.mxu0 0
    %1868 = vmatpush1.bf16.msra.mxu0 0
    %1869 = vmatprep.subr.bf16.mxu0 0
    %1870 = vmatpush1.bf16.msra.mxu0 0
    %1871 = vmatprep.subr.bf16.mxu0 0
    %1872 = vmatpush1.bf16.msra.mxu0 0
    %1873 = vmatprep.subr.bf16.mxu0 0
    %1874 = vmatpush1.bf16.msra.mxu0 0
    %1875 = vmatprep.subr.bf16.mxu0 0
    %1876 = vmatpush1.bf16.msra.mxu0 0
    %1877 = vmatprep.subr.bf16.mxu0 0
    %1878 = vmatpush1.bf16.msra.mxu0 0
    %1879 = vmatprep.subr.bf16.mxu0 0
    %1880 = vmatpush1.bf16.msra.mxu0 0
    %1881 = vmatprep.subr.bf16.mxu0 0
    %1882 = vmatpush1.bf16.msra.mxu0 0
    %1883 = vmatprep.subr.bf16.mxu0 0
    %1884 = vmatpush1.bf16.msra.mxu0 0
    %1885 = vmatprep.subr.bf16.mxu0 0
    %1886 = vmatpush1.bf16.msra.mxu0 0
    %1887 = vmatprep.subr.bf16.mxu0 0
    %1888 = vmatpush1.bf16.msra.mxu0 0
    %1889 = vmatprep.subr.bf16.mxu0 0
    %1890 = vmatpush1.bf16.msra.mxu0 0
    %1891 = vmatprep.mubr.bf16.mxu0 0
    %1892 = vmatmul.mubr.bf16.gmra.mrb[0].mxu0 %v1854
    %v1893 = vpop.f32.mrb[0].mxu0
    %v1894 = vadd.f32 0.0, %v1893
    %v1895 = vpop.f32.mrb[0].mxu0
    %v1896 = vpop.f32.mrb[0].mxu0
    %v1897 = vadd.f32 0.0, %v1896
    %v1898 = vpop.f32.mrb[0].mxu0
    %1899 = vmatprep.mubr.bf16.mxu0 0
    %1900 = vmatmul.mubr.bf16.gmra.mrb[0].mxu0 %v1857
    %v1901 = vpop.f32.mrb[0].mxu0
    %v1902 = vadd.f32 0.0, %v1901
    %v1903 = vpop.f32.mrb[0].mxu0
    %v1904 = vpop.f32.mrb[0].mxu0
    %v1905 = vadd.f32 0.0, %v1904
    %v1906 = vpop.f32.mrb[0].mxu0
    %1907 = vdwg.mxu0
    %v1908 = vmax.f32 %v949, %v1894
    %v1909 = vmax.f32 %v952, %v1897
    %v1910 = vmax.f32 %v957, %v1902
    %v1911 = vmax.f32 %v960, %v1905
    %v1912 = vld [vmem:[%s0] sm:$0x2]
    %v1913 = vld [vmem:[%s0 + $0x4] sm:$0x2]
    %v1914 = vld [vmem:[%s0 + $0x8] sm:$0x2]
    %v1915 = vld [vmem:[%s0 + $0xc] sm:$0x2]
    %v1916 = vld [vmem:[%s0 + $0x10] sm:$0x2]
    %v1917 = vld [vmem:[%s0 + $0x14] sm:$0x2]
    %v1918 = vld [vmem:[%s0 + $0x18] sm:$0x2]
    %v1919 = vld [vmem:[%s0 + $0x1c] sm:$0x2]
    %v1920 = vld [vmem:[%s0 + $0x20] sm:$0x2]
    %v1921 = vld [vmem:[%s0 + $0x24] sm:$0x2]
    %v1922 = vld [vmem:[%s0 + $0x28] sm:$0x2]
    %v1923 = vld [vmem:[%s0 + $0x2c] sm:$0x2]
    %v1924 = vld [vmem:[%s0 + $0x30] sm:$0x2]
    %v1925 = vld [vmem:[%s0 + $0x34] sm:$0x2]
    %v1926 = vld [vmem:[%s0 + $0x38] sm:$0x2]
    %v1927 = vld [vmem:[%s0 + $0x3c] sm:$0x2]
    %v1928 = vld [vmem:[%s0 + $0x40] sm:$0x2]
    %v1929 = vld [vmem:[%s0 + $0x44] sm:$0x2]
    %v1930 = vld [vmem:[%s0 + $0x48] sm:$0x2]
    %v1931 = vld [vmem:[%s0 + $0x4c] sm:$0x2]
    %v1932 = vld [vmem:[%s0 + $0x50] sm:$0x2]
    %v1933 = vld [vmem:[%s0 + $0x54] sm:$0x2]
    %v1934 = vld [vmem:[%s0 + $0x58] sm:$0x2]
    %v1935 = vld [vmem:[%s0 + $0x5c] sm:$0x2]
    %v1936 = vld [vmem:[%s0 + $0x60] sm:$0x2]
    %v1937 = vld [vmem:[%s0 + $0x64] sm:$0x2]
    %v1938 = vld [vmem:[%s0 + $0x68] sm:$0x2]
    %v1939 = vld [vmem:[%s0 + $0x6c] sm:$0x2]
    %v1940 = vld [vmem:[%s0 + $0x70] sm:$0x2]
    %v1941 = vld [vmem:[%s0 + $0x74] sm:$0x2]
    %v1942 = vld [vmem:[%s0 + $0x78] sm:$0x2]
    %v1943 = vld [vmem:[%s0 + $0x7c] sm:$0x2]
    %v1944 = vunpack.c.l.bf16 %v1912
    %v1945 = vunpack.c.l.bf16 %v1913
    %v1946 = vunpack.c.l.bf16 %v1914
    %v1947 = vunpack.c.l.bf16 %v1915
    %v1948 = vunpack.c.l.bf16 %v1916
    %v1949 = vunpack.c.l.bf16 %v1917
    %v1950 = vunpack.c.l.bf16 %v1918
    %v1951 = vunpack.c.l.bf16 %v1919
    %v1952 = vunpack.c.l.bf16 %v1920
    %v1953 = vunpack.c.l.bf16 %v1921
    %v1954 = vunpack.c.l.bf16 %v1922
    %v1955 = vunpack.c.l.bf16 %v1923
    %v1956 = vunpack.c.l.bf16 %v1924
    %v1957 = vunpack.c.l.bf16 %v1925
    %v1958 = vunpack.c.l.bf16 %v1926
    %v1959 = vunpack.c.l.bf16 %v1927
    %v1960 = vunpack.c.l.bf16 %v1928
    %v1961 = vunpack.c.l.bf16 %v1929
    %v1962 = vunpack.c.l.bf16 %v1930
    %v1963 = vunpack.c.l.bf16 %v1931
    %v1964 = vunpack.c.l.bf16 %v1932
    %v1965 = vunpack.c.l.bf16 %v1933
    %v1966 = vunpack.c.l.bf16 %v1934
    %v1967 = vunpack.c.l.bf16 %v1935
    %v1968 = vunpack.c.l.bf16 %v1936
    %v1969 = vunpack.c.l.bf16 %v1937
    %v1970 = vunpack.c.l.bf16 %v1938
    %v1971 = vunpack.c.l.bf16 %v1939
    %v1972 = vunpack.c.l.bf16 %v1940
    %v1973 = vunpack.c.l.bf16 %v1941
    %v1974 = vunpack.c.l.bf16 %v1942
    %v1975 = vunpack.c.l.bf16 %v1943
    %v1976 = vld [vmem:[%s1 + $0x2] sm:$0x1]
    %v1977 = vld [vmem:[%s1 + $0xa] sm:$0x1]
    %v1978 = vld [vmem:[%s1 + $0x12] sm:$0x1]
    %v1979 = vld [vmem:[%s1 + $0x1a] sm:$0x1]
    %v1980 = vld [vmem:[%s1 + $0x22] sm:$0x1]
    %v1981 = vld [vmem:[%s1 + $0x2a] sm:$0x1]
    %v1982 = vld [vmem:[%s1 + $0x32] sm:$0x1]
    %v1983 = vld [vmem:[%s1 + $0x3a] sm:$0x1]
    %v1984 = vld [vmem:[%s1 + $0x42] sm:$0x1]
    %v1985 = vld [vmem:[%s1 + $0x4a] sm:$0x1]
    %v1986 = vld [vmem:[%s1 + $0x52] sm:$0x1]
    %v1987 = vld [vmem:[%s1 + $0x5a] sm:$0x1]
    %v1988 = vld [vmem:[%s1 + $0x62] sm:$0x1]
    %v1989 = vld [vmem:[%s1 + $0x6a] sm:$0x1]
    %v1990 = vld [vmem:[%s1 + $0x72] sm:$0x1]
    %v1991 = vld [vmem:[%s1 + $0x7a] sm:$0x1]
    %v1992 = vld [vmem:[%s1 + $0x82] sm:$0x1]
    %v1993 = vld [vmem:[%s1 + $0x8a] sm:$0x1]
    %v1994 = vld [vmem:[%s1 + $0x92] sm:$0x1]
    %v1995 = vld [vmem:[%s1 + $0x9a] sm:$0x1]
    %v1996 = vld [vmem:[%s1 + $0xa2] sm:$0x1]
    %v1997 = vld [vmem:[%s1 + $0xaa] sm:$0x1]
    %v1998 = vld [vmem:[%s1 + $0xb2] sm:$0x1]
    %v1999 = vld [vmem:[%s1 + $0xba] sm:$0x1]
    %v2000 = vld [vmem:[%s1 + $0xc2] sm:$0x1]
    %v2001 = vld [vmem:[%s1 + $0xca] sm:$0x1]
    %v2002 = vld [vmem:[%s1 + $0xd2] sm:$0x1]
    %v2003 = vld [vmem:[%s1 + $0xda] sm:$0x1]
    %v2004 = vld [vmem:[%s1 + $0xe2] sm:$0x1]
    %v2005 = vld [vmem:[%s1 + $0xea] sm:$0x1]
    %v2006 = vld [vmem:[%s1 + $0xf2] sm:$0x1]
    %v2007 = vld [vmem:[%s1 + $0xfa] sm:$0x1]
    %2009 = vset.pattern.permute.xlu0 0
    %2010 = vperm.xlu0 %2009, %v1976
    %v2011 = vpop.permute.xlu0 %2010
    %2014 = vset.pattern.permute.xlu0 0
    %2015 = vperm.xlu0 %2014, %v1977
    %v2016 = vpop.permute.xlu0 %2015
    %2019 = vset.pattern.permute.xlu0 0
    %2020 = vperm.xlu0 %2019, %v1978
    %v2021 = vpop.permute.xlu0 %2020
    %2024 = vset.pattern.permute.xlu0 0
    %2025 = vperm.xlu0 %2024, %v1979
    %v2026 = vpop.permute.xlu0 %2025
    %2029 = vset.pattern.permute.xlu0 0
    %2030 = vperm.xlu0 %2029, %v1980
    %v2031 = vpop.permute.xlu0 %2030
    %2034 = vset.pattern.permute.xlu0 0
    %2035 = vperm.xlu0 %2034, %v1981
    %v2036 = vpop.permute.xlu0 %2035
    %2039 = vset.pattern.permute.xlu0 0
    %2040 = vperm.xlu0 %2039, %v1982
    %v2041 = vpop.permute.xlu0 %2040
    %2044 = vset.pattern.permute.xlu0 0
    %2045 = vperm.xlu0 %2044, %v1983
    %v2046 = vpop.permute.xlu0 %2045
    %2049 = vset.pattern.permute.xlu0 0
    %2050 = vperm.xlu0 %2049, %v1984
    %v2051 = vpop.permute.xlu0 %2050
    %2054 = vset.pattern.permute.xlu0 0
    %2055 = vperm.xlu0 %2054, %v1985
    %v2056 = vpop.permute.xlu0 %2055
    %2059 = vset.pattern.permute.xlu0 0
    %2060 = vperm.xlu0 %2059, %v1986
    %v2061 = vpop.permute.xlu0 %2060
    %2064 = vset.pattern.permute.xlu0 0
    %2065 = vperm.xlu0 %2064, %v1987
    %v2066 = vpop.permute.xlu0 %2065
    %2069 = vset.pattern.permute.xlu0 0
    %2070 = vperm.xlu0 %2069, %v1988
    %v2071 = vpop.permute.xlu0 %2070
    %2074 = vset.pattern.permute.xlu0 0
    %2075 = vperm.xlu0 %2074, %v1989
    %v2076 = vpop.permute.xlu0 %2075
    %2079 = vset.pattern.permute.xlu0 0
    %2080 = vperm.xlu0 %2079, %v1990
    %v2081 = vpop.permute.xlu0 %2080
    %2084 = vset.pattern.permute.xlu0 0
    %2085 = vperm.xlu0 %2084, %v1991
    %v2086 = vpop.permute.xlu0 %2085
    %2089 = vset.pattern.permute.xlu0 0
    %2090 = vperm.xlu0 %2089, %v1992
    %v2091 = vpop.permute.xlu0 %2090
    %2094 = vset.pattern.permute.xlu0 0
    %2095 = vperm.xlu0 %2094, %v1993
    %v2096 = vpop.permute.xlu0 %2095
    %2099 = vset.pattern.permute.xlu0 0
    %2100 = vperm.xlu0 %2099, %v1994
    %v2101 = vpop.permute.xlu0 %2100
    %2104 = vset.pattern.permute.xlu0 0
    %2105 = vperm.xlu0 %2104, %v1995
    %v2106 = vpop.permute.xlu0 %2105
    %2109 = vset.pattern.permute.xlu0 0
    %2110 = vperm.xlu0 %2109, %v1996
    %v2111 = vpop.permute.xlu0 %2110
    %2114 = vset.pattern.permute.xlu0 0
    %2115 = vperm.xlu0 %2114, %v1997
    %v2116 = vpop.permute.xlu0 %2115
    %2119 = vset.pattern.permute.xlu0 0
    %2120 = vperm.xlu0 %2119, %v1998
    %v2121 = vpop.permute.xlu0 %2120
    %2124 = vset.pattern.permute.xlu0 0
    %2125 = vperm.xlu0 %2124, %v1999
    %v2126 = vpop.permute.xlu0 %2125
    %2129 = vset.pattern.permute.xlu0 0
    %2130 = vperm.xlu0 %2129, %v2000
    %v2131 = vpop.permute.xlu0 %2130
    %2134 = vset.pattern.permute.xlu0 0
    %2135 = vperm.xlu0 %2134, %v2001
    %v2136 = vpop.permute.xlu0 %2135
    %2139 = vset.pattern.permute.xlu0 0
    %2140 = vperm.xlu0 %2139, %v2002
    %v2141 = vpop.permute.xlu0 %2140
    %2144 = vset.pattern.permute.xlu0 0
    %2145 = vperm.xlu0 %2144, %v2003
    %v2146 = vpop.permute.xlu0 %2145
    %2149 = vset.pattern.permute.xlu0 0
    %2150 = vperm.xlu0 %2149, %v2004
    %v2151 = vpop.permute.xlu0 %2150
    %2154 = vset.pattern.permute.xlu0 0
    %2155 = vperm.xlu0 %2154, %v2005
    %v2156 = vpop.permute.xlu0 %2155
    %2159 = vset.pattern.permute.xlu0 0
    %2160 = vperm.xlu0 %2159, %v2006
    %v2161 = vpop.permute.xlu0 %2160
    %2164 = vset.pattern.permute.xlu0 0
    %2165 = vperm.xlu0 %2164, %v2007
    %v2166 = vpop.permute.xlu0 %2165
    %v2168 = vmul.f32 %v2011, %v23
    %v2169 = vmul.f32 %v2016, %v23
    %v2170 = vmul.f32 %v2021, %v23
    %v2171 = vmul.f32 %v2026, %v23
    %v2172 = vmul.f32 %v2031, %v23
    %v2173 = vmul.f32 %v2036, %v23
    %v2174 = vmul.f32 %v2041, %v23
    %v2175 = vmul.f32 %v2046, %v23
    %v2176 = vmul.f32 %v2051, %v23
    %v2177 = vmul.f32 %v2056, %v23
    %v2178 = vmul.f32 %v2061, %v23
    %v2179 = vmul.f32 %v2066, %v23
    %v2180 = vmul.f32 %v2071, %v23
    %v2181 = vmul.f32 %v2076, %v23
    %v2182 = vmul.f32 %v2081, %v23
    %v2183 = vmul.f32 %v2086, %v23
    %v2184 = vmul.f32 %v2091, %v23
    %v2185 = vmul.f32 %v2096, %v23
    %v2186 = vmul.f32 %v2101, %v23
    %v2187 = vmul.f32 %v2106, %v23
    %v2188 = vmul.f32 %v2111, %v23
    %v2189 = vmul.f32 %v2116, %v23
    %v2190 = vmul.f32 %v2121, %v23
    %v2191 = vmul.f32 %v2126, %v23
    %v2192 = vmul.f32 %v2131, %v23
    %v2193 = vmul.f32 %v2136, %v23
    %v2194 = vmul.f32 %v2141, %v23
    %v2195 = vmul.f32 %v2146, %v23
    %v2196 = vmul.f32 %v2151, %v23
    %v2197 = vmul.f32 %v2156, %v23
    %v2198 = vmul.f32 %v2161, %v23
    %v2199 = vmul.f32 %v2166, %v23
    %2200 = vset.pattern.permute.xlu0 1
    %2201 = vperm.xlu0 %2200, %v1976
    %v2202 = vpop.permute.xlu0 %2201
    %2204 = vset.pattern.permute.xlu0 1
    %2205 = vperm.xlu0 %2204, %v1977
    %v2206 = vpop.permute.xlu0 %2205
    %2208 = vset.pattern.permute.xlu0 1
    %2209 = vperm.xlu0 %2208, %v1978
    %v2210 = vpop.permute.xlu0 %2209
    %2212 = vset.pattern.permute.xlu0 1
    %2213 = vperm.xlu0 %2212, %v1979
    %v2214 = vpop.permute.xlu0 %2213
    %2216 = vset.pattern.permute.xlu0 1
    %2217 = vperm.xlu0 %2216, %v1980
    %v2218 = vpop.permute.xlu0 %2217
    %2220 = vset.pattern.permute.xlu0 1
    %2221 = vperm.xlu0 %2220, %v1981
    %v2222 = vpop.permute.xlu0 %2221
    %2224 = vset.pattern.permute.xlu0 1
    %2225 = vperm.xlu0 %2224, %v1982
    %v2226 = vpop.permute.xlu0 %2225
    %2228 = vset.pattern.permute.xlu0 1
    %2229 = vperm.xlu0 %2228, %v1983
    %v2230 = vpop.permute.xlu0 %2229
    %2232 = vset.pattern.permute.xlu0 1
    %2233 = vperm.xlu0 %2232, %v1984
    %v2234 = vpop.permute.xlu0 %2233
    %2236 = vset.pattern.permute.xlu0 1
    %2237 = vperm.xlu0 %2236, %v1985
    %v2238 = vpop.permute.xlu0 %2237
    %2240 = vset.pattern.permute.xlu0 1
    %2241 = vperm.xlu0 %2240, %v1986
    %v2242 = vpop.permute.xlu0 %2241
    %2244 = vset.pattern.permute.xlu0 1
    %2245 = vperm.xlu0 %2244, %v1987
    %v2246 = vpop.permute.xlu0 %2245
    %2248 = vset.pattern.permute.xlu0 1
    %2249 = vperm.xlu0 %2248, %v1988
    %v2250 = vpop.permute.xlu0 %2249
    %2252 = vset.pattern.permute.xlu0 1
    %2253 = vperm.xlu0 %2252, %v1989
    %v2254 = vpop.permute.xlu0 %2253
    %2256 = vset.pattern.permute.xlu0 1
    %2257 = vperm.xlu0 %2256, %v1990
    %v2258 = vpop.permute.xlu0 %2257
    %2260 = vset.pattern.permute.xlu0 1
    %2261 = vperm.xlu0 %2260, %v1991
    %v2262 = vpop.permute.xlu0 %2261
    %2264 = vset.pattern.permute.xlu0 1
    %2265 = vperm.xlu0 %2264, %v1992
    %v2266 = vpop.permute.xlu0 %2265
    %2268 = vset.pattern.permute.xlu0 1
    %2269 = vperm.xlu0 %2268, %v1993
    %v2270 = vpop.permute.xlu0 %2269
    %2272 = vset.pattern.permute.xlu0 1
    %2273 = vperm.xlu0 %2272, %v1994
    %v2274 = vpop.permute.xlu0 %2273
    %2276 = vset.pattern.permute.xlu0 1
    %2277 = vperm.xlu0 %2276, %v1995
    %v2278 = vpop.permute.xlu0 %2277
    %2280 = vset.pattern.permute.xlu0 1
    %2281 = vperm.xlu0 %2280, %v1996
    %v2282 = vpop.permute.xlu0 %2281
    %2284 = vset.pattern.permute.xlu0 1
    %2285 = vperm.xlu0 %2284, %v1997
    %v2286 = vpop.permute.xlu0 %2285
    %2288 = vset.pattern.permute.xlu0 1
    %2289 = vperm.xlu0 %2288, %v1998
    %v2290 = vpop.permute.xlu0 %2289
    %2292 = vset.pattern.permute.xlu0 1
    %2293 = vperm.xlu0 %2292, %v1999
    %v2294 = vpop.permute.xlu0 %2293
    %2296 = vset.pattern.permute.xlu0 1
    %2297 = vperm.xlu0 %2296, %v2000
    %v2298 = vpop.permute.xlu0 %2297
    %2300 = vset.pattern.permute.xlu0 1
    %2301 = vperm.xlu0 %2300, %v2001
    %v2302 = vpop.permute.xlu0 %2301
    %2304 = vset.pattern.permute.xlu0 1
    %2305 = vperm.xlu0 %2304, %v2002
    %v2306 = vpop.permute.xlu0 %2305
    %2308 = vset.pattern.permute.xlu0 1
    %2309 = vperm.xlu0 %2308, %v2003
    %v2310 = vpop.permute.xlu0 %2309
    %2312 = vset.pattern.permute.xlu0 1
    %2313 = vperm.xlu0 %2312, %v2004
    %v2314 = vpop.permute.xlu0 %2313
    %2316 = vset.pattern.permute.xlu0 1
    %2317 = vperm.xlu0 %2316, %v2005
    %v2318 = vpop.permute.xlu0 %2317
    %2320 = vset.pattern.permute.xlu0 1
    %2321 = vperm.xlu0 %2320, %v2006
    %v2322 = vpop.permute.xlu0 %2321
    %2324 = vset.pattern.permute.xlu0 1
    %2325 = vperm.xlu0 %2324, %v2007
    %v2326 = vpop.permute.xlu0 %2325
    %v2328 = vmul.f32 %v2202, %v28
    %v2329 = vmul.f32 %v2206, %v28
    %v2330 = vmul.f32 %v2210, %v28
    %v2331 = vmul.f32 %v2214, %v28
    %v2332 = vmul.f32 %v2218, %v28
    %v2333 = vmul.f32 %v2222, %v28
    %v2334 = vmul.f32 %v2226, %v28
    %v2335 = vmul.f32 %v2230, %v28
    %v2336 = vmul.f32 %v2234, %v28
    %v2337 = vmul.f32 %v2238, %v28
    %v2338 = vmul.f32 %v2242, %v28
    %v2339 = vmul.f32 %v2246, %v28
    %v2340 = vmul.f32 %v2250, %v28
    %v2341 = vmul.f32 %v2254, %v28
    %v2342 = vmul.f32 %v2258, %v28
    %v2343 = vmul.f32 %v2262, %v28
    %v2344 = vmul.f32 %v2266, %v28
    %v2345 = vmul.f32 %v2270, %v28
    %v2346 = vmul.f32 %v2274, %v28
    %v2347 = vmul.f32 %v2278, %v28
    %v2348 = vmul.f32 %v2282, %v28
    %v2349 = vmul.f32 %v2286, %v28
    %v2350 = vmul.f32 %v2290, %v28
    %v2351 = vmul.f32 %v2294, %v28
    %v2352 = vmul.f32 %v2298, %v28
    %v2353 = vmul.f32 %v2302, %v28
    %v2354 = vmul.f32 %v2306, %v28
    %v2355 = vmul.f32 %v2310, %v28
    %v2356 = vmul.f32 %v2314, %v28
    %v2357 = vmul.f32 %v2318, %v28
    %v2358 = vmul.f32 %v2322, %v28
    %v2359 = vmul.f32 %v2326, %v28
    %v2360 = vadd.f32 %v2168, %v2328
    %v2361 = vadd.f32 %v2169, %v2329
    %v2362 = vadd.f32 %v2170, %v2330
    %v2363 = vadd.f32 %v2171, %v2331
    %v2364 = vadd.f32 %v2172, %v2332
    %v2365 = vadd.f32 %v2173, %v2333
    %v2366 = vadd.f32 %v2174, %v2334
    %v2367 = vadd.f32 %v2175, %v2335
    %v2368 = vadd.f32 %v2176, %v2336
    %v2369 = vadd.f32 %v2177, %v2337
    %v2370 = vadd.f32 %v2178, %v2338
    %v2371 = vadd.f32 %v2179, %v2339
    %v2372 = vadd.f32 %v2180, %v2340
    %v2373 = vadd.f32 %v2181, %v2341
    %v2374 = vadd.f32 %v2182, %v2342
    %v2375 = vadd.f32 %v2183, %v2343
    %v2376 = vadd.f32 %v2184, %v2344
    %v2377 = vadd.f32 %v2185, %v2345
    %v2378 = vadd.f32 %v2186, %v2346
    %v2379 = vadd.f32 %v2187, %v2347
    %v2380 = vadd.f32 %v2188, %v2348
    %v2381 = vadd.f32 %v2189, %v2349
    %v2382 = vadd.f32 %v2190, %v2350
    %v2383 = vadd.f32 %v2191, %v2351
    %v2384 = vadd.f32 %v2192, %v2352
    %v2385 = vadd.f32 %v2193, %v2353
    %v2386 = vadd.f32 %v2194, %v2354
    %v2387 = vadd.f32 %v2195, %v2355
    %v2388 = vadd.f32 %v2196, %v2356
    %v2389 = vadd.f32 %v2197, %v2357
    %v2390 = vadd.f32 %v2198, %v2358
    %v2391 = vadd.f32 %v2199, %v2359
    %2392 = vset.pattern.permute.xlu0 2
    %2393 = vperm.xlu0 %2392, %v1976
    %v2394 = vpop.permute.xlu0 %2393
    %2396 = vset.pattern.permute.xlu0 2
    %2397 = vperm.xlu0 %2396, %v1977
    %v2398 = vpop.permute.xlu0 %2397
    %2400 = vset.pattern.permute.xlu0 2
    %2401 = vperm.xlu0 %2400, %v1978
    %v2402 = vpop.permute.xlu0 %2401
    %2404 = vset.pattern.permute.xlu0 2
    %2405 = vperm.xlu0 %2404, %v1979
    %v2406 = vpop.permute.xlu0 %2405
    %2408 = vset.pattern.permute.xlu0 2
    %2409 = vperm.xlu0 %2408, %v1980
    %v2410 = vpop.permute.xlu0 %2409
    %2412 = vset.pattern.permute.xlu0 2
    %2413 = vperm.xlu0 %2412, %v1981
    %v2414 = vpop.permute.xlu0 %2413
    %2416 = vset.pattern.permute.xlu0 2
    %2417 = vperm.xlu0 %2416, %v1982
    %v2418 = vpop.permute.xlu0 %2417
    %2420 = vset.pattern.permute.xlu0 2
    %2421 = vperm.xlu0 %2420, %v1983
    %v2422 = vpop.permute.xlu0 %2421
    %2424 = vset.pattern.permute.xlu0 2
    %2425 = vperm.xlu0 %2424, %v1984
    %v2426 = vpop.permute.xlu0 %2425
    %2428 = vset.pattern.permute.xlu0 2
    %2429 = vperm.xlu0 %2428, %v1985
    %v2430 = vpop.permute.xlu0 %2429
    %2432 = vset.pattern.permute.xlu0 2
    %2433 = vperm.xlu0 %2432, %v1986
    %v2434 = vpop.permute.xlu0 %2433
    %2436 = vset.pattern.permute.xlu0 2
    %2437 = vperm.xlu0 %2436, %v1987
    %v2438 = vpop.permute.xlu0 %2437
    %2440 = vset.pattern.permute.xlu0 2
    %2441 = vperm.xlu0 %2440, %v1988
    %v2442 = vpop.permute.xlu0 %2441
    %2444 = vset.pattern.permute.xlu0 2
    %2445 = vperm.xlu0 %2444, %v1989
    %v2446 = vpop.permute.xlu0 %2445
    %2448 = vset.pattern.permute.xlu0 2
    %2449 = vperm.xlu0 %2448, %v1990
    %v2450 = vpop.permute.xlu0 %2449
    %2452 = vset.pattern.permute.xlu0 2
    %2453 = vperm.xlu0 %2452, %v1991
    %v2454 = vpop.permute.xlu0 %2453
    %2456 = vset.pattern.permute.xlu0 2
    %2457 = vperm.xlu0 %2456, %v1992
    %v2458 = vpop.permute.xlu0 %2457
    %2460 = vset.pattern.permute.xlu0 2
    %2461 = vperm.xlu0 %2460, %v1993
    %v2462 = vpop.permute.xlu0 %2461
    %2464 = vset.pattern.permute.xlu0 2
    %2465 = vperm.xlu0 %2464, %v1994
    %v2466 = vpop.permute.xlu0 %2465
    %2468 = vset.pattern.permute.xlu0 2
    %2469 = vperm.xlu0 %2468, %v1995
    %v2470 = vpop.permute.xlu0 %2469
    %2472 = vset.pattern.permute.xlu0 2
    %2473 = vperm.xlu0 %2472, %v1996
    %v2474 = vpop.permute.xlu0 %2473
    %2476 = vset.pattern.permute.xlu0 2
    %2477 = vperm.xlu0 %2476, %v1997
    %v2478 = vpop.permute.xlu0 %2477
    %2480 = vset.pattern.permute.xlu0 2
    %2481 = vperm.xlu0 %2480, %v1998
    %v2482 = vpop.permute.xlu0 %2481
    %2484 = vset.pattern.permute.xlu0 2
    %2485 = vperm.xlu0 %2484, %v1999
    %v2486 = vpop.permute.xlu0 %2485
    %2488 = vset.pattern.permute.xlu0 2
    %2489 = vperm.xlu0 %2488, %v2000
    %v2490 = vpop.permute.xlu0 %2489
    %2492 = vset.pattern.permute.xlu0 2
    %2493 = vperm.xlu0 %2492, %v2001
    %v2494 = vpop.permute.xlu0 %2493
    %2496 = vset.pattern.permute.xlu0 2
    %2497 = vperm.xlu0 %2496, %v2002
    %v2498 = vpop.permute.xlu0 %2497
    %2500 = vset.pattern.permute.xlu0 2
    %2501 = vperm.xlu0 %2500, %v2003
    %v2502 = vpop.permute.xlu0 %2501
    %2504 = vset.pattern.permute.xlu0 2
    %2505 = vperm.xlu0 %2504, %v2004
    %v2506 = vpop.permute.xlu0 %2505
    %2508 = vset.pattern.permute.xlu0 2
    %2509 = vperm.xlu0 %2508, %v2005
    %v2510 = vpop.permute.xlu0 %2509
    %2512 = vset.pattern.permute.xlu0 2
    %2513 = vperm.xlu0 %2512, %v2006
    %v2514 = vpop.permute.xlu0 %2513
    %2516 = vset.pattern.permute.xlu0 2
    %2517 = vperm.xlu0 %2516, %v2007
    %v2518 = vpop.permute.xlu0 %2517
    %v2520 = vmul.f32 %v2394, %v31
    %v2521 = vmul.f32 %v2398, %v31
    %v2522 = vmul.f32 %v2402, %v31
    %v2523 = vmul.f32 %v2406, %v31
    %v2524 = vmul.f32 %v2410, %v31
    %v2525 = vmul.f32 %v2414, %v31
    %v2526 = vmul.f32 %v2418, %v31
    %v2527 = vmul.f32 %v2422, %v31
    %v2528 = vmul.f32 %v2426, %v31
    %v2529 = vmul.f32 %v2430, %v31
    %v2530 = vmul.f32 %v2434, %v31
    %v2531 = vmul.f32 %v2438, %v31
    %v2532 = vmul.f32 %v2442, %v31
    %v2533 = vmul.f32 %v2446, %v31
    %v2534 = vmul.f32 %v2450, %v31
    %v2535 = vmul.f32 %v2454, %v31
    %v2536 = vmul.f32 %v2458, %v31
    %v2537 = vmul.f32 %v2462, %v31
    %v2538 = vmul.f32 %v2466, %v31
    %v2539 = vmul.f32 %v2470, %v31
    %v2540 = vmul.f32 %v2474, %v31
    %v2541 = vmul.f32 %v2478, %v31
    %v2542 = vmul.f32 %v2482, %v31
    %v2543 = vmul.f32 %v2486, %v31
    %v2544 = vmul.f32 %v2490, %v31
    %v2545 = vmul.f32 %v2494, %v31
    %v2546 = vmul.f32 %v2498, %v31
    %v2547 = vmul.f32 %v2502, %v31
    %v2548 = vmul.f32 %v2506, %v31
    %v2549 = vmul.f32 %v2510, %v31
    %v2550 = vmul.f32 %v2514, %v31
    %v2551 = vmul.f32 %v2518, %v31
    %v2552 = vadd.f32 %v2360, %v2520
    %v2553 = vadd.f32 %v2361, %v2521
    %v2554 = vadd.f32 %v2362, %v2522
    %v2555 = vadd.f32 %v2363, %v2523
    %v2556 = vadd.f32 %v2364, %v2524
    %v2557 = vadd.f32 %v2365, %v2525
    %v2558 = vadd.f32 %v2366, %v2526
    %v2559 = vadd.f32 %v2367, %v2527
    %v2560 = vadd.f32 %v2368, %v2528
    %v2561 = vadd.f32 %v2369, %v2529
    %v2562 = vadd.f32 %v2370, %v2530
    %v2563 = vadd.f32 %v2371, %v2531
    %v2564 = vadd.f32 %v2372, %v2532
    %v2565 = vadd.f32 %v2373, %v2533
    %v2566 = vadd.f32 %v2374, %v2534
    %v2567 = vadd.f32 %v2375, %v2535
    %v2568 = vadd.f32 %v2376, %v2536
    %v2569 = vadd.f32 %v2377, %v2537
    %v2570 = vadd.f32 %v2378, %v2538
    %v2571 = vadd.f32 %v2379, %v2539
    %v2572 = vadd.f32 %v2380, %v2540
    %v2573 = vadd.f32 %v2381, %v2541
    %v2574 = vadd.f32 %v2382, %v2542
    %v2575 = vadd.f32 %v2383, %v2543
    %v2576 = vadd.f32 %v2384, %v2544
    %v2577 = vadd.f32 %v2385, %v2545
    %v2578 = vadd.f32 %v2386, %v2546
    %v2579 = vadd.f32 %v2387, %v2547
    %v2580 = vadd.f32 %v2388, %v2548
    %v2581 = vadd.f32 %v2389, %v2549
    %v2582 = vadd.f32 %v2390, %v2550
    %v2583 = vadd.f32 %v2391, %v2551
    %v2616 = vrot.slane %v2552, 6
    %v2617 = vrot.slane %v2553, 6
    %v2618 = vrot.slane %v2554, 6
    %v2619 = vrot.slane %v2555, 6
    %v2620 = vrot.slane %v2556, 6
    %v2621 = vrot.slane %v2557, 6
    %v2622 = vrot.slane %v2558, 6
    %v2623 = vrot.slane %v2559, 6
    %v2624 = vrot.slane %v2560, 6
    %v2625 = vrot.slane %v2561, 6
    %v2626 = vrot.slane %v2562, 6
    %v2627 = vrot.slane %v2563, 6
    %v2628 = vrot.slane %v2564, 6
    %v2629 = vrot.slane %v2565, 6
    %v2630 = vrot.slane %v2566, 6
    %v2631 = vrot.slane %v2567, 6
    %v2632 = vrot.slane %v2568, 6
    %v2633 = vrot.slane %v2569, 6
    %v2634 = vrot.slane %v2570, 6
    %v2635 = vrot.slane %v2571, 6
    %v2636 = vrot.slane %v2572, 6
    %v2637 = vrot.slane %v2573, 6
    %v2638 = vrot.slane %v2574, 6
    %v2639 = vrot.slane %v2575, 6
    %v2640 = vrot.slane %v2576, 6
    %v2641 = vrot.slane %v2577, 6
    %v2642 = vrot.slane %v2578, 6
    %v2643 = vrot.slane %v2579, 6
    %v2644 = vrot.slane %v2580, 6
    %v2645 = vrot.slane %v2581, 6
    %v2646 = vrot.slane %v2582, 6
    %v2647 = vrot.slane %v2583, 6
    %v2680 = vmul.f32 %v1944, %v2616
    %v2681 = vmul.f32 %v1945, %v2617
    %v2682 = vmul.f32 %v1946, %v2618
    %v2683 = vmul.f32 %v1947, %v2619
    %v2684 = vmul.f32 %v1948, %v2620
    %v2685 = vmul.f32 %v1949, %v2621
    %v2686 = vmul.f32 %v1950, %v2622
    %v2687 = vmul.f32 %v1951, %v2623
    %v2688 = vmul.f32 %v1952, %v2624
    %v2689 = vmul.f32 %v1953, %v2625
    %v2690 = vmul.f32 %v1954, %v2626
    %v2691 = vmul.f32 %v1955, %v2627
    %v2692 = vmul.f32 %v1956, %v2628
    %v2693 = vmul.f32 %v1957, %v2629
    %v2694 = vmul.f32 %v1958, %v2630
    %v2695 = vmul.f32 %v1959, %v2631
    %v2696 = vmul.f32 %v1960, %v2632
    %v2697 = vmul.f32 %v1961, %v2633
    %v2698 = vmul.f32 %v1962, %v2634
    %v2699 = vmul.f32 %v1963, %v2635
    %v2700 = vmul.f32 %v1964, %v2636
    %v2701 = vmul.f32 %v1965, %v2637
    %v2702 = vmul.f32 %v1966, %v2638
    %v2703 = vmul.f32 %v1967, %v2639
    %v2704 = vmul.f32 %v1968, %v2640
    %v2705 = vmul.f32 %v1969, %v2641
    %v2706 = vmul.f32 %v1970, %v2642
    %v2707 = vmul.f32 %v1971, %v2643
    %v2708 = vmul.f32 %v1972, %v2644
    %v2709 = vmul.f32 %v1973, %v2645
    %v2710 = vmul.f32 %v1974, %v2646
    %v2711 = vmul.f32 %v1975, %v2647
    %v2712 = vpack.c.bf16 %v2680, %v2680
    %v2713 = vpack.c.bf16 %v2681, %v2681
    %v2714 = vpack.c.bf16 %v2682, %v2682
    %v2715 = vpack.c.bf16 %v2683, %v2683
    %v2716 = vpack.c.bf16 %v2684, %v2684
    %v2717 = vpack.c.bf16 %v2685, %v2685
    %v2718 = vpack.c.bf16 %v2686, %v2686
    %v2719 = vpack.c.bf16 %v2687, %v2687
    %v2720 = vpack.c.bf16 %v2688, %v2688
    %v2721 = vpack.c.bf16 %v2689, %v2689
    %v2722 = vpack.c.bf16 %v2690, %v2690
    %v2723 = vpack.c.bf16 %v2691, %v2691
    %v2724 = vpack.c.bf16 %v2692, %v2692
    %v2725 = vpack.c.bf16 %v2693, %v2693
    %v2726 = vpack.c.bf16 %v2694, %v2694
    %v2727 = vpack.c.bf16 %v2695, %v2695
    %v2728 = vpack.c.bf16 %v2696, %v2696
    %v2729 = vpack.c.bf16 %v2697, %v2697
    %v2730 = vpack.c.bf16 %v2698, %v2698
    %v2731 = vpack.c.bf16 %v2699, %v2699
    %v2732 = vpack.c.bf16 %v2700, %v2700
    %v2733 = vpack.c.bf16 %v2701, %v2701
    %v2734 = vpack.c.bf16 %v2702, %v2702
    %v2735 = vpack.c.bf16 %v2703, %v2703
    %v2736 = vpack.c.bf16 %v2704, %v2704
    %v2737 = vpack.c.bf16 %v2705, %v2705
    %v2738 = vpack.c.bf16 %v2706, %v2706
    %v2739 = vpack.c.bf16 %v2707, %v2707
    %v2740 = vpack.c.bf16 %v2708, %v2708
    %v2741 = vpack.c.bf16 %v2709, %v2709
    %v2742 = vpack.c.bf16 %v2710, %v2710
    %v2743 = vpack.c.bf16 %v2711, %v2711
    %v2776 = vunpack.c.l.b16 %v2712
    %v2777 = vunpack.c.l.b16 %v2713
    %v2778 = vunpack.c.l.b16 %v2714
    %v2779 = vunpack.c.l.b16 %v2715
    %v2780 = vunpack.c.l.b16 %v2716
    %v2781 = vunpack.c.l.b16 %v2717
    %v2782 = vunpack.c.l.b16 %v2718
    %v2783 = vunpack.c.l.b16 %v2719
    %v2784 = vunpack.c.l.b16 %v2720
    %v2785 = vunpack.c.l.b16 %v2721
    %v2786 = vunpack.c.l.b16 %v2722
    %v2787 = vunpack.c.l.b16 %v2723
    %v2788 = vunpack.c.l.b16 %v2724
    %v2789 = vunpack.c.l.b16 %v2725
    %v2790 = vunpack.c.l.b16 %v2726
    %v2791 = vunpack.c.l.b16 %v2727
    %v2792 = vunpack.c.l.b16 %v2728
    %v2793 = vunpack.c.l.b16 %v2729
    %v2794 = vunpack.c.l.b16 %v2730
    %v2795 = vunpack.c.l.b16 %v2731
    %v2796 = vunpack.c.l.b16 %v2732
    %v2797 = vunpack.c.l.b16 %v2733
    %v2798 = vunpack.c.l.b16 %v2734
    %v2799 = vunpack.c.l.b16 %v2735
    %v2800 = vunpack.c.l.b16 %v2736
    %v2801 = vunpack.c.l.b16 %v2737
    %v2802 = vunpack.c.l.b16 %v2738
    %v2803 = vunpack.c.l.b16 %v2739
    %v2804 = vunpack.c.l.b16 %v2740
    %v2805 = vunpack.c.l.b16 %v2741
    %v2806 = vunpack.c.l.b16 %v2742
    %v2807 = vunpack.c.l.b16 %v2743
    %v2808 = vrot.slane %v2776, 2
    %v2809 = vrot.slane %v2777, 1
    %v2810 = vsel %vm836, %v2809, %v2808
    %v2811 = vsel %vm839, %v2778, %v2810
    %v2812 = vrot.slane %v2779, 7
    %v2813 = vsel %vm842, %v2812, %v2811
    %v2814 = vrot.slane %v2780, 6
    %v2815 = vsel %vm845, %v2814, %v2813
    %v2816 = vrot.slane %v2781, 5
    %v2817 = vsel %vm848, %v2816, %v2815
    %v2818 = vrot.slane %v2782, 4
    %v2819 = vsel %vm851, %v2818, %v2817
    %v2820 = vrot.slane %v2783, 3
    %v2821 = vsel %vm854, %v2820, %v2819
    %v2822 = vrot.slane %v2784, 2
    %v2823 = vrot.slane %v2785, 1
    %v2824 = vsel %vm836, %v2823, %v2822
    %v2825 = vsel %vm839, %v2786, %v2824
    %v2826 = vrot.slane %v2787, 7
    %v2827 = vsel %vm842, %v2826, %v2825
    %v2828 = vrot.slane %v2788, 6
    %v2829 = vsel %vm845, %v2828, %v2827
    %v2830 = vrot.slane %v2789, 5
    %v2831 = vsel %vm848, %v2830, %v2829
    %v2832 = vrot.slane %v2790, 4
    %v2833 = vsel %vm851, %v2832, %v2831
    %v2834 = vrot.slane %v2791, 3
    %v2835 = vsel %vm854, %v2834, %v2833
    %v2836 = vrot.slane %v2792, 2
    %v2837 = vrot.slane %v2793, 1
    %v2838 = vsel %vm836, %v2837, %v2836
    %v2839 = vsel %vm839, %v2794, %v2838
    %v2840 = vrot.slane %v2795, 7
    %v2841 = vsel %vm842, %v2840, %v2839
    %v2842 = vrot.slane %v2796, 6
    %v2843 = vsel %vm845, %v2842, %v2841
    %v2844 = vrot.slane %v2797, 5
    %v2845 = vsel %vm848, %v2844, %v2843
    %v2846 = vrot.slane %v2798, 4
    %v2847 = vsel %vm851, %v2846, %v2845
    %v2848 = vrot.slane %v2799, 3
    %v2849 = vsel %vm854, %v2848, %v2847
    %v2850 = vrot.slane %v2800, 2
    %v2851 = vrot.slane %v2801, 1
    %v2852 = vsel %vm836, %v2851, %v2850
    %v2853 = vsel %vm839, %v2802, %v2852
    %v2854 = vrot.slane %v2803, 7
    %v2855 = vsel %vm842, %v2854, %v2853
    %v2856 = vrot.slane %v2804, 6
    %v2857 = vsel %vm845, %v2856, %v2855
    %v2858 = vrot.slane %v2805, 5
    %v2859 = vsel %vm848, %v2858, %v2857
    %v2860 = vrot.slane %v2806, 4
    %v2861 = vsel %vm851, %v2860, %v2859
    %v2862 = vrot.slane %v2807, 3
    %v2863 = vsel %vm854, %v2862, %v2861
    %v2864 = vpack.c.b16 %v2835, %v2821
    %v2865 = vpack.c.b16 %v2863, %v2849
    %v2867 = vsel %vm900, %v2864, 0
    %v2870 = vsel %vm900, %v2865, 0
    %2872 = vmatprep.subr.bf16.mxu0 0
    %2873 = vmatpush1.bf16.msra.mxu0 %v912
    %2874 = vmatprep.subr.bf16.mxu0 0
    %2875 = vmatpush1.bf16.msra.mxu0 0
    %2876 = vmatprep.subr.bf16.mxu0 0
    %2877 = vmatpush1.bf16.msra.mxu0 0
    %2878 = vmatprep.subr.bf16.mxu0 0
    %2879 = vmatpush1.bf16.msra.mxu0 0
    %2880 = vmatprep.subr.bf16.mxu0 0
    %2881 = vmatpush1.bf16.msra.mxu0 0
    %2882 = vmatprep.subr.bf16.mxu0 0
    %2883 = vmatpush1.bf16.msra.mxu0 0
    %2884 = vmatprep.subr.bf16.mxu0 0
    %2885 = vmatpush1.bf16.msra.mxu0 0
    %2886 = vmatprep.subr.bf16.mxu0 0
    %2887 = vmatpush1.bf16.msra.mxu0 0
    %2888 = vmatprep.subr.bf16.mxu0 0
    %2889 = vmatpush1.bf16.msra.mxu0 0
    %2890 = vmatprep.subr.bf16.mxu0 0
    %2891 = vmatpush1.bf16.msra.mxu0 0
    %2892 = vmatprep.subr.bf16.mxu0 0
    %2893 = vmatpush1.bf16.msra.mxu0 0
    %2894 = vmatprep.subr.bf16.mxu0 0
    %2895 = vmatpush1.bf16.msra.mxu0 0
    %2896 = vmatprep.subr.bf16.mxu0 0
    %2897 = vmatpush1.bf16.msra.mxu0 0
    %2898 = vmatprep.subr.bf16.mxu0 0
    %2899 = vmatpush1.bf16.msra.mxu0 0
    %2900 = vmatprep.subr.bf16.mxu0 0
    %2901 = vmatpush1.bf16.msra.mxu0 0
    %2902 = vmatprep.subr.bf16.mxu0 0
    %2903 = vmatpush1.bf16.msra.mxu0 0
    %2904 = vmatprep.mubr.bf16.mxu0 0
    %2905 = vmatmul.mubr.bf16.gmra.mrb[0].mxu0 %v2867
    %v2906 = vpop.f32.mrb[0].mxu0
    %v2907 = vadd.f32 0.0, %v2906
    %v2908 = vpop.f32.mrb[0].mxu0
    %v2909 = vpop.f32.mrb[0].mxu0
    %v2910 = vadd.f32 0.0, %v2909
    %v2911 = vpop.f32.mrb[0].mxu0
    %2912 = vmatprep.mubr.bf16.mxu0 0
    %2913 = vmatmul.mubr.bf16.gmra.mrb[0].mxu0 %v2870
    %v2914 = vpop.f32.mrb[0].mxu0
    %v2915 = vadd.f32 0.0, %v2914
    %v2916 = vpop.f32.mrb[0].mxu0
    %v2917 = vpop.f32.mrb[0].mxu0
    %v2918 = vadd.f32 0.0, %v2917
    %v2919 = vpop.f32.mrb[0].mxu0
    %2920 = vdwg.mxu0
    %v2921 = vmax.f32 %v1908, %v2907
    %v2922 = vmax.f32 %v1909, %v2910
    %v2923 = vmax.f32 %v1910, %v2915
    %v2924 = vmax.f32 %v1911, %v2918
    %v2925 = vld [vmem:[%s1 + $0x3] sm:$0x1]
    %v2926 = vld [vmem:[%s1 + $0xb] sm:$0x1]
    %v2927 = vld [vmem:[%s1 + $0x13] sm:$0x1]
    %v2928 = vld [vmem:[%s1 + $0x1b] sm:$0x1]
    %v2929 = vld [vmem:[%s1 + $0x23] sm:$0x1]
    %v2930 = vld [vmem:[%s1 + $0x2b] sm:$0x1]
    %v2931 = vld [vmem:[%s1 + $0x33] sm:$0x1]
    %v2932 = vld [vmem:[%s1 + $0x3b] sm:$0x1]
    %v2933 = vld [vmem:[%s1 + $0x43] sm:$0x1]
    %v2934 = vld [vmem:[%s1 + $0x4b] sm:$0x1]
    %v2935 = vld [vmem:[%s1 + $0x53] sm:$0x1]
    %v2936 = vld [vmem:[%s1 + $0x5b] sm:$0x1]
    %v2937 = vld [vmem:[%s1 + $0x63] sm:$0x1]
    %v2938 = vld [vmem:[%s1 + $0x6b] sm:$0x1]
    %v2939 = vld [vmem:[%s1 + $0x73] sm:$0x1]
    %v2940 = vld [vmem:[%s1 + $0x7b] sm:$0x1]
    %v2941 = vld [vmem:[%s1 + $0x83] sm:$0x1]
    %v2942 = vld [vmem:[%s1 + $0x8b] sm:$0x1]
    %v2943 = vld [vmem:[%s1 + $0x93] sm:$0x1]
    %v2944 = vld [vmem:[%s1 + $0x9b] sm:$0x1]
    %v2945 = vld [vmem:[%s1 + $0xa3] sm:$0x1]
    %v2946 = vld [vmem:[%s1 + $0xab] sm:$0x1]
    %v2947 = vld [vmem:[%s1 + $0xb3] sm:$0x1]
    %v2948 = vld [vmem:[%s1 + $0xbb] sm:$0x1]
    %v2949 = vld [vmem:[%s1 + $0xc3] sm:$0x1]
    %v2950 = vld [vmem:[%s1 + $0xcb] sm:$0x1]
    %v2951 = vld [vmem:[%s1 + $0xd3] sm:$0x1]
    %v2952 = vld [vmem:[%s1 + $0xdb] sm:$0x1]
    %v2953 = vld [vmem:[%s1 + $0xe3] sm:$0x1]
    %v2954 = vld [vmem:[%s1 + $0xeb] sm:$0x1]
    %v2955 = vld [vmem:[%s1 + $0xf3] sm:$0x1]
    %v2956 = vld [vmem:[%s1 + $0xfb] sm:$0x1]
    %2958 = vset.pattern.permute.xlu0 0
    %2959 = vperm.xlu0 %2958, %v2925
    %v2960 = vpop.permute.xlu0 %2959
    %2963 = vset.pattern.permute.xlu0 0
    %2964 = vperm.xlu0 %2963, %v2926
    %v2965 = vpop.permute.xlu0 %2964
    %2968 = vset.pattern.permute.xlu0 0
    %2969 = vperm.xlu0 %2968, %v2927
    %v2970 = vpop.permute.xlu0 %2969
    %2973 = vset.pattern.permute.xlu0 0
    %2974 = vperm.xlu0 %2973, %v2928
    %v2975 = vpop.permute.xlu0 %2974
    %2978 = vset.pattern.permute.xlu0 0
    %2979 = vperm.xlu0 %2978, %v2929
    %v2980 = vpop.permute.xlu0 %2979
    %2983 = vset.pattern.permute.xlu0 0
    %2984 = vperm.xlu0 %2983, %v2930
    %v2985 = vpop.permute.xlu0 %2984
    %2988 = vset.pattern.permute.xlu0 0
    %2989 = vperm.xlu0 %2988, %v2931
    %v2990 = vpop.permute.xlu0 %2989
    %2993 = vset.pattern.permute.xlu0 0
    %2994 = vperm.xlu0 %2993, %v2932
    %v2995 = vpop.permute.xlu0 %2994
    %2998 = vset.pattern.permute.xlu0 0
    %2999 = vperm.xlu0 %2998, %v2933
    %v3000 = vpop.permute.xlu0 %2999
    %3003 = vset.pattern.permute.xlu0 0
    %3004 = vperm.xlu0 %3003, %v2934
    %v3005 = vpop.permute.xlu0 %3004
    %3008 = vset.pattern.permute.xlu0 0
    %3009 = vperm.xlu0 %3008, %v2935
    %v3010 = vpop.permute.xlu0 %3009
    %3013 = vset.pattern.permute.xlu0 0
    %3014 = vperm.xlu0 %3013, %v2936
    %v3015 = vpop.permute.xlu0 %3014
    %3018 = vset.pattern.permute.xlu0 0
    %3019 = vperm.xlu0 %3018, %v2937
    %v3020 = vpop.permute.xlu0 %3019
    %3023 = vset.pattern.permute.xlu0 0
    %3024 = vperm.xlu0 %3023, %v2938
    %v3025 = vpop.permute.xlu0 %3024
    %3028 = vset.pattern.permute.xlu0 0
    %3029 = vperm.xlu0 %3028, %v2939
    %v3030 = vpop.permute.xlu0 %3029
    %3033 = vset.pattern.permute.xlu0 0
    %3034 = vperm.xlu0 %3033, %v2940
    %v3035 = vpop.permute.xlu0 %3034
    %3038 = vset.pattern.permute.xlu0 0
    %3039 = vperm.xlu0 %3038, %v2941
    %v3040 = vpop.permute.xlu0 %3039
    %3043 = vset.pattern.permute.xlu0 0
    %3044 = vperm.xlu0 %3043, %v2942
    %v3045 = vpop.permute.xlu0 %3044
    %3048 = vset.pattern.permute.xlu0 0
    %3049 = vperm.xlu0 %3048, %v2943
    %v3050 = vpop.permute.xlu0 %3049
    %3053 = vset.pattern.permute.xlu0 0
    %3054 = vperm.xlu0 %3053, %v2944
    %v3055 = vpop.permute.xlu0 %3054
    %3058 = vset.pattern.permute.xlu0 0
    %3059 = vperm.xlu0 %3058, %v2945
    %v3060 = vpop.permute.xlu0 %3059
    %3063 = vset.pattern.permute.xlu0 0
    %3064 = vperm.xlu0 %3063, %v2946
    %v3065 = vpop.permute.xlu0 %3064
    %3068 = vset.pattern.permute.xlu0 0
    %3069 = vperm.xlu0 %3068, %v2947
    %v3070 = vpop.permute.xlu0 %3069
    %3073 = vset.pattern.permute.xlu0 0
    %3074 = vperm.xlu0 %3073, %v2948
    %v3075 = vpop.permute.xlu0 %3074
    %3078 = vset.pattern.permute.xlu0 0
    %3079 = vperm.xlu0 %3078, %v2949
    %v3080 = vpop.permute.xlu0 %3079
    %3083 = vset.pattern.permute.xlu0 0
    %3084 = vperm.xlu0 %3083, %v2950
    %v3085 = vpop.permute.xlu0 %3084
    %3088 = vset.pattern.permute.xlu0 0
    %3089 = vperm.xlu0 %3088, %v2951
    %v3090 = vpop.permute.xlu0 %3089
    %3093 = vset.pattern.permute.xlu0 0
    %3094 = vperm.xlu0 %3093, %v2952
    %v3095 = vpop.permute.xlu0 %3094
    %3098 = vset.pattern.permute.xlu0 0
    %3099 = vperm.xlu0 %3098, %v2953
    %v3100 = vpop.permute.xlu0 %3099
    %3103 = vset.pattern.permute.xlu0 0
    %3104 = vperm.xlu0 %3103, %v2954
    %v3105 = vpop.permute.xlu0 %3104
    %3108 = vset.pattern.permute.xlu0 0
    %3109 = vperm.xlu0 %3108, %v2955
    %v3110 = vpop.permute.xlu0 %3109
    %3113 = vset.pattern.permute.xlu0 0
    %3114 = vperm.xlu0 %3113, %v2956
    %v3115 = vpop.permute.xlu0 %3114
    %v3117 = vmul.f32 %v2960, %v23
    %v3118 = vmul.f32 %v2965, %v23
    %v3119 = vmul.f32 %v2970, %v23
    %v3120 = vmul.f32 %v2975, %v23
    %v3121 = vmul.f32 %v2980, %v23
    %v3122 = vmul.f32 %v2985, %v23
    %v3123 = vmul.f32 %v2990, %v23
    %v3124 = vmul.f32 %v2995, %v23
    %v3125 = vmul.f32 %v3000, %v23
    %v3126 = vmul.f32 %v3005, %v23
    %v3127 = vmul.f32 %v3010, %v23
    %v3128 = vmul.f32 %v3015, %v23
    %v3129 = vmul.f32 %v3020, %v23
    %v3130 = vmul.f32 %v3025, %v23
    %v3131 = vmul.f32 %v3030, %v23
    %v3132 = vmul.f32 %v3035, %v23
    %v3133 = vmul.f32 %v3040, %v23
    %v3134 = vmul.f32 %v3045, %v23
    %v3135 = vmul.f32 %v3050, %v23
    %v3136 = vmul.f32 %v3055, %v23
    %v3137 = vmul.f32 %v3060, %v23
    %v3138 = vmul.f32 %v3065, %v23
    %v3139 = vmul.f32 %v3070, %v23
    %v3140 = vmul.f32 %v3075, %v23
    %v3141 = vmul.f32 %v3080, %v23
    %v3142 = vmul.f32 %v3085, %v23
    %v3143 = vmul.f32 %v3090, %v23
    %v3144 = vmul.f32 %v3095, %v23
    %v3145 = vmul.f32 %v3100, %v23
    %v3146 = vmul.f32 %v3105, %v23
    %v3147 = vmul.f32 %v3110, %v23
    %v3148 = vmul.f32 %v3115, %v23
    %3149 = vset.pattern.permute.xlu0 1
    %3150 = vperm.xlu0 %3149, %v2925
    %v3151 = vpop.permute.xlu0 %3150
    %3153 = vset.pattern.permute.xlu0 1
    %3154 = vperm.xlu0 %3153, %v2926
    %v3155 = vpop.permute.xlu0 %3154
    %3157 = vset.pattern.permute.xlu0 1
    %3158 = vperm.xlu0 %3157, %v2927
    %v3159 = vpop.permute.xlu0 %3158
    %3161 = vset.pattern.permute.xlu0 1
    %3162 = vperm.xlu0 %3161, %v2928
    %v3163 = vpop.permute.xlu0 %3162
    %3165 = vset.pattern.permute.xlu0 1
    %3166 = vperm.xlu0 %3165, %v2929
    %v3167 = vpop.permute.xlu0 %3166
    %3169 = vset.pattern.permute.xlu0 1
    %3170 = vperm.xlu0 %3169, %v2930
    %v3171 = vpop.permute.xlu0 %3170
    %3173 = vset.pattern.permute.xlu0 1
    %3174 = vperm.xlu0 %3173, %v2931
    %v3175 = vpop.permute.xlu0 %3174
    %3177 = vset.pattern.permute.xlu0 1
    %3178 = vperm.xlu0 %3177, %v2932
    %v3179 = vpop.permute.xlu0 %3178
    %3181 = vset.pattern.permute.xlu0 1
    %3182 = vperm.xlu0 %3181, %v2933
    %v3183 = vpop.permute.xlu0 %3182
    %3185 = vset.pattern.permute.xlu0 1
    %3186 = vperm.xlu0 %3185, %v2934
    %v3187 = vpop.permute.xlu0 %3186
    %3189 = vset.pattern.permute.xlu0 1
    %3190 = vperm.xlu0 %3189, %v2935
    %v3191 = vpop.permute.xlu0 %3190
    %3193 = vset.pattern.permute.xlu0 1
    %3194 = vperm.xlu0 %3193, %v2936
    %v3195 = vpop.permute.xlu0 %3194
    %3197 = vset.pattern.permute.xlu0 1
    %3198 = vperm.xlu0 %3197, %v2937
    %v3199 = vpop.permute.xlu0 %3198
    %3201 = vset.pattern.permute.xlu0 1
    %3202 = vperm.xlu0 %3201, %v2938
    %v3203 = vpop.permute.xlu0 %3202
    %3205 = vset.pattern.permute.xlu0 1
    %3206 = vperm.xlu0 %3205, %v2939
    %v3207 = vpop.permute.xlu0 %3206
    %3209 = vset.pattern.permute.xlu0 1
    %3210 = vperm.xlu0 %3209, %v2940
    %v3211 = vpop.permute.xlu0 %3210
    %3213 = vset.pattern.permute.xlu0 1
    %3214 = vperm.xlu0 %3213, %v2941
    %v3215 = vpop.permute.xlu0 %3214
    %3217 = vset.pattern.permute.xlu0 1
    %3218 = vperm.xlu0 %3217, %v2942
    %v3219 = vpop.permute.xlu0 %3218
    %3221 = vset.pattern.permute.xlu0 1
    %3222 = vperm.xlu0 %3221, %v2943
    %v3223 = vpop.permute.xlu0 %3222
    %3225 = vset.pattern.permute.xlu0 1
    %3226 = vperm.xlu0 %3225, %v2944
    %v3227 = vpop.permute.xlu0 %3226
    %3229 = vset.pattern.permute.xlu0 1
    %3230 = vperm.xlu0 %3229, %v2945
    %v3231 = vpop.permute.xlu0 %3230
    %3233 = vset.pattern.permute.xlu0 1
    %3234 = vperm.xlu0 %3233, %v2946
    %v3235 = vpop.permute.xlu0 %3234
    %3237 = vset.pattern.permute.xlu0 1
    %3238 = vperm.xlu0 %3237, %v2947
    %v3239 = vpop.permute.xlu0 %3238
    %3241 = vset.pattern.permute.xlu0 1
    %3242 = vperm.xlu0 %3241, %v2948
    %v3243 = vpop.permute.xlu0 %3242
    %3245 = vset.pattern.permute.xlu0 1
    %3246 = vperm.xlu0 %3245, %v2949
    %v3247 = vpop.permute.xlu0 %3246
    %3249 = vset.pattern.permute.xlu0 1
    %3250 = vperm.xlu0 %3249, %v2950
    %v3251 = vpop.permute.xlu0 %3250
    %3253 = vset.pattern.permute.xlu0 1
    %3254 = vperm.xlu0 %3253, %v2951
    %v3255 = vpop.permute.xlu0 %3254
    %3257 = vset.pattern.permute.xlu0 1
    %3258 = vperm.xlu0 %3257, %v2952
    %v3259 = vpop.permute.xlu0 %3258
    %3261 = vset.pattern.permute.xlu0 1
    %3262 = vperm.xlu0 %3261, %v2953
    %v3263 = vpop.permute.xlu0 %3262
    %3265 = vset.pattern.permute.xlu0 1
    %3266 = vperm.xlu0 %3265, %v2954
    %v3267 = vpop.permute.xlu0 %3266
    %3269 = vset.pattern.permute.xlu0 1
    %3270 = vperm.xlu0 %3269, %v2955
    %v3271 = vpop.permute.xlu0 %3270
    %3273 = vset.pattern.permute.xlu0 1
    %3274 = vperm.xlu0 %3273, %v2956
    %v3275 = vpop.permute.xlu0 %3274
    %v3277 = vmul.f32 %v3151, %v28
    %v3278 = vmul.f32 %v3155, %v28
    %v3279 = vmul.f32 %v3159, %v28
    %v3280 = vmul.f32 %v3163, %v28
    %v3281 = vmul.f32 %v3167, %v28
    %v3282 = vmul.f32 %v3171, %v28
    %v3283 = vmul.f32 %v3175, %v28
    %v3284 = vmul.f32 %v3179, %v28
    %v3285 = vmul.f32 %v3183, %v28
    %v3286 = vmul.f32 %v3187, %v28
    %v3287 = vmul.f32 %v3191, %v28
    %v3288 = vmul.f32 %v3195, %v28
    %v3289 = vmul.f32 %v3199, %v28
    %v3290 = vmul.f32 %v3203, %v28
    %v3291 = vmul.f32 %v3207, %v28
    %v3292 = vmul.f32 %v3211, %v28
    %v3293 = vmul.f32 %v3215, %v28
    %v3294 = vmul.f32 %v3219, %v28
    %v3295 = vmul.f32 %v3223, %v28
    %v3296 = vmul.f32 %v3227, %v28
    %v3297 = vmul.f32 %v3231, %v28
    %v3298 = vmul.f32 %v3235, %v28
    %v3299 = vmul.f32 %v3239, %v28
    %v3300 = vmul.f32 %v3243, %v28
    %v3301 = vmul.f32 %v3247, %v28
    %v3302 = vmul.f32 %v3251, %v28
    %v3303 = vmul.f32 %v3255, %v28
    %v3304 = vmul.f32 %v3259, %v28
    %v3305 = vmul.f32 %v3263, %v28
    %v3306 = vmul.f32 %v3267, %v28
    %v3307 = vmul.f32 %v3271, %v28
    %v3308 = vmul.f32 %v3275, %v28
    %v3309 = vadd.f32 %v3117, %v3277
    %v3310 = vadd.f32 %v3118, %v3278
    %v3311 = vadd.f32 %v3119, %v3279
    %v3312 = vadd.f32 %v3120, %v3280
    %v3313 = vadd.f32 %v3121, %v3281
    %v3314 = vadd.f32 %v3122, %v3282
    %v3315 = vadd.f32 %v3123, %v3283
    %v3316 = vadd.f32 %v3124, %v3284
    %v3317 = vadd.f32 %v3125, %v3285
    %v3318 = vadd.f32 %v3126, %v3286
    %v3319 = vadd.f32 %v3127, %v3287
    %v3320 = vadd.f32 %v3128, %v3288
    %v3321 = vadd.f32 %v3129, %v3289
    %v3322 = vadd.f32 %v3130, %v3290
    %v3323 = vadd.f32 %v3131, %v3291
    %v3324 = vadd.f32 %v3132, %v3292
    %v3325 = vadd.f32 %v3133, %v3293
    %v3326 = vadd.f32 %v3134, %v3294
    %v3327 = vadd.f32 %v3135, %v3295
    %v3328 = vadd.f32 %v3136, %v3296
    %v3329 = vadd.f32 %v3137, %v3297
    %v3330 = vadd.f32 %v3138, %v3298
    %v3331 = vadd.f32 %v3139, %v3299
    %v3332 = vadd.f32 %v3140, %v3300
    %v3333 = vadd.f32 %v3141, %v3301
    %v3334 = vadd.f32 %v3142, %v3302
    %v3335 = vadd.f32 %v3143, %v3303
    %v3336 = vadd.f32 %v3144, %v3304
    %v3337 = vadd.f32 %v3145, %v3305
    %v3338 = vadd.f32 %v3146, %v3306
    %v3339 = vadd.f32 %v3147, %v3307
    %v3340 = vadd.f32 %v3148, %v3308
    %3341 = vset.pattern.permute.xlu0 2
    %3342 = vperm.xlu0 %3341, %v2925
    %v3343 = vpop.permute.xlu0 %3342
    %3345 = vset.pattern.permute.xlu0 2
    %3346 = vperm.xlu0 %3345, %v2926
    %v3347 = vpop.permute.xlu0 %3346
    %3349 = vset.pattern.permute.xlu0 2
    %3350 = vperm.xlu0 %3349, %v2927
    %v3351 = vpop.permute.xlu0 %3350
    %3353 = vset.pattern.permute.xlu0 2
    %3354 = vperm.xlu0 %3353, %v2928
    %v3355 = vpop.permute.xlu0 %3354
    %3357 = vset.pattern.permute.xlu0 2
    %3358 = vperm.xlu0 %3357, %v2929
    %v3359 = vpop.permute.xlu0 %3358
    %3361 = vset.pattern.permute.xlu0 2
    %3362 = vperm.xlu0 %3361, %v2930
    %v3363 = vpop.permute.xlu0 %3362
    %3365 = vset.pattern.permute.xlu0 2
    %3366 = vperm.xlu0 %3365, %v2931
    %v3367 = vpop.permute.xlu0 %3366
    %3369 = vset.pattern.permute.xlu0 2
    %3370 = vperm.xlu0 %3369, %v2932
    %v3371 = vpop.permute.xlu0 %3370
    %3373 = vset.pattern.permute.xlu0 2
    %3374 = vperm.xlu0 %3373, %v2933
    %v3375 = vpop.permute.xlu0 %3374
    %3377 = vset.pattern.permute.xlu0 2
    %3378 = vperm.xlu0 %3377, %v2934
    %v3379 = vpop.permute.xlu0 %3378
    %3381 = vset.pattern.permute.xlu0 2
    %3382 = vperm.xlu0 %3381, %v2935
    %v3383 = vpop.permute.xlu0 %3382
    %3385 = vset.pattern.permute.xlu0 2
    %3386 = vperm.xlu0 %3385, %v2936
    %v3387 = vpop.permute.xlu0 %3386
    %3389 = vset.pattern.permute.xlu0 2
    %3390 = vperm.xlu0 %3389, %v2937
    %v3391 = vpop.permute.xlu0 %3390
    %3393 = vset.pattern.permute.xlu0 2
    %3394 = vperm.xlu0 %3393, %v2938
    %v3395 = vpop.permute.xlu0 %3394
    %3397 = vset.pattern.permute.xlu0 2
    %3398 = vperm.xlu0 %3397, %v2939
    %v3399 = vpop.permute.xlu0 %3398
    %3401 = vset.pattern.permute.xlu0 2
    %3402 = vperm.xlu0 %3401, %v2940
    %v3403 = vpop.permute.xlu0 %3402
    %3405 = vset.pattern.permute.xlu0 2
    %3406 = vperm.xlu0 %3405, %v2941
    %v3407 = vpop.permute.xlu0 %3406
    %3409 = vset.pattern.permute.xlu0 2
    %3410 = vperm.xlu0 %3409, %v2942
    %v3411 = vpop.permute.xlu0 %3410
    %3413 = vset.pattern.permute.xlu0 2
    %3414 = vperm.xlu0 %3413, %v2943
    %v3415 = vpop.permute.xlu0 %3414
    %3417 = vset.pattern.permute.xlu0 2
    %3418 = vperm.xlu0 %3417, %v2944
    %v3419 = vpop.permute.xlu0 %3418
    %3421 = vset.pattern.permute.xlu0 2
    %3422 = vperm.xlu0 %3421, %v2945
    %v3423 = vpop.permute.xlu0 %3422
    %3425 = vset.pattern.permute.xlu0 2
    %3426 = vperm.xlu0 %3425, %v2946
    %v3427 = vpop.permute.xlu0 %3426
    %3429 = vset.pattern.permute.xlu0 2
    %3430 = vperm.xlu0 %3429, %v2947
    %v3431 = vpop.permute.xlu0 %3430
    %3433 = vset.pattern.permute.xlu0 2
    %3434 = vperm.xlu0 %3433, %v2948
    %v3435 = vpop.permute.xlu0 %3434
    %3437 = vset.pattern.permute.xlu0 2
    %3438 = vperm.xlu0 %3437, %v2949
    %v3439 = vpop.permute.xlu0 %3438
    %3441 = vset.pattern.permute.xlu0 2
    %3442 = vperm.xlu0 %3441, %v2950
    %v3443 = vpop.permute.xlu0 %3442
    %3445 = vset.pattern.permute.xlu0 2
    %3446 = vperm.xlu0 %3445, %v2951
    %v3447 = vpop.permute.xlu0 %3446
    %3449 = vset.pattern.permute.xlu0 2
    %3450 = vperm.xlu0 %3449, %v2952
    %v3451 = vpop.permute.xlu0 %3450
    %3453 = vset.pattern.permute.xlu0 2
    %3454 = vperm.xlu0 %3453, %v2953
    %v3455 = vpop.permute.xlu0 %3454
    %3457 = vset.pattern.permute.xlu0 2
    %3458 = vperm.xlu0 %3457, %v2954
    %v3459 = vpop.permute.xlu0 %3458
    %3461 = vset.pattern.permute.xlu0 2
    %3462 = vperm.xlu0 %3461, %v2955
    %v3463 = vpop.permute.xlu0 %3462
    %3465 = vset.pattern.permute.xlu0 2
    %3466 = vperm.xlu0 %3465, %v2956
    %v3467 = vpop.permute.xlu0 %3466
    %v3469 = vmul.f32 %v3343, %v31
    %v3470 = vmul.f32 %v3347, %v31
    %v3471 = vmul.f32 %v3351, %v31
    %v3472 = vmul.f32 %v3355, %v31
    %v3473 = vmul.f32 %v3359, %v31
    %v3474 = vmul.f32 %v3363, %v31
    %v3475 = vmul.f32 %v3367, %v31
    %v3476 = vmul.f32 %v3371, %v31
    %v3477 = vmul.f32 %v3375, %v31
    %v3478 = vmul.f32 %v3379, %v31
    %v3479 = vmul.f32 %v3383, %v31
    %v3480 = vmul.f32 %v3387, %v31
    %v3481 = vmul.f32 %v3391, %v31
    %v3482 = vmul.f32 %v3395, %v31
    %v3483 = vmul.f32 %v3399, %v31
    %v3484 = vmul.f32 %v3403, %v31
    %v3485 = vmul.f32 %v3407, %v31
    %v3486 = vmul.f32 %v3411, %v31
    %v3487 = vmul.f32 %v3415, %v31
    %v3488 = vmul.f32 %v3419, %v31
    %v3489 = vmul.f32 %v3423, %v31
    %v3490 = vmul.f32 %v3427, %v31
    %v3491 = vmul.f32 %v3431, %v31
    %v3492 = vmul.f32 %v3435, %v31
    %v3493 = vmul.f32 %v3439, %v31
    %v3494 = vmul.f32 %v3443, %v31
    %v3495 = vmul.f32 %v3447, %v31
    %v3496 = vmul.f32 %v3451, %v31
    %v3497 = vmul.f32 %v3455, %v31
    %v3498 = vmul.f32 %v3459, %v31
    %v3499 = vmul.f32 %v3463, %v31
    %v3500 = vmul.f32 %v3467, %v31
    %v3501 = vadd.f32 %v3309, %v3469
    %v3502 = vadd.f32 %v3310, %v3470
    %v3503 = vadd.f32 %v3311, %v3471
    %v3504 = vadd.f32 %v3312, %v3472
    %v3505 = vadd.f32 %v3313, %v3473
    %v3506 = vadd.f32 %v3314, %v3474
    %v3507 = vadd.f32 %v3315, %v3475
    %v3508 = vadd.f32 %v3316, %v3476
    %v3509 = vadd.f32 %v3317, %v3477
    %v3510 = vadd.f32 %v3318, %v3478
    %v3511 = vadd.f32 %v3319, %v3479
    %v3512 = vadd.f32 %v3320, %v3480
    %v3513 = vadd.f32 %v3321, %v3481
    %v3514 = vadd.f32 %v3322, %v3482
    %v3515 = vadd.f32 %v3323, %v3483
    %v3516 = vadd.f32 %v3324, %v3484
    %v3517 = vadd.f32 %v3325, %v3485
    %v3518 = vadd.f32 %v3326, %v3486
    %v3519 = vadd.f32 %v3327, %v3487
    %v3520 = vadd.f32 %v3328, %v3488
    %v3521 = vadd.f32 %v3329, %v3489
    %v3522 = vadd.f32 %v3330, %v3490
    %v3523 = vadd.f32 %v3331, %v3491
    %v3524 = vadd.f32 %v3332, %v3492
    %v3525 = vadd.f32 %v3333, %v3493
    %v3526 = vadd.f32 %v3334, %v3494
    %v3527 = vadd.f32 %v3335, %v3495
    %v3528 = vadd.f32 %v3336, %v3496
    %v3529 = vadd.f32 %v3337, %v3497
    %v3530 = vadd.f32 %v3338, %v3498
    %v3531 = vadd.f32 %v3339, %v3499
    %v3532 = vadd.f32 %v3340, %v3500
    %v3565 = vrot.slane %v3501, 5
    %v3566 = vrot.slane %v3502, 5
    %v3567 = vrot.slane %v3503, 5
    %v3568 = vrot.slane %v3504, 5
    %v3569 = vrot.slane %v3505, 5
    %v3570 = vrot.slane %v3506, 5
    %v3571 = vrot.slane %v3507, 5
    %v3572 = vrot.slane %v3508, 5
    %v3573 = vrot.slane %v3509, 5
    %v3574 = vrot.slane %v3510, 5
    %v3575 = vrot.slane %v3511, 5
    %v3576 = vrot.slane %v3512, 5
    %v3577 = vrot.slane %v3513, 5
    %v3578 = vrot.slane %v3514, 5
    %v3579 = vrot.slane %v3515, 5
    %v3580 = vrot.slane %v3516, 5
    %v3581 = vrot.slane %v3517, 5
    %v3582 = vrot.slane %v3518, 5
    %v3583 = vrot.slane %v3519, 5
    %v3584 = vrot.slane %v3520, 5
    %v3585 = vrot.slane %v3521, 5
    %v3586 = vrot.slane %v3522, 5
    %v3587 = vrot.slane %v3523, 5
    %v3588 = vrot.slane %v3524, 5
    %v3589 = vrot.slane %v3525, 5
    %v3590 = vrot.slane %v3526, 5
    %v3591 = vrot.slane %v3527, 5
    %v3592 = vrot.slane %v3528, 5
    %v3593 = vrot.slane %v3529, 5
    %v3594 = vrot.slane %v3530, 5
    %v3595 = vrot.slane %v3531, 5
    %v3596 = vrot.slane %v3532, 5
    %v3629 = vmul.f32 %v1944, %v3565
    %v3630 = vmul.f32 %v1945, %v3566
    %v3631 = vmul.f32 %v1946, %v3567
    %v3632 = vmul.f32 %v1947, %v3568
    %v3633 = vmul.f32 %v1948, %v3569
    %v3634 = vmul.f32 %v1949, %v3570
    %v3635 = vmul.f32 %v1950, %v3571
    %v3636 = vmul.f32 %v1951, %v3572
    %v3637 = vmul.f32 %v1952, %v3573
    %v3638 = vmul.f32 %v1953, %v3574
    %v3639 = vmul.f32 %v1954, %v3575
    %v3640 = vmul.f32 %v1955, %v3576
    %v3641 = vmul.f32 %v1956, %v3577
    %v3642 = vmul.f32 %v1957, %v3578
    %v3643 = vmul.f32 %v1958, %v3579
    %v3644 = vmul.f32 %v1959, %v3580
    %v3645 = vmul.f32 %v1960, %v3581
    %v3646 = vmul.f32 %v1961, %v3582
    %v3647 = vmul.f32 %v1962, %v3583
    %v3648 = vmul.f32 %v1963, %v3584
    %v3649 = vmul.f32 %v1964, %v3585
    %v3650 = vmul.f32 %v1965, %v3586
    %v3651 = vmul.f32 %v1966, %v3587
    %v3652 = vmul.f32 %v1967, %v3588
    %v3653 = vmul.f32 %v1968, %v3589
    %v3654 = vmul.f32 %v1969, %v3590
    %v3655 = vmul.f32 %v1970, %v3591
    %v3656 = vmul.f32 %v1971, %v3592
    %v3657 = vmul.f32 %v1972, %v3593
    %v3658 = vmul.f32 %v1973, %v3594
    %v3659 = vmul.f32 %v1974, %v3595
    %v3660 = vmul.f32 %v1975, %v3596
    %v3661 = vpack.c.bf16 %v3629, %v3629
    %v3662 = vpack.c.bf16 %v3630, %v3630
    %v3663 = vpack.c.bf16 %v3631, %v3631
    %v3664 = vpack.c.bf16 %v3632, %v3632
    %v3665 = vpack.c.bf16 %v3633, %v3633
    %v3666 = vpack.c.bf16 %v3634, %v3634
    %v3667 = vpack.c.bf16 %v3635, %v3635
    %v3668 = vpack.c.bf16 %v3636, %v3636
    %v3669 = vpack.c.bf16 %v3637, %v3637
    %v3670 = vpack.c.bf16 %v3638, %v3638
    %v3671 = vpack.c.bf16 %v3639, %v3639
    %v3672 = vpack.c.bf16 %v3640, %v3640
    %v3673 = vpack.c.bf16 %v3641, %v3641
    %v3674 = vpack.c.bf16 %v3642, %v3642
    %v3675 = vpack.c.bf16 %v3643, %v3643
    %v3676 = vpack.c.bf16 %v3644, %v3644
    %v3677 = vpack.c.bf16 %v3645, %v3645
    %v3678 = vpack.c.bf16 %v3646, %v3646
    %v3679 = vpack.c.bf16 %v3647, %v3647
    %v3680 = vpack.c.bf16 %v3648, %v3648
    %v3681 = vpack.c.bf16 %v3649, %v3649
    %v3682 = vpack.c.bf16 %v3650, %v3650
    %v3683 = vpack.c.bf16 %v3651, %v3651
    %v3684 = vpack.c.bf16 %v3652, %v3652
    %v3685 = vpack.c.bf16 %v3653, %v3653
    %v3686 = vpack.c.bf16 %v3654, %v3654
    %v3687 = vpack.c.bf16 %v3655, %v3655
    %v3688 = vpack.c.bf16 %v3656, %v3656
    %v3689 = vpack.c.bf16 %v3657, %v3657
    %v3690 = vpack.c.bf16 %v3658, %v3658
    %v3691 = vpack.c.bf16 %v3659, %v3659
    %v3692 = vpack.c.bf16 %v3660, %v3660
    %v3725 = vunpack.c.l.b16 %v3661
    %v3726 = vunpack.c.l.b16 %v3662
    %v3727 = vunpack.c.l.b16 %v3663
    %v3728 = vunpack.c.l.b16 %v3664
    %v3729 = vunpack.c.l.b16 %v3665
    %v3730 = vunpack.c.l.b16 %v3666
    %v3731 = vunpack.c.l.b16 %v3667
    %v3732 = vunpack.c.l.b16 %v3668
    %v3733 = vunpack.c.l.b16 %v3669
    %v3734 = vunpack.c.l.b16 %v3670
    %v3735 = vunpack.c.l.b16 %v3671
    %v3736 = vunpack.c.l.b16 %v3672
    %v3737 = vunpack.c.l.b16 %v3673
    %v3738 = vunpack.c.l.b16 %v3674
    %v3739 = vunpack.c.l.b16 %v3675
    %v3740 = vunpack.c.l.b16 %v3676
    %v3741 = vunpack.c.l.b16 %v3677
    %v3742 = vunpack.c.l.b16 %v3678
    %v3743 = vunpack.c.l.b16 %v3679
    %v3744 = vunpack.c.l.b16 %v3680
    %v3745 = vunpack.c.l.b16 %v3681
    %v3746 = vunpack.c.l.b16 %v3682
    %v3747 = vunpack.c.l.b16 %v3683
    %v3748 = vunpack.c.l.b16 %v3684
    %v3749 = vunpack.c.l.b16 %v3685
    %v3750 = vunpack.c.l.b16 %v3686
    %v3751 = vunpack.c.l.b16 %v3687
    %v3752 = vunpack.c.l.b16 %v3688
    %v3753 = vunpack.c.l.b16 %v3689
    %v3754 = vunpack.c.l.b16 %v3690
    %v3755 = vunpack.c.l.b16 %v3691
    %v3756 = vunpack.c.l.b16 %v3692
    %v3757 = vrot.slane %v3725, 3
    %v3758 = vrot.slane %v3726, 2
    %v3759 = vsel %vm836, %v3758, %v3757
    %v3760 = vrot.slane %v3727, 1
    %v3761 = vsel %vm839, %v3760, %v3759
    %v3762 = vsel %vm842, %v3728, %v3761
    %v3763 = vrot.slane %v3729, 7
    %v3764 = vsel %vm845, %v3763, %v3762
    %v3765 = vrot.slane %v3730, 6
    %v3766 = vsel %vm848, %v3765, %v3764
    %v3767 = vrot.slane %v3731, 5
    %v3768 = vsel %vm851, %v3767, %v3766
    %v3769 = vrot.slane %v3732, 4
    %v3770 = vsel %vm854, %v3769, %v3768
    %v3771 = vrot.slane %v3733, 3
    %v3772 = vrot.slane %v3734, 2
    %v3773 = vsel %vm836, %v3772, %v3771
    %v3774 = vrot.slane %v3735, 1
    %v3775 = vsel %vm839, %v3774, %v3773
    %v3776 = vsel %vm842, %v3736, %v3775
    %v3777 = vrot.slane %v3737, 7
    %v3778 = vsel %vm845, %v3777, %v3776
    %v3779 = vrot.slane %v3738, 6
    %v3780 = vsel %vm848, %v3779, %v3778
    %v3781 = vrot.slane %v3739, 5
    %v3782 = vsel %vm851, %v3781, %v3780
    %v3783 = vrot.slane %v3740, 4
    %v3784 = vsel %vm854, %v3783, %v3782
    %v3785 = vrot.slane %v3741, 3
    %v3786 = vrot.slane %v3742, 2
    %v3787 = vsel %vm836, %v3786, %v3785
    %v3788 = vrot.slane %v3743, 1
    %v3789 = vsel %vm839, %v3788, %v3787
    %v3790 = vsel %vm842, %v3744, %v3789
    %v3791 = vrot.slane %v3745, 7
    %v3792 = vsel %vm845, %v3791, %v3790
    %v3793 = vrot.slane %v3746, 6
    %v3794 = vsel %vm848, %v3793, %v3792
    %v3795 = vrot.slane %v3747, 5
    %v3796 = vsel %vm851, %v3795, %v3794
    %v3797 = vrot.slane %v3748, 4
    %v3798 = vsel %vm854, %v3797, %v3796
    %v3799 = vrot.slane %v3749, 3
    %v3800 = vrot.slane %v3750, 2
    %v3801 = vsel %vm836, %v3800, %v3799
    %v3802 = vrot.slane %v3751, 1
    %v3803 = vsel %vm839, %v3802, %v3801
    %v3804 = vsel %vm842, %v3752, %v3803
    %v3805 = vrot.slane %v3753, 7
    %v3806 = vsel %vm845, %v3805, %v3804
    %v3807 = vrot.slane %v3754, 6
    %v3808 = vsel %vm848, %v3807, %v3806
    %v3809 = vrot.slane %v3755, 5
    %v3810 = vsel %vm851, %v3809, %v3808
    %v3811 = vrot.slane %v3756, 4
    %v3812 = vsel %vm854, %v3811, %v3810
    %v3813 = vpack.c.b16 %v3784, %v3770
    %v3814 = vpack.c.b16 %v3812, %v3798
    %v3816 = vsel %vm900, %v3813, 0
    %v3819 = vsel %vm900, %v3814, 0
    %3821 = vmatprep.subr.bf16.mxu0 0
    %3822 = vmatpush1.bf16.msra.mxu0 %v912
    %3823 = vmatprep.subr.bf16.mxu0 0
    %3824 = vmatpush1.bf16.msra.mxu0 0
    %3825 = vmatprep.subr.bf16.mxu0 0
    %3826 = vmatpush1.bf16.msra.mxu0 0
    %3827 = vmatprep.subr.bf16.mxu0 0
    %3828 = vmatpush1.bf16.msra.mxu0 0
    %3829 = vmatprep.subr.bf16.mxu0 0
    %3830 = vmatpush1.bf16.msra.mxu0 0
    %3831 = vmatprep.subr.bf16.mxu0 0
    %3832 = vmatpush1.bf16.msra.mxu0 0
    %3833 = vmatprep.subr.bf16.mxu0 0
    %3834 = vmatpush1.bf16.msra.mxu0 0
    %3835 = vmatprep.subr.bf16.mxu0 0
    %3836 = vmatpush1.bf16.msra.mxu0 0
    %3837 = vmatprep.subr.bf16.mxu0 0
    %3838 = vmatpush1.bf16.msra.mxu0 0
    %3839 = vmatprep.subr.bf16.mxu0 0
    %3840 = vmatpush1.bf16.msra.mxu0 0
    %3841 = vmatprep.subr.bf16.mxu0 0
    %3842 = vmatpush1.bf16.msra.mxu0 0
    %3843 = vmatprep.subr.bf16.mxu0 0
    %3844 = vmatpush1.bf16.msra.mxu0 0
    %3845 = vmatprep.subr.bf16.mxu0 0
    %3846 = vmatpush1.bf16.msra.mxu0 0
    %3847 = vmatprep.subr.bf16.mxu0 0
    %3848 = vmatpush1.bf16.msra.mxu0 0
    %3849 = vmatprep.subr.bf16.mxu0 0
    %3850 = vmatpush1.bf16.msra.mxu0 0
    %3851 = vmatprep.subr.bf16.mxu0 0
    %3852 = vmatpush1.bf16.msra.mxu0 0
    %3853 = vmatprep.mubr.bf16.mxu0 0
    %3854 = vmatmul.mubr.bf16.gmra.mrb[0].mxu0 %v3816
    %v3855 = vpop.f32.mrb[0].mxu0
    %v3856 = vadd.f32 0.0, %v3855
    %v3857 = vpop.f32.mrb[0].mxu0
    %v3858 = vpop.f32.mrb[0].mxu0
    %v3859 = vadd.f32 0.0, %v3858
    %v3860 = vpop.f32.mrb[0].mxu0
    %3861 = vmatprep.mubr.bf16.mxu0 0
    %3862 = vmatmul.mubr.bf16.gmra.mrb[0].mxu0 %v3819
    %v3863 = vpop.f32.mrb[0].mxu0
    %v3864 = vadd.f32 0.0, %v3863
    %v3865 = vpop.f32.mrb[0].mxu0
    %v3866 = vpop.f32.mrb[0].mxu0
    %v3867 = vadd.f32 0.0, %v3866
    %v3868 = vpop.f32.mrb[0].mxu0
    %3869 = vdwg.mxu0
    %v3870 = vmax.f32 %v2921, %v3856
    %v3871 = vmax.f32 %v2922, %v3859
    %v3872 = vmax.f32 %v2923, %v3864
    %v3873 = vmax.f32 %v2924, %v3867
    %v3874 = vld [vmem:[%s0] sm:$0x4]
    %v3875 = vld [vmem:[%s0 + $0x4] sm:$0x4]
    %v3876 = vld [vmem:[%s0 + $0x8] sm:$0x4]
    %v3877 = vld [vmem:[%s0 + $0xc] sm:$0x4]
    %v3878 = vld [vmem:[%s0 + $0x10] sm:$0x4]
    %v3879 = vld [vmem:[%s0 + $0x14] sm:$0x4]
    %v3880 = vld [vmem:[%s0 + $0x18] sm:$0x4]
    %v3881 = vld [vmem:[%s0 + $0x1c] sm:$0x4]
    %v3882 = vld [vmem:[%s0 + $0x20] sm:$0x4]
    %v3883 = vld [vmem:[%s0 + $0x24] sm:$0x4]
    %v3884 = vld [vmem:[%s0 + $0x28] sm:$0x4]
    %v3885 = vld [vmem:[%s0 + $0x2c] sm:$0x4]
    %v3886 = vld [vmem:[%s0 + $0x30] sm:$0x4]
    %v3887 = vld [vmem:[%s0 + $0x34] sm:$0x4]
    %v3888 = vld [vmem:[%s0 + $0x38] sm:$0x4]
    %v3889 = vld [vmem:[%s0 + $0x3c] sm:$0x4]
    %v3890 = vld [vmem:[%s0 + $0x40] sm:$0x4]
    %v3891 = vld [vmem:[%s0 + $0x44] sm:$0x4]
    %v3892 = vld [vmem:[%s0 + $0x48] sm:$0x4]
    %v3893 = vld [vmem:[%s0 + $0x4c] sm:$0x4]
    %v3894 = vld [vmem:[%s0 + $0x50] sm:$0x4]
    %v3895 = vld [vmem:[%s0 + $0x54] sm:$0x4]
    %v3896 = vld [vmem:[%s0 + $0x58] sm:$0x4]
    %v3897 = vld [vmem:[%s0 + $0x5c] sm:$0x4]
    %v3898 = vld [vmem:[%s0 + $0x60] sm:$0x4]
    %v3899 = vld [vmem:[%s0 + $0x64] sm:$0x4]
    %v3900 = vld [vmem:[%s0 + $0x68] sm:$0x4]
    %v3901 = vld [vmem:[%s0 + $0x6c] sm:$0x4]
    %v3902 = vld [vmem:[%s0 + $0x70] sm:$0x4]
    %v3903 = vld [vmem:[%s0 + $0x74] sm:$0x4]
    %v3904 = vld [vmem:[%s0 + $0x78] sm:$0x4]
    %v3905 = vld [vmem:[%s0 + $0x7c] sm:$0x4]
    %v3906 = vunpack.c.l.bf16 %v3874
    %v3907 = vunpack.c.l.bf16 %v3875
    %v3908 = vunpack.c.l.bf16 %v3876
    %v3909 = vunpack.c.l.bf16 %v3877
    %v3910 = vunpack.c.l.bf16 %v3878
    %v3911 = vunpack.c.l.bf16 %v3879
    %v3912 = vunpack.c.l.bf16 %v3880
    %v3913 = vunpack.c.l.bf16 %v3881
    %v3914 = vunpack.c.l.bf16 %v3882
    %v3915 = vunpack.c.l.bf16 %v3883
    %v3916 = vunpack.c.l.bf16 %v3884
    %v3917 = vunpack.c.l.bf16 %v3885
    %v3918 = vunpack.c.l.bf16 %v3886
    %v3919 = vunpack.c.l.bf16 %v3887
    %v3920 = vunpack.c.l.bf16 %v3888
    %v3921 = vunpack.c.l.bf16 %v3889
    %v3922 = vunpack.c.l.bf16 %v3890
    %v3923 = vunpack.c.l.bf16 %v3891
    %v3924 = vunpack.c.l.bf16 %v3892
    %v3925 = vunpack.c.l.bf16 %v3893
    %v3926 = vunpack.c.l.bf16 %v3894
    %v3927 = vunpack.c.l.bf16 %v3895
    %v3928 = vunpack.c.l.bf16 %v3896
    %v3929 = vunpack.c.l.bf16 %v3897
    %v3930 = vunpack.c.l.bf16 %v3898
    %v3931 = vunpack.c.l.bf16 %v3899
    %v3932 = vunpack.c.l.bf16 %v3900
    %v3933 = vunpack.c.l.bf16 %v3901
    %v3934 = vunpack.c.l.bf16 %v3902
    %v3935 = vunpack.c.l.bf16 %v3903
    %v3936 = vunpack.c.l.bf16 %v3904
    %v3937 = vunpack.c.l.bf16 %v3905
    %v3938 = vld [vmem:[%s1 + $0x4] sm:$0x1]
    %v3939 = vld [vmem:[%s1 + $0xc] sm:$0x1]
    %v3940 = vld [vmem:[%s1 + $0x14] sm:$0x1]
    %v3941 = vld [vmem:[%s1 + $0x1c] sm:$0x1]
    %v3942 = vld [vmem:[%s1 + $0x24] sm:$0x1]
    %v3943 = vld [vmem:[%s1 + $0x2c] sm:$0x1]
    %v3944 = vld [vmem:[%s1 + $0x34] sm:$0x1]
    %v3945 = vld [vmem:[%s1 + $0x3c] sm:$0x1]
    %v3946 = vld [vmem:[%s1 + $0x44] sm:$0x1]
    %v3947 = vld [vmem:[%s1 + $0x4c] sm:$0x1]
    %v3948 = vld [vmem:[%s1 + $0x54] sm:$0x1]
    %v3949 = vld [vmem:[%s1 + $0x5c] sm:$0x1]
    %v3950 = vld [vmem:[%s1 + $0x64] sm:$0x1]
    %v3951 = vld [vmem:[%s1 + $0x6c] sm:$0x1]
    %v3952 = vld [vmem:[%s1 + $0x74] sm:$0x1]
    %v3953 = vld [vmem:[%s1 + $0x7c] sm:$0x1]
    %v3954 = vld [vmem:[%s1 + $0x84] sm:$0x1]
    %v3955 = vld [vmem:[%s1 + $0x8c] sm:$0x1]
    %v3956 = vld [vmem:[%s1 + $0x94] sm:$0x1]
    %v3957 = vld [vmem:[%s1 + $0x9c] sm:$0x1]
    %v3958 = vld [vmem:[%s1 + $0xa4] sm:$0x1]
    %v3959 = vld [vmem:[%s1 + $0xac] sm:$0x1]
    %v3960 = vld [vmem:[%s1 + $0xb4] sm:$0x1]
    %v3961 = vld [vmem:[%s1 + $0xbc] sm:$0x1]
    %v3962 = vld [vmem:[%s1 + $0xc4] sm:$0x1]
    %v3963 = vld [vmem:[%s1 + $0xcc] sm:$0x1]
    %v3964 = vld [vmem:[%s1 + $0xd4] sm:$0x1]
    %v3965 = vld [vmem:[%s1 + $0xdc] sm:$0x1]
    %v3966 = vld [vmem:[%s1 + $0xe4] sm:$0x1]
    %v3967 = vld [vmem:[%s1 + $0xec] sm:$0x1]
    %v3968 = vld [vmem:[%s1 + $0xf4] sm:$0x1]
    %v3969 = vld [vmem:[%s1 + $0xfc] sm:$0x1]
    %3971 = vset.pattern.permute.xlu0 0
    %3972 = vperm.xlu0 %3971, %v3938
    %v3973 = vpop.permute.xlu0 %3972
    %3976 = vset.pattern.permute.xlu0 0
    %3977 = vperm.xlu0 %3976, %v3939
    %v3978 = vpop.permute.xlu0 %3977
    %3981 = vset.pattern.permute.xlu0 0
    %3982 = vperm.xlu0 %3981, %v3940
    %v3983 = vpop.permute.xlu0 %3982
    %3986 = vset.pattern.permute.xlu0 0
    %3987 = vperm.xlu0 %3986, %v3941
    %v3988 = vpop.permute.xlu0 %3987
    %3991 = vset.pattern.permute.xlu0 0
    %3992 = vperm.xlu0 %3991, %v3942
    %v3993 = vpop.permute.xlu0 %3992
    %3996 = vset.pattern.permute.xlu0 0
    %3997 = vperm.xlu0 %3996, %v3943
    %v3998 = vpop.permute.xlu0 %3997
    %4001 = vset.pattern.permute.xlu0 0
    %4002 = vperm.xlu0 %4001, %v3944
    %v4003 = vpop.permute.xlu0 %4002
    %4006 = vset.pattern.permute.xlu0 0
    %4007 = vperm.xlu0 %4006, %v3945
    %v4008 = vpop.permute.xlu0 %4007
    %4011 = vset.pattern.permute.xlu0 0
    %4012 = vperm.xlu0 %4011, %v3946
    %v4013 = vpop.permute.xlu0 %4012
    %4016 = vset.pattern.permute.xlu0 0
    %4017 = vperm.xlu0 %4016, %v3947
    %v4018 = vpop.permute.xlu0 %4017
    %4021 = vset.pattern.permute.xlu0 0
    %4022 = vperm.xlu0 %4021, %v3948
    %v4023 = vpop.permute.xlu0 %4022
    %4026 = vset.pattern.permute.xlu0 0
    %4027 = vperm.xlu0 %4026, %v3949
    %v4028 = vpop.permute.xlu0 %4027
    %4031 = vset.pattern.permute.xlu0 0
    %4032 = vperm.xlu0 %4031, %v3950
    %v4033 = vpop.permute.xlu0 %4032
    %4036 = vset.pattern.permute.xlu0 0
    %4037 = vperm.xlu0 %4036, %v3951
    %v4038 = vpop.permute.xlu0 %4037
    %4041 = vset.pattern.permute.xlu0 0
    %4042 = vperm.xlu0 %4041, %v3952
    %v4043 = vpop.permute.xlu0 %4042
    %4046 = vset.pattern.permute.xlu0 0
    %4047 = vperm.xlu0 %4046, %v3953
    %v4048 = vpop.permute.xlu0 %4047
    %4051 = vset.pattern.permute.xlu0 0
    %4052 = vperm.xlu0 %4051, %v3954
    %v4053 = vpop.permute.xlu0 %4052
    %4056 = vset.pattern.permute.xlu0 0
    %4057 = vperm.xlu0 %4056, %v3955
    %v4058 = vpop.permute.xlu0 %4057
    %4061 = vset.pattern.permute.xlu0 0
    %4062 = vperm.xlu0 %4061, %v3956
    %v4063 = vpop.permute.xlu0 %4062
    %4066 = vset.pattern.permute.xlu0 0
    %4067 = vperm.xlu0 %4066, %v3957
    %v4068 = vpop.permute.xlu0 %4067
    %4071 = vset.pattern.permute.xlu0 0
    %4072 = vperm.xlu0 %4071, %v3958
    %v4073 = vpop.permute.xlu0 %4072
    %4076 = vset.pattern.permute.xlu0 0
    %4077 = vperm.xlu0 %4076, %v3959
    %v4078 = vpop.permute.xlu0 %4077
    %4081 = vset.pattern.permute.xlu0 0
    %4082 = vperm.xlu0 %4081, %v3960
    %v4083 = vpop.permute.xlu0 %4082
    %4086 = vset.pattern.permute.xlu0 0
    %4087 = vperm.xlu0 %4086, %v3961
    %v4088 = vpop.permute.xlu0 %4087
    %4091 = vset.pattern.permute.xlu0 0
    %4092 = vperm.xlu0 %4091, %v3962
    %v4093 = vpop.permute.xlu0 %4092
    %4096 = vset.pattern.permute.xlu0 0
    %4097 = vperm.xlu0 %4096, %v3963
    %v4098 = vpop.permute.xlu0 %4097
    %4101 = vset.pattern.permute.xlu0 0
    %4102 = vperm.xlu0 %4101, %v3964
    %v4103 = vpop.permute.xlu0 %4102
    %4106 = vset.pattern.permute.xlu0 0
    %4107 = vperm.xlu0 %4106, %v3965
    %v4108 = vpop.permute.xlu0 %4107
    %4111 = vset.pattern.permute.xlu0 0
    %4112 = vperm.xlu0 %4111, %v3966
    %v4113 = vpop.permute.xlu0 %4112
    %4116 = vset.pattern.permute.xlu0 0
    %4117 = vperm.xlu0 %4116, %v3967
    %v4118 = vpop.permute.xlu0 %4117
    %4121 = vset.pattern.permute.xlu0 0
    %4122 = vperm.xlu0 %4121, %v3968
    %v4123 = vpop.permute.xlu0 %4122
    %4126 = vset.pattern.permute.xlu0 0
    %4127 = vperm.xlu0 %4126, %v3969
    %v4128 = vpop.permute.xlu0 %4127
    %v4130 = vmul.f32 %v3973, %v23
    %v4131 = vmul.f32 %v3978, %v23
    %v4132 = vmul.f32 %v3983, %v23
    %v4133 = vmul.f32 %v3988, %v23
    %v4134 = vmul.f32 %v3993, %v23
    %v4135 = vmul.f32 %v3998, %v23
    %v4136 = vmul.f32 %v4003, %v23
    %v4137 = vmul.f32 %v4008, %v23
    %v4138 = vmul.f32 %v4013, %v23
    %v4139 = vmul.f32 %v4018, %v23
    %v4140 = vmul.f32 %v4023, %v23
    %v4141 = vmul.f32 %v4028, %v23
    %v4142 = vmul.f32 %v4033, %v23
    %v4143 = vmul.f32 %v4038, %v23
    %v4144 = vmul.f32 %v4043, %v23
    %v4145 = vmul.f32 %v4048, %v23
    %v4146 = vmul.f32 %v4053, %v23
    %v4147 = vmul.f32 %v4058, %v23
    %v4148 = vmul.f32 %v4063, %v23
    %v4149 = vmul.f32 %v4068, %v23
    %v4150 = vmul.f32 %v4073, %v23
    %v4151 = vmul.f32 %v4078, %v23
    %v4152 = vmul.f32 %v4083, %v23
    %v4153 = vmul.f32 %v4088, %v23
    %v4154 = vmul.f32 %v4093, %v23
    %v4155 = vmul.f32 %v4098, %v23
    %v4156 = vmul.f32 %v4103, %v23
    %v4157 = vmul.f32 %v4108, %v23
    %v4158 = vmul.f32 %v4113, %v23
    %v4159 = vmul.f32 %v4118, %v23
    %v4160 = vmul.f32 %v4123, %v23
    %v4161 = vmul.f32 %v4128, %v23
    %4162 = vset.pattern.permute.xlu0 1
    %4163 = vperm.xlu0 %4162, %v3938
    %v4164 = vpop.permute.xlu0 %4163
    %4166 = vset.pattern.permute.xlu0 1
    %4167 = vperm.xlu0 %4166, %v3939
    %v4168 = vpop.permute.xlu0 %4167
    %4170 = vset.pattern.permute.xlu0 1
    %4171 = vperm.xlu0 %4170, %v3940
    %v4172 = vpop.permute.xlu0 %4171
    %4174 = vset.pattern.permute.xlu0 1
    %4175 = vperm.xlu0 %4174, %v3941
    %v4176 = vpop.permute.xlu0 %4175
    %4178 = vset.pattern.permute.xlu0 1
    %4179 = vperm.xlu0 %4178, %v3942
    %v4180 = vpop.permute.xlu0 %4179
    %4182 = vset.pattern.permute.xlu0 1
    %4183 = vperm.xlu0 %4182, %v3943
    %v4184 = vpop.permute.xlu0 %4183
    %4186 = vset.pattern.permute.xlu0 1
    %4187 = vperm.xlu0 %4186, %v3944
    %v4188 = vpop.permute.xlu0 %4187
    %4190 = vset.pattern.permute.xlu0 1
    %4191 = vperm.xlu0 %4190, %v3945
    %v4192 = vpop.permute.xlu0 %4191
    %4194 = vset.pattern.permute.xlu0 1
    %4195 = vperm.xlu0 %4194, %v3946
    %v4196 = vpop.permute.xlu0 %4195
    %4198 = vset.pattern.permute.xlu0 1
    %4199 = vperm.xlu0 %4198, %v3947
    %v4200 = vpop.permute.xlu0 %4199
    %4202 = vset.pattern.permute.xlu0 1
    %4203 = vperm.xlu0 %4202, %v3948
    %v4204 = vpop.permute.xlu0 %4203
    %4206 = vset.pattern.permute.xlu0 1
    %4207 = vperm.xlu0 %4206, %v3949
    %v4208 = vpop.permute.xlu0 %4207
    %4210 = vset.pattern.permute.xlu0 1
    %4211 = vperm.xlu0 %4210, %v3950
    %v4212 = vpop.permute.xlu0 %4211
    %4214 = vset.pattern.permute.xlu0 1
    %4215 = vperm.xlu0 %4214, %v3951
    %v4216 = vpop.permute.xlu0 %4215
    %4218 = vset.pattern.permute.xlu0 1
    %4219 = vperm.xlu0 %4218, %v3952
    %v4220 = vpop.permute.xlu0 %4219
    %4222 = vset.pattern.permute.xlu0 1
    %4223 = vperm.xlu0 %4222, %v3953
    %v4224 = vpop.permute.xlu0 %4223
    %4226 = vset.pattern.permute.xlu0 1
    %4227 = vperm.xlu0 %4226, %v3954
    %v4228 = vpop.permute.xlu0 %4227
    %4230 = vset.pattern.permute.xlu0 1
    %4231 = vperm.xlu0 %4230, %v3955
    %v4232 = vpop.permute.xlu0 %4231
    %4234 = vset.pattern.permute.xlu0 1
    %4235 = vperm.xlu0 %4234, %v3956
    %v4236 = vpop.permute.xlu0 %4235
    %4238 = vset.pattern.permute.xlu0 1
    %4239 = vperm.xlu0 %4238, %v3957
    %v4240 = vpop.permute.xlu0 %4239
    %4242 = vset.pattern.permute.xlu0 1
    %4243 = vperm.xlu0 %4242, %v3958
    %v4244 = vpop.permute.xlu0 %4243
    %4246 = vset.pattern.permute.xlu0 1
    %4247 = vperm.xlu0 %4246, %v3959
    %v4248 = vpop.permute.xlu0 %4247
    %4250 = vset.pattern.permute.xlu0 1
    %4251 = vperm.xlu0 %4250, %v3960
    %v4252 = vpop.permute.xlu0 %4251
    %4254 = vset.pattern.permute.xlu0 1
    %4255 = vperm.xlu0 %4254, %v3961
    %v4256 = vpop.permute.xlu0 %4255
    %4258 = vset.pattern.permute.xlu0 1
    %4259 = vperm.xlu0 %4258, %v3962
    %v4260 = vpop.permute.xlu0 %4259
    %4262 = vset.pattern.permute.xlu0 1
    %4263 = vperm.xlu0 %4262, %v3963
    %v4264 = vpop.permute.xlu0 %4263
    %4266 = vset.pattern.permute.xlu0 1
    %4267 = vperm.xlu0 %4266, %v3964
    %v4268 = vpop.permute.xlu0 %4267
    %4270 = vset.pattern.permute.xlu0 1
    %4271 = vperm.xlu0 %4270, %v3965
    %v4272 = vpop.permute.xlu0 %4271
    %4274 = vset.pattern.permute.xlu0 1
    %4275 = vperm.xlu0 %4274, %v3966
    %v4276 = vpop.permute.xlu0 %4275
    %4278 = vset.pattern.permute.xlu0 1
    %4279 = vperm.xlu0 %4278, %v3967
    %v4280 = vpop.permute.xlu0 %4279
    %4282 = vset.pattern.permute.xlu0 1
    %4283 = vperm.xlu0 %4282, %v3968
    %v4284 = vpop.permute.xlu0 %4283
    %4286 = vset.pattern.permute.xlu0 1
    %4287 = vperm.xlu0 %4286, %v3969
    %v4288 = vpop.permute.xlu0 %4287
    %v4290 = vmul.f32 %v4164, %v28
    %v4291 = vmul.f32 %v4168, %v28
    %v4292 = vmul.f32 %v4172, %v28
    %v4293 = vmul.f32 %v4176, %v28
    %v4294 = vmul.f32 %v4180, %v28
    %v4295 = vmul.f32 %v4184, %v28
    %v4296 = vmul.f32 %v4188, %v28
    %v4297 = vmul.f32 %v4192, %v28
    %v4298 = vmul.f32 %v4196, %v28
    %v4299 = vmul.f32 %v4200, %v28
    %v4300 = vmul.f32 %v4204, %v28
    %v4301 = vmul.f32 %v4208, %v28
    %v4302 = vmul.f32 %v4212, %v28
    %v4303 = vmul.f32 %v4216, %v28
    %v4304 = vmul.f32 %v4220, %v28
    %v4305 = vmul.f32 %v4224, %v28
    %v4306 = vmul.f32 %v4228, %v28
    %v4307 = vmul.f32 %v4232, %v28
    %v4308 = vmul.f32 %v4236, %v28
    %v4309 = vmul.f32 %v4240, %v28
    %v4310 = vmul.f32 %v4244, %v28
    %v4311 = vmul.f32 %v4248, %v28
    %v4312 = vmul.f32 %v4252, %v28
    %v4313 = vmul.f32 %v4256, %v28
    %v4314 = vmul.f32 %v4260, %v28
    %v4315 = vmul.f32 %v4264, %v28
    %v4316 = vmul.f32 %v4268, %v28
    %v4317 = vmul.f32 %v4272, %v28
    %v4318 = vmul.f32 %v4276, %v28
    %v4319 = vmul.f32 %v4280, %v28
    %v4320 = vmul.f32 %v4284, %v28
    %v4321 = vmul.f32 %v4288, %v28
    %v4322 = vadd.f32 %v4130, %v4290
    %v4323 = vadd.f32 %v4131, %v4291
    %v4324 = vadd.f32 %v4132, %v4292
    %v4325 = vadd.f32 %v4133, %v4293
    %v4326 = vadd.f32 %v4134, %v4294
    %v4327 = vadd.f32 %v4135, %v4295
    %v4328 = vadd.f32 %v4136, %v4296
    %v4329 = vadd.f32 %v4137, %v4297
    %v4330 = vadd.f32 %v4138, %v4298
    %v4331 = vadd.f32 %v4139, %v4299
    %v4332 = vadd.f32 %v4140, %v4300
    %v4333 = vadd.f32 %v4141, %v4301
    %v4334 = vadd.f32 %v4142, %v4302
    %v4335 = vadd.f32 %v4143, %v4303
    %v4336 = vadd.f32 %v4144, %v4304
    %v4337 = vadd.f32 %v4145, %v4305
    %v4338 = vadd.f32 %v4146, %v4306
    %v4339 = vadd.f32 %v4147, %v4307
    %v4340 = vadd.f32 %v4148, %v4308
    %v4341 = vadd.f32 %v4149, %v4309
    %v4342 = vadd.f32 %v4150, %v4310
    %v4343 = vadd.f32 %v4151, %v4311
    %v4344 = vadd.f32 %v4152, %v4312
    %v4345 = vadd.f32 %v4153, %v4313
    %v4346 = vadd.f32 %v4154, %v4314
    %v4347 = vadd.f32 %v4155, %v4315
    %v4348 = vadd.f32 %v4156, %v4316
    %v4349 = vadd.f32 %v4157, %v4317
    %v4350 = vadd.f32 %v4158, %v4318
    %v4351 = vadd.f32 %v4159, %v4319
    %v4352 = vadd.f32 %v4160, %v4320
    %v4353 = vadd.f32 %v4161, %v4321
    %4354 = vset.pattern.permute.xlu0 2
    %4355 = vperm.xlu0 %4354, %v3938
    %v4356 = vpop.permute.xlu0 %4355
    %4358 = vset.pattern.permute.xlu0 2
    %4359 = vperm.xlu0 %4358, %v3939
    %v4360 = vpop.permute.xlu0 %4359
    %4362 = vset.pattern.permute.xlu0 2
    %4363 = vperm.xlu0 %4362, %v3940
    %v4364 = vpop.permute.xlu0 %4363
    %4366 = vset.pattern.permute.xlu0 2
    %4367 = vperm.xlu0 %4366, %v3941
    %v4368 = vpop.permute.xlu0 %4367
    %4370 = vset.pattern.permute.xlu0 2
    %4371 = vperm.xlu0 %4370, %v3942
    %v4372 = vpop.permute.xlu0 %4371
    %4374 = vset.pattern.permute.xlu0 2
    %4375 = vperm.xlu0 %4374, %v3943
    %v4376 = vpop.permute.xlu0 %4375
    %4378 = vset.pattern.permute.xlu0 2
    %4379 = vperm.xlu0 %4378, %v3944
    %v4380 = vpop.permute.xlu0 %4379
    %4382 = vset.pattern.permute.xlu0 2
    %4383 = vperm.xlu0 %4382, %v3945
    %v4384 = vpop.permute.xlu0 %4383
    %4386 = vset.pattern.permute.xlu0 2
    %4387 = vperm.xlu0 %4386, %v3946
    %v4388 = vpop.permute.xlu0 %4387
    %4390 = vset.pattern.permute.xlu0 2
    %4391 = vperm.xlu0 %4390, %v3947
    %v4392 = vpop.permute.xlu0 %4391
    %4394 = vset.pattern.permute.xlu0 2
    %4395 = vperm.xlu0 %4394, %v3948
    %v4396 = vpop.permute.xlu0 %4395
    %4398 = vset.pattern.permute.xlu0 2
    %4399 = vperm.xlu0 %4398, %v3949
    %v4400 = vpop.permute.xlu0 %4399
    %4402 = vset.pattern.permute.xlu0 2
    %4403 = vperm.xlu0 %4402, %v3950
    %v4404 = vpop.permute.xlu0 %4403
    %4406 = vset.pattern.permute.xlu0 2
    %4407 = vperm.xlu0 %4406, %v3951
    %v4408 = vpop.permute.xlu0 %4407
    %4410 = vset.pattern.permute.xlu0 2
    %4411 = vperm.xlu0 %4410, %v3952
    %v4412 = vpop.permute.xlu0 %4411
    %4414 = vset.pattern.permute.xlu0 2
    %4415 = vperm.xlu0 %4414, %v3953
    %v4416 = vpop.permute.xlu0 %4415
    %4418 = vset.pattern.permute.xlu0 2
    %4419 = vperm.xlu0 %4418, %v3954
    %v4420 = vpop.permute.xlu0 %4419
    %4422 = vset.pattern.permute.xlu0 2
    %4423 = vperm.xlu0 %4422, %v3955
    %v4424 = vpop.permute.xlu0 %4423
    %4426 = vset.pattern.permute.xlu0 2
    %4427 = vperm.xlu0 %4426, %v3956
    %v4428 = vpop.permute.xlu0 %4427
    %4430 = vset.pattern.permute.xlu0 2
    %4431 = vperm.xlu0 %4430, %v3957
    %v4432 = vpop.permute.xlu0 %4431
    %4434 = vset.pattern.permute.xlu0 2
    %4435 = vperm.xlu0 %4434, %v3958
    %v4436 = vpop.permute.xlu0 %4435
    %4438 = vset.pattern.permute.xlu0 2
    %4439 = vperm.xlu0 %4438, %v3959
    %v4440 = vpop.permute.xlu0 %4439
    %4442 = vset.pattern.permute.xlu0 2
    %4443 = vperm.xlu0 %4442, %v3960
    %v4444 = vpop.permute.xlu0 %4443
    %4446 = vset.pattern.permute.xlu0 2
    %4447 = vperm.xlu0 %4446, %v3961
    %v4448 = vpop.permute.xlu0 %4447
    %4450 = vset.pattern.permute.xlu0 2
    %4451 = vperm.xlu0 %4450, %v3962
    %v4452 = vpop.permute.xlu0 %4451
    %4454 = vset.pattern.permute.xlu0 2
    %4455 = vperm.xlu0 %4454, %v3963
    %v4456 = vpop.permute.xlu0 %4455
    %4458 = vset.pattern.permute.xlu0 2
    %4459 = vperm.xlu0 %4458, %v3964
    %v4460 = vpop.permute.xlu0 %4459
    %4462 = vset.pattern.permute.xlu0 2
    %4463 = vperm.xlu0 %4462, %v3965
    %v4464 = vpop.permute.xlu0 %4463
    %4466 = vset.pattern.permute.xlu0 2
    %4467 = vperm.xlu0 %4466, %v3966
    %v4468 = vpop.permute.xlu0 %4467
    %4470 = vset.pattern.permute.xlu0 2
    %4471 = vperm.xlu0 %4470, %v3967
    %v4472 = vpop.permute.xlu0 %4471
    %4474 = vset.pattern.permute.xlu0 2
    %4475 = vperm.xlu0 %4474, %v3968
    %v4476 = vpop.permute.xlu0 %4475
    %4478 = vset.pattern.permute.xlu0 2
    %4479 = vperm.xlu0 %4478, %v3969
    %v4480 = vpop.permute.xlu0 %4479
    %v4482 = vmul.f32 %v4356, %v31
    %v4483 = vmul.f32 %v4360, %v31
    %v4484 = vmul.f32 %v4364, %v31
    %v4485 = vmul.f32 %v4368, %v31
    %v4486 = vmul.f32 %v4372, %v31
    %v4487 = vmul.f32 %v4376, %v31
    %v4488 = vmul.f32 %v4380, %v31
    %v4489 = vmul.f32 %v4384, %v31
    %v4490 = vmul.f32 %v4388, %v31
    %v4491 = vmul.f32 %v4392, %v31
    %v4492 = vmul.f32 %v4396, %v31
    %v4493 = vmul.f32 %v4400, %v31
    %v4494 = vmul.f32 %v4404, %v31
    %v4495 = vmul.f32 %v4408, %v31
    %v4496 = vmul.f32 %v4412, %v31
    %v4497 = vmul.f32 %v4416, %v31
    %v4498 = vmul.f32 %v4420, %v31
    %v4499 = vmul.f32 %v4424, %v31
    %v4500 = vmul.f32 %v4428, %v31
    %v4501 = vmul.f32 %v4432, %v31
    %v4502 = vmul.f32 %v4436, %v31
    %v4503 = vmul.f32 %v4440, %v31
    %v4504 = vmul.f32 %v4444, %v31
    %v4505 = vmul.f32 %v4448, %v31
    %v4506 = vmul.f32 %v4452, %v31
    %v4507 = vmul.f32 %v4456, %v31
    %v4508 = vmul.f32 %v4460, %v31
    %v4509 = vmul.f32 %v4464, %v31
    %v4510 = vmul.f32 %v4468, %v31
    %v4511 = vmul.f32 %v4472, %v31
    %v4512 = vmul.f32 %v4476, %v31
    %v4513 = vmul.f32 %v4480, %v31
    %v4514 = vadd.f32 %v4322, %v4482
    %v4515 = vadd.f32 %v4323, %v4483
    %v4516 = vadd.f32 %v4324, %v4484
    %v4517 = vadd.f32 %v4325, %v4485
    %v4518 = vadd.f32 %v4326, %v4486
    %v4519 = vadd.f32 %v4327, %v4487
    %v4520 = vadd.f32 %v4328, %v4488
    %v4521 = vadd.f32 %v4329, %v4489
    %v4522 = vadd.f32 %v4330, %v4490
    %v4523 = vadd.f32 %v4331, %v4491
    %v4524 = vadd.f32 %v4332, %v4492
    %v4525 = vadd.f32 %v4333, %v4493
    %v4526 = vadd.f32 %v4334, %v4494
    %v4527 = vadd.f32 %v4335, %v4495
    %v4528 = vadd.f32 %v4336, %v4496
    %v4529 = vadd.f32 %v4337, %v4497
    %v4530 = vadd.f32 %v4338, %v4498
    %v4531 = vadd.f32 %v4339, %v4499
    %v4532 = vadd.f32 %v4340, %v4500
    %v4533 = vadd.f32 %v4341, %v4501
    %v4534 = vadd.f32 %v4342, %v4502
    %v4535 = vadd.f32 %v4343, %v4503
    %v4536 = vadd.f32 %v4344, %v4504
    %v4537 = vadd.f32 %v4345, %v4505
    %v4538 = vadd.f32 %v4346, %v4506
    %v4539 = vadd.f32 %v4347, %v4507
    %v4540 = vadd.f32 %v4348, %v4508
    %v4541 = vadd.f32 %v4349, %v4509
    %v4542 = vadd.f32 %v4350, %v4510
    %v4543 = vadd.f32 %v4351, %v4511
    %v4544 = vadd.f32 %v4352, %v4512
    %v4545 = vadd.f32 %v4353, %v4513
    %v4578 = vrot.slane %v4514, 4
    %v4579 = vrot.slane %v4515, 4
    %v4580 = vrot.slane %v4516, 4
    %v4581 = vrot.slane %v4517, 4
    %v4582 = vrot.slane %v4518, 4
    %v4583 = vrot.slane %v4519, 4
    %v4584 = vrot.slane %v4520, 4
    %v4585 = vrot.slane %v4521, 4
    %v4586 = vrot.slane %v4522, 4
    %v4587 = vrot.slane %v4523, 4
    %v4588 = vrot.slane %v4524, 4
    %v4589 = vrot.slane %v4525, 4
    %v4590 = vrot.slane %v4526, 4
    %v4591 = vrot.slane %v4527, 4
    %v4592 = vrot.slane %v4528, 4
    %v4593 = vrot.slane %v4529, 4
    %v4594 = vrot.slane %v4530, 4
    %v4595 = vrot.slane %v4531, 4
    %v4596 = vrot.slane %v4532, 4
    %v4597 = vrot.slane %v4533, 4
    %v4598 = vrot.slane %v4534, 4
    %v4599 = vrot.slane %v4535, 4
    %v4600 = vrot.slane %v4536, 4
    %v4601 = vrot.slane %v4537, 4
    %v4602 = vrot.slane %v4538, 4
    %v4603 = vrot.slane %v4539, 4
    %v4604 = vrot.slane %v4540, 4
    %v4605 = vrot.slane %v4541, 4
    %v4606 = vrot.slane %v4542, 4
    %v4607 = vrot.slane %v4543, 4
    %v4608 = vrot.slane %v4544, 4
    %v4609 = vrot.slane %v4545, 4
    %v4642 = vmul.f32 %v3906, %v4578
    %v4643 = vmul.f32 %v3907, %v4579
    %v4644 = vmul.f32 %v3908, %v4580
    %v4645 = vmul.f32 %v3909, %v4581
    %v4646 = vmul.f32 %v3910, %v4582
    %v4647 = vmul.f32 %v3911, %v4583
    %v4648 = vmul.f32 %v3912, %v4584
    %v4649 = vmul.f32 %v3913, %v4585
    %v4650 = vmul.f32 %v3914, %v4586
    %v4651 = vmul.f32 %v3915, %v4587
    %v4652 = vmul.f32 %v3916, %v4588
    %v4653 = vmul.f32 %v3917, %v4589
    %v4654 = vmul.f32 %v3918, %v4590
    %v4655 = vmul.f32 %v3919, %v4591
    %v4656 = vmul.f32 %v3920, %v4592
    %v4657 = vmul.f32 %v3921, %v4593
    %v4658 = vmul.f32 %v3922, %v4594
    %v4659 = vmul.f32 %v3923, %v4595
    %v4660 = vmul.f32 %v3924, %v4596
    %v4661 = vmul.f32 %v3925, %v4597
    %v4662 = vmul.f32 %v3926, %v4598
    %v4663 = vmul.f32 %v3927, %v4599
    %v4664 = vmul.f32 %v3928, %v4600
    %v4665 = vmul.f32 %v3929, %v4601
    %v4666 = vmul.f32 %v3930, %v4602
    %v4667 = vmul.f32 %v3931, %v4603
    %v4668 = vmul.f32 %v3932, %v4604
    %v4669 = vmul.f32 %v3933, %v4605
    %v4670 = vmul.f32 %v3934, %v4606
    %v4671 = vmul.f32 %v3935, %v4607
    %v4672 = vmul.f32 %v3936, %v4608
    %v4673 = vmul.f32 %v3937, %v4609
    %v4674 = vpack.c.bf16 %v4642, %v4642
    %v4675 = vpack.c.bf16 %v4643, %v4643
    %v4676 = vpack.c.bf16 %v4644, %v4644
    %v4677 = vpack.c.bf16 %v4645, %v4645
    %v4678 = vpack.c.bf16 %v4646, %v4646
    %v4679 = vpack.c.bf16 %v4647, %v4647
    %v4680 = vpack.c.bf16 %v4648, %v4648
    %v4681 = vpack.c.bf16 %v4649, %v4649
    %v4682 = vpack.c.bf16 %v4650, %v4650
    %v4683 = vpack.c.bf16 %v4651, %v4651
    %v4684 = vpack.c.bf16 %v4652, %v4652
    %v4685 = vpack.c.bf16 %v4653, %v4653
    %v4686 = vpack.c.bf16 %v4654, %v4654
    %v4687 = vpack.c.bf16 %v4655, %v4655
    %v4688 = vpack.c.bf16 %v4656, %v4656
    %v4689 = vpack.c.bf16 %v4657, %v4657
    %v4690 = vpack.c.bf16 %v4658, %v4658
    %v4691 = vpack.c.bf16 %v4659, %v4659
    %v4692 = vpack.c.bf16 %v4660, %v4660
    %v4693 = vpack.c.bf16 %v4661, %v4661
    %v4694 = vpack.c.bf16 %v4662, %v4662
    %v4695 = vpack.c.bf16 %v4663, %v4663
    %v4696 = vpack.c.bf16 %v4664, %v4664
    %v4697 = vpack.c.bf16 %v4665, %v4665
    %v4698 = vpack.c.bf16 %v4666, %v4666
    %v4699 = vpack.c.bf16 %v4667, %v4667
    %v4700 = vpack.c.bf16 %v4668, %v4668
    %v4701 = vpack.c.bf16 %v4669, %v4669
    %v4702 = vpack.c.bf16 %v4670, %v4670
    %v4703 = vpack.c.bf16 %v4671, %v4671
    %v4704 = vpack.c.bf16 %v4672, %v4672
    %v4705 = vpack.c.bf16 %v4673, %v4673
    %v4738 = vunpack.c.l.b16 %v4674
    %v4739 = vunpack.c.l.b16 %v4675
    %v4740 = vunpack.c.l.b16 %v4676
    %v4741 = vunpack.c.l.b16 %v4677
    %v4742 = vunpack.c.l.b16 %v4678
    %v4743 = vunpack.c.l.b16 %v4679
    %v4744 = vunpack.c.l.b16 %v4680
    %v4745 = vunpack.c.l.b16 %v4681
    %v4746 = vunpack.c.l.b16 %v4682
    %v4747 = vunpack.c.l.b16 %v4683
    %v4748 = vunpack.c.l.b16 %v4684
    %v4749 = vunpack.c.l.b16 %v4685
    %v4750 = vunpack.c.l.b16 %v4686
    %v4751 = vunpack.c.l.b16 %v4687
    %v4752 = vunpack.c.l.b16 %v4688
    %v4753 = vunpack.c.l.b16 %v4689
    %v4754 = vunpack.c.l.b16 %v4690
    %v4755 = vunpack.c.l.b16 %v4691
    %v4756 = vunpack.c.l.b16 %v4692
    %v4757 = vunpack.c.l.b16 %v4693
    %v4758 = vunpack.c.l.b16 %v4694
    %v4759 = vunpack.c.l.b16 %v4695
    %v4760 = vunpack.c.l.b16 %v4696
    %v4761 = vunpack.c.l.b16 %v4697
    %v4762 = vunpack.c.l.b16 %v4698
    %v4763 = vunpack.c.l.b16 %v4699
    %v4764 = vunpack.c.l.b16 %v4700
    %v4765 = vunpack.c.l.b16 %v4701
    %v4766 = vunpack.c.l.b16 %v4702
    %v4767 = vunpack.c.l.b16 %v4703
    %v4768 = vunpack.c.l.b16 %v4704
    %v4769 = vunpack.c.l.b16 %v4705
    %v4770 = vrot.slane %v4738, 4
    %v4771 = vrot.slane %v4739, 3
    %v4772 = vsel %vm836, %v4771, %v4770
    %v4773 = vrot.slane %v4740, 2
    %v4774 = vsel %vm839, %v4773, %v4772
    %v4775 = vrot.slane %v4741, 1
    %v4776 = vsel %vm842, %v4775, %v4774
    %v4777 = vsel %vm845, %v4742, %v4776
    %v4778 = vrot.slane %v4743, 7
    %v4779 = vsel %vm848, %v4778, %v4777
    %v4780 = vrot.slane %v4744, 6
    %v4781 = vsel %vm851, %v4780, %v4779
    %v4782 = vrot.slane %v4745, 5
    %v4783 = vsel %vm854, %v4782, %v4781
    %v4784 = vrot.slane %v4746, 4
    %v4785 = vrot.slane %v4747, 3
    %v4786 = vsel %vm836, %v4785, %v4784
    %v4787 = vrot.slane %v4748, 2
    %v4788 = vsel %vm839, %v4787, %v4786
    %v4789 = vrot.slane %v4749, 1
    %v4790 = vsel %vm842, %v4789, %v4788
    %v4791 = vsel %vm845, %v4750, %v4790
    %v4792 = vrot.slane %v4751, 7
    %v4793 = vsel %vm848, %v4792, %v4791
    %v4794 = vrot.slane %v4752, 6
    %v4795 = vsel %vm851, %v4794, %v4793
    %v4796 = vrot.slane %v4753, 5
    %v4797 = vsel %vm854, %v4796, %v4795
    %v4798 = vrot.slane %v4754, 4
    %v4799 = vrot.slane %v4755, 3
    %v4800 = vsel %vm836, %v4799, %v4798
    %v4801 = vrot.slane %v4756, 2
    %v4802 = vsel %vm839, %v4801, %v4800
    %v4803 = vrot.slane %v4757, 1
    %v4804 = vsel %vm842, %v4803, %v4802
    %v4805 = vsel %vm845, %v4758, %v4804
    %v4806 = vrot.slane %v4759, 7
    %v4807 = vsel %vm848, %v4806, %v4805
    %v4808 = vrot.slane %v4760, 6
    %v4809 = vsel %vm851, %v4808, %v4807
    %v4810 = vrot.slane %v4761, 5
    %v4811 = vsel %vm854, %v4810, %v4809
    %v4812 = vrot.slane %v4762, 4
    %v4813 = vrot.slane %v4763, 3
    %v4814 = vsel %vm836, %v4813, %v4812
    %v4815 = vrot.slane %v4764, 2
    %v4816 = vsel %vm839, %v4815, %v4814
    %v4817 = vrot.slane %v4765, 1
    %v4818 = vsel %vm842, %v4817, %v4816
    %v4819 = vsel %vm845, %v4766, %v4818
    %v4820 = vrot.slane %v4767, 7
    %v4821 = vsel %vm848, %v4820, %v4819
    %v4822 = vrot.slane %v4768, 6
    %v4823 = vsel %vm851, %v4822, %v4821
    %v4824 = vrot.slane %v4769, 5
    %v4825 = vsel %vm854, %v4824, %v4823
    %v4826 = vpack.c.b16 %v4797, %v4783
    %v4827 = vpack.c.b16 %v4825, %v4811
    %v4829 = vsel %vm900, %v4826, 0
    %v4832 = vsel %vm900, %v4827, 0
    %4834 = vmatprep.subr.bf16.mxu0 0
    %4835 = vmatpush1.bf16.msra.mxu0 %v912
    %4836 = vmatprep.subr.bf16.mxu0 0
    %4837 = vmatpush1.bf16.msra.mxu0 0
    %4838 = vmatprep.subr.bf16.mxu0 0
    %4839 = vmatpush1.bf16.msra.mxu0 0
    %4840 = vmatprep.subr.bf16.mxu0 0
    %4841 = vmatpush1.bf16.msra.mxu0 0
    %4842 = vmatprep.subr.bf16.mxu0 0
    %4843 = vmatpush1.bf16.msra.mxu0 0
    %4844 = vmatprep.subr.bf16.mxu0 0
    %4845 = vmatpush1.bf16.msra.mxu0 0
    %4846 = vmatprep.subr.bf16.mxu0 0
    %4847 = vmatpush1.bf16.msra.mxu0 0
    %4848 = vmatprep.subr.bf16.mxu0 0
    %4849 = vmatpush1.bf16.msra.mxu0 0
    %4850 = vmatprep.subr.bf16.mxu0 0
    %4851 = vmatpush1.bf16.msra.mxu0 0
    %4852 = vmatprep.subr.bf16.mxu0 0
    %4853 = vmatpush1.bf16.msra.mxu0 0
    %4854 = vmatprep.subr.bf16.mxu0 0
    %4855 = vmatpush1.bf16.msra.mxu0 0
    %4856 = vmatprep.subr.bf16.mxu0 0
    %4857 = vmatpush1.bf16.msra.mxu0 0
    %4858 = vmatprep.subr.bf16.mxu0 0
    %4859 = vmatpush1.bf16.msra.mxu0 0
    %4860 = vmatprep.subr.bf16.mxu0 0
    %4861 = vmatpush1.bf16.msra.mxu0 0
    %4862 = vmatprep.subr.bf16.mxu0 0
    %4863 = vmatpush1.bf16.msra.mxu0 0
    %4864 = vmatprep.subr.bf16.mxu0 0
    %4865 = vmatpush1.bf16.msra.mxu0 0
    %4866 = vmatprep.mubr.bf16.mxu0 0
    %4867 = vmatmul.mubr.bf16.gmra.mrb[0].mxu0 %v4829
    %v4868 = vpop.f32.mrb[0].mxu0
    %v4869 = vadd.f32 0.0, %v4868
    %v4870 = vpop.f32.mrb[0].mxu0
    %v4871 = vpop.f32.mrb[0].mxu0
    %v4872 = vadd.f32 0.0, %v4871
    %v4873 = vpop.f32.mrb[0].mxu0
    %4874 = vmatprep.mubr.bf16.mxu0 0
    %4875 = vmatmul.mubr.bf16.gmra.mrb[0].mxu0 %v4832
    %v4876 = vpop.f32.mrb[0].mxu0
    %v4877 = vadd.f32 0.0, %v4876
    %v4878 = vpop.f32.mrb[0].mxu0
    %v4879 = vpop.f32.mrb[0].mxu0
    %v4880 = vadd.f32 0.0, %v4879
    %v4881 = vpop.f32.mrb[0].mxu0
    %4882 = vdwg.mxu0
    %v4883 = vmax.f32 %v3870, %v4869
    %v4884 = vmax.f32 %v3871, %v4872
    %v4885 = vmax.f32 %v3872, %v4877
    %v4886 = vmax.f32 %v3873, %v4880
    %v4887 = vld [vmem:[%s1 + $0x5] sm:$0x1]
    %v4888 = vld [vmem:[%s1 + $0xd] sm:$0x1]
    %v4889 = vld [vmem:[%s1 + $0x15] sm:$0x1]
    %v4890 = vld [vmem:[%s1 + $0x1d] sm:$0x1]
    %v4891 = vld [vmem:[%s1 + $0x25] sm:$0x1]
    %v4892 = vld [vmem:[%s1 + $0x2d] sm:$0x1]
    %v4893 = vld [vmem:[%s1 + $0x35] sm:$0x1]
    %v4894 = vld [vmem:[%s1 + $0x3d] sm:$0x1]
    %v4895 = vld [vmem:[%s1 + $0x45] sm:$0x1]
    %v4896 = vld [vmem:[%s1 + $0x4d] sm:$0x1]
    %v4897 = vld [vmem:[%s1 + $0x55] sm:$0x1]
    %v4898 = vld [vmem:[%s1 + $0x5d] sm:$0x1]
    %v4899 = vld [vmem:[%s1 + $0x65] sm:$0x1]
    %v4900 = vld [vmem:[%s1 + $0x6d] sm:$0x1]
    %v4901 = vld [vmem:[%s1 + $0x75] sm:$0x1]
    %v4902 = vld [vmem:[%s1 + $0x7d] sm:$0x1]
    %v4903 = vld [vmem:[%s1 + $0x85] sm:$0x1]
    %v4904 = vld [vmem:[%s1 + $0x8d] sm:$0x1]
    %v4905 = vld [vmem:[%s1 + $0x95] sm:$0x1]
    %v4906 = vld [vmem:[%s1 + $0x9d] sm:$0x1]
    %v4907 = vld [vmem:[%s1 + $0xa5] sm:$0x1]
    %v4908 = vld [vmem:[%s1 + $0xad] sm:$0x1]
    %v4909 = vld [vmem:[%s1 + $0xb5] sm:$0x1]
    %v4910 = vld [vmem:[%s1 + $0xbd] sm:$0x1]
    %v4911 = vld [vmem:[%s1 + $0xc5] sm:$0x1]
    %v4912 = vld [vmem:[%s1 + $0xcd] sm:$0x1]
    %v4913 = vld [vmem:[%s1 + $0xd5] sm:$0x1]
    %v4914 = vld [vmem:[%s1 + $0xdd] sm:$0x1]
    %v4915 = vld [vmem:[%s1 + $0xe5] sm:$0x1]
    %v4916 = vld [vmem:[%s1 + $0xed] sm:$0x1]
    %v4917 = vld [vmem:[%s1 + $0xf5] sm:$0x1]
    %v4918 = vld [vmem:[%s1 + $0xfd] sm:$0x1]
    %4920 = vset.pattern.permute.xlu0 0
    %4921 = vperm.xlu0 %4920, %v4887
    %v4922 = vpop.permute.xlu0 %4921
    %4925 = vset.pattern.permute.xlu0 0
    %4926 = vperm.xlu0 %4925, %v4888
    %v4927 = vpop.permute.xlu0 %4926
    %4930 = vset.pattern.permute.xlu0 0
    %4931 = vperm.xlu0 %4930, %v4889
    %v4932 = vpop.permute.xlu0 %4931
    %4935 = vset.pattern.permute.xlu0 0
    %4936 = vperm.xlu0 %4935, %v4890
    %v4937 = vpop.permute.xlu0 %4936
    %4940 = vset.pattern.permute.xlu0 0
    %4941 = vperm.xlu0 %4940, %v4891
    %v4942 = vpop.permute.xlu0 %4941
    %4945 = vset.pattern.permute.xlu0 0
    %4946 = vperm.xlu0 %4945, %v4892
    %v4947 = vpop.permute.xlu0 %4946
    %4950 = vset.pattern.permute.xlu0 0
    %4951 = vperm.xlu0 %4950, %v4893
    %v4952 = vpop.permute.xlu0 %4951
    %4955 = vset.pattern.permute.xlu0 0
    %4956 = vperm.xlu0 %4955, %v4894
    %v4957 = vpop.permute.xlu0 %4956
    %4960 = vset.pattern.permute.xlu0 0
    %4961 = vperm.xlu0 %4960, %v4895
    %v4962 = vpop.permute.xlu0 %4961
    %4965 = vset.pattern.permute.xlu0 0
    %4966 = vperm.xlu0 %4965, %v4896
    %v4967 = vpop.permute.xlu0 %4966
    %4970 = vset.pattern.permute.xlu0 0
    %4971 = vperm.xlu0 %4970, %v4897
    %v4972 = vpop.permute.xlu0 %4971
    %4975 = vset.pattern.permute.xlu0 0
    %4976 = vperm.xlu0 %4975, %v4898
    %v4977 = vpop.permute.xlu0 %4976
    %4980 = vset.pattern.permute.xlu0 0
    %4981 = vperm.xlu0 %4980, %v4899
    %v4982 = vpop.permute.xlu0 %4981
    %4985 = vset.pattern.permute.xlu0 0
    %4986 = vperm.xlu0 %4985, %v4900
    %v4987 = vpop.permute.xlu0 %4986
    %4990 = vset.pattern.permute.xlu0 0
    %4991 = vperm.xlu0 %4990, %v4901
    %v4992 = vpop.permute.xlu0 %4991
    %4995 = vset.pattern.permute.xlu0 0
    %4996 = vperm.xlu0 %4995, %v4902
    %v4997 = vpop.permute.xlu0 %4996
    %5000 = vset.pattern.permute.xlu0 0
    %5001 = vperm.xlu0 %5000, %v4903
    %v5002 = vpop.permute.xlu0 %5001
    %5005 = vset.pattern.permute.xlu0 0
    %5006 = vperm.xlu0 %5005, %v4904
    %v5007 = vpop.permute.xlu0 %5006
    %5010 = vset.pattern.permute.xlu0 0
    %5011 = vperm.xlu0 %5010, %v4905
    %v5012 = vpop.permute.xlu0 %5011
    %5015 = vset.pattern.permute.xlu0 0
    %5016 = vperm.xlu0 %5015, %v4906
    %v5017 = vpop.permute.xlu0 %5016
    %5020 = vset.pattern.permute.xlu0 0
    %5021 = vperm.xlu0 %5020, %v4907
    %v5022 = vpop.permute.xlu0 %5021
    %5025 = vset.pattern.permute.xlu0 0
    %5026 = vperm.xlu0 %5025, %v4908
    %v5027 = vpop.permute.xlu0 %5026
    %5030 = vset.pattern.permute.xlu0 0
    %5031 = vperm.xlu0 %5030, %v4909
    %v5032 = vpop.permute.xlu0 %5031
    %5035 = vset.pattern.permute.xlu0 0
    %5036 = vperm.xlu0 %5035, %v4910
    %v5037 = vpop.permute.xlu0 %5036
    %5040 = vset.pattern.permute.xlu0 0
    %5041 = vperm.xlu0 %5040, %v4911
    %v5042 = vpop.permute.xlu0 %5041
    %5045 = vset.pattern.permute.xlu0 0
    %5046 = vperm.xlu0 %5045, %v4912
    %v5047 = vpop.permute.xlu0 %5046
    %5050 = vset.pattern.permute.xlu0 0
    %5051 = vperm.xlu0 %5050, %v4913
    %v5052 = vpop.permute.xlu0 %5051
    %5055 = vset.pattern.permute.xlu0 0
    %5056 = vperm.xlu0 %5055, %v4914
    %v5057 = vpop.permute.xlu0 %5056
    %5060 = vset.pattern.permute.xlu0 0
    %5061 = vperm.xlu0 %5060, %v4915
    %v5062 = vpop.permute.xlu0 %5061
    %5065 = vset.pattern.permute.xlu0 0
    %5066 = vperm.xlu0 %5065, %v4916
    %v5067 = vpop.permute.xlu0 %5066
    %5070 = vset.pattern.permute.xlu0 0
    %5071 = vperm.xlu0 %5070, %v4917
    %v5072 = vpop.permute.xlu0 %5071
    %5075 = vset.pattern.permute.xlu0 0
    %5076 = vperm.xlu0 %5075, %v4918
    %v5077 = vpop.permute.xlu0 %5076
    %v5079 = vmul.f32 %v4922, %v23
    %v5080 = vmul.f32 %v4927, %v23
    %v5081 = vmul.f32 %v4932, %v23
    %v5082 = vmul.f32 %v4937, %v23
    %v5083 = vmul.f32 %v4942, %v23
    %v5084 = vmul.f32 %v4947, %v23
    %v5085 = vmul.f32 %v4952, %v23
    %v5086 = vmul.f32 %v4957, %v23
    %v5087 = vmul.f32 %v4962, %v23
    %v5088 = vmul.f32 %v4967, %v23
    %v5089 = vmul.f32 %v4972, %v23
    %v5090 = vmul.f32 %v4977, %v23
    %v5091 = vmul.f32 %v4982, %v23
    %v5092 = vmul.f32 %v4987, %v23
    %v5093 = vmul.f32 %v4992, %v23
    %v5094 = vmul.f32 %v4997, %v23
    %v5095 = vmul.f32 %v5002, %v23
    %v5096 = vmul.f32 %v5007, %v23
    %v5097 = vmul.f32 %v5012, %v23
    %v5098 = vmul.f32 %v5017, %v23
    %v5099 = vmul.f32 %v5022, %v23
    %v5100 = vmul.f32 %v5027, %v23
    %v5101 = vmul.f32 %v5032, %v23
    %v5102 = vmul.f32 %v5037, %v23
    %v5103 = vmul.f32 %v5042, %v23
    %v5104 = vmul.f32 %v5047, %v23
    %v5105 = vmul.f32 %v5052, %v23
    %v5106 = vmul.f32 %v5057, %v23
    %v5107 = vmul.f32 %v5062, %v23
    %v5108 = vmul.f32 %v5067, %v23
    %v5109 = vmul.f32 %v5072, %v23
    %v5110 = vmul.f32 %v5077, %v23
    %5111 = vset.pattern.permute.xlu0 1
    %5112 = vperm.xlu0 %5111, %v4887
    %v5113 = vpop.permute.xlu0 %5112
    %5115 = vset.pattern.permute.xlu0 1
    %5116 = vperm.xlu0 %5115, %v4888
    %v5117 = vpop.permute.xlu0 %5116
    %5119 = vset.pattern.permute.xlu0 1
    %5120 = vperm.xlu0 %5119, %v4889
    %v5121 = vpop.permute.xlu0 %5120
    %5123 = vset.pattern.permute.xlu0 1
    %5124 = vperm.xlu0 %5123, %v4890
    %v5125 = vpop.permute.xlu0 %5124
    %5127 = vset.pattern.permute.xlu0 1
    %5128 = vperm.xlu0 %5127, %v4891
    %v5129 = vpop.permute.xlu0 %5128
    %5131 = vset.pattern.permute.xlu0 1
    %5132 = vperm.xlu0 %5131, %v4892
    %v5133 = vpop.permute.xlu0 %5132
    %5135 = vset.pattern.permute.xlu0 1
    %5136 = vperm.xlu0 %5135, %v4893
    %v5137 = vpop.permute.xlu0 %5136
    %5139 = vset.pattern.permute.xlu0 1
    %5140 = vperm.xlu0 %5139, %v4894
    %v5141 = vpop.permute.xlu0 %5140
    %5143 = vset.pattern.permute.xlu0 1
    %5144 = vperm.xlu0 %5143, %v4895
    %v5145 = vpop.permute.xlu0 %5144
    %5147 = vset.pattern.permute.xlu0 1
    %5148 = vperm.xlu0 %5147, %v4896
    %v5149 = vpop.permute.xlu0 %5148
    %5151 = vset.pattern.permute.xlu0 1
    %5152 = vperm.xlu0 %5151, %v4897
    %v5153 = vpop.permute.xlu0 %5152
    %5155 = vset.pattern.permute.xlu0 1
    %5156 = vperm.xlu0 %5155, %v4898
    %v5157 = vpop.permute.xlu0 %5156
    %5159 = vset.pattern.permute.xlu0 1
    %5160 = vperm.xlu0 %5159, %v4899
    %v5161 = vpop.permute.xlu0 %5160
    %5163 = vset.pattern.permute.xlu0 1
    %5164 = vperm.xlu0 %5163, %v4900
    %v5165 = vpop.permute.xlu0 %5164
    %5167 = vset.pattern.permute.xlu0 1
    %5168 = vperm.xlu0 %5167, %v4901
    %v5169 = vpop.permute.xlu0 %5168
    %5171 = vset.pattern.permute.xlu0 1
    %5172 = vperm.xlu0 %5171, %v4902
    %v5173 = vpop.permute.xlu0 %5172
    %5175 = vset.pattern.permute.xlu0 1
    %5176 = vperm.xlu0 %5175, %v4903
    %v5177 = vpop.permute.xlu0 %5176
    %5179 = vset.pattern.permute.xlu0 1
    %5180 = vperm.xlu0 %5179, %v4904
    %v5181 = vpop.permute.xlu0 %5180
    %5183 = vset.pattern.permute.xlu0 1
    %5184 = vperm.xlu0 %5183, %v4905
    %v5185 = vpop.permute.xlu0 %5184
    %5187 = vset.pattern.permute.xlu0 1
    %5188 = vperm.xlu0 %5187, %v4906
    %v5189 = vpop.permute.xlu0 %5188
    %5191 = vset.pattern.permute.xlu0 1
    %5192 = vperm.xlu0 %5191, %v4907
    %v5193 = vpop.permute.xlu0 %5192
    %5195 = vset.pattern.permute.xlu0 1
    %5196 = vperm.xlu0 %5195, %v4908
    %v5197 = vpop.permute.xlu0 %5196
    %5199 = vset.pattern.permute.xlu0 1
    %5200 = vperm.xlu0 %5199, %v4909
    %v5201 = vpop.permute.xlu0 %5200
    %5203 = vset.pattern.permute.xlu0 1
    %5204 = vperm.xlu0 %5203, %v4910
    %v5205 = vpop.permute.xlu0 %5204
    %5207 = vset.pattern.permute.xlu0 1
    %5208 = vperm.xlu0 %5207, %v4911
    %v5209 = vpop.permute.xlu0 %5208
    %5211 = vset.pattern.permute.xlu0 1
    %5212 = vperm.xlu0 %5211, %v4912
    %v5213 = vpop.permute.xlu0 %5212
    %5215 = vset.pattern.permute.xlu0 1
    %5216 = vperm.xlu0 %5215, %v4913
    %v5217 = vpop.permute.xlu0 %5216
    %5219 = vset.pattern.permute.xlu0 1
    %5220 = vperm.xlu0 %5219, %v4914
    %v5221 = vpop.permute.xlu0 %5220
    %5223 = vset.pattern.permute.xlu0 1
    %5224 = vperm.xlu0 %5223, %v4915
    %v5225 = vpop.permute.xlu0 %5224
    %5227 = vset.pattern.permute.xlu0 1
    %5228 = vperm.xlu0 %5227, %v4916
    %v5229 = vpop.permute.xlu0 %5228
    %5231 = vset.pattern.permute.xlu0 1
    %5232 = vperm.xlu0 %5231, %v4917
    %v5233 = vpop.permute.xlu0 %5232
    %5235 = vset.pattern.permute.xlu0 1
    %5236 = vperm.xlu0 %5235, %v4918
    %v5237 = vpop.permute.xlu0 %5236
    %v5239 = vmul.f32 %v5113, %v28
    %v5240 = vmul.f32 %v5117, %v28
    %v5241 = vmul.f32 %v5121, %v28
    %v5242 = vmul.f32 %v5125, %v28
    %v5243 = vmul.f32 %v5129, %v28
    %v5244 = vmul.f32 %v5133, %v28
    %v5245 = vmul.f32 %v5137, %v28
    %v5246 = vmul.f32 %v5141, %v28
    %v5247 = vmul.f32 %v5145, %v28
    %v5248 = vmul.f32 %v5149, %v28
    %v5249 = vmul.f32 %v5153, %v28
    %v5250 = vmul.f32 %v5157, %v28
    %v5251 = vmul.f32 %v5161, %v28
    %v5252 = vmul.f32 %v5165, %v28
    %v5253 = vmul.f32 %v5169, %v28
    %v5254 = vmul.f32 %v5173, %v28
    %v5255 = vmul.f32 %v5177, %v28
    %v5256 = vmul.f32 %v5181, %v28
    %v5257 = vmul.f32 %v5185, %v28
    %v5258 = vmul.f32 %v5189, %v28
    %v5259 = vmul.f32 %v5193, %v28
    %v5260 = vmul.f32 %v5197, %v28
    %v5261 = vmul.f32 %v5201, %v28
    %v5262 = vmul.f32 %v5205, %v28
    %v5263 = vmul.f32 %v5209, %v28
    %v5264 = vmul.f32 %v5213, %v28
    %v5265 = vmul.f32 %v5217, %v28
    %v5266 = vmul.f32 %v5221, %v28
    %v5267 = vmul.f32 %v5225, %v28
    %v5268 = vmul.f32 %v5229, %v28
    %v5269 = vmul.f32 %v5233, %v28
    %v5270 = vmul.f32 %v5237, %v28
    %v5271 = vadd.f32 %v5079, %v5239
    %v5272 = vadd.f32 %v5080, %v5240
    %v5273 = vadd.f32 %v5081, %v5241
    %v5274 = vadd.f32 %v5082, %v5242
    %v5275 = vadd.f32 %v5083, %v5243
    %v5276 = vadd.f32 %v5084, %v5244
    %v5277 = vadd.f32 %v5085, %v5245
    %v5278 = vadd.f32 %v5086, %v5246
    %v5279 = vadd.f32 %v5087, %v5247
    %v5280 = vadd.f32 %v5088, %v5248
    %v5281 = vadd.f32 %v5089, %v5249
    %v5282 = vadd.f32 %v5090, %v5250
    %v5283 = vadd.f32 %v5091, %v5251
    %v5284 = vadd.f32 %v5092, %v5252
    %v5285 = vadd.f32 %v5093, %v5253
    %v5286 = vadd.f32 %v5094, %v5254
    %v5287 = vadd.f32 %v5095, %v5255
    %v5288 = vadd.f32 %v5096, %v5256
    %v5289 = vadd.f32 %v5097, %v5257
    %v5290 = vadd.f32 %v5098, %v5258
    %v5291 = vadd.f32 %v5099, %v5259
    %v5292 = vadd.f32 %v5100, %v5260
    %v5293 = vadd.f32 %v5101, %v5261
    %v5294 = vadd.f32 %v5102, %v5262
    %v5295 = vadd.f32 %v5103, %v5263
    %v5296 = vadd.f32 %v5104, %v5264
    %v5297 = vadd.f32 %v5105, %v5265
    %v5298 = vadd.f32 %v5106, %v5266
    %v5299 = vadd.f32 %v5107, %v5267
    %v5300 = vadd.f32 %v5108, %v5268
    %v5301 = vadd.f32 %v5109, %v5269
    %v5302 = vadd.f32 %v5110, %v5270
    %5303 = vset.pattern.permute.xlu0 2
    %5304 = vperm.xlu0 %5303, %v4887
    %v5305 = vpop.permute.xlu0 %5304
    %5307 = vset.pattern.permute.xlu0 2
    %5308 = vperm.xlu0 %5307, %v4888
    %v5309 = vpop.permute.xlu0 %5308
    %5311 = vset.pattern.permute.xlu0 2
    %5312 = vperm.xlu0 %5311, %v4889
    %v5313 = vpop.permute.xlu0 %5312
    %5315 = vset.pattern.permute.xlu0 2
    %5316 = vperm.xlu0 %5315, %v4890
    %v5317 = vpop.permute.xlu0 %5316
    %5319 = vset.pattern.permute.xlu0 2
    %5320 = vperm.xlu0 %5319, %v4891
    %v5321 = vpop.permute.xlu0 %5320
    %5323 = vset.pattern.permute.xlu0 2
    %5324 = vperm.xlu0 %5323, %v4892
    %v5325 = vpop.permute.xlu0 %5324
    %5327 = vset.pattern.permute.xlu0 2
    %5328 = vperm.xlu0 %5327, %v4893
    %v5329 = vpop.permute.xlu0 %5328
    %5331 = vset.pattern.permute.xlu0 2
    %5332 = vperm.xlu0 %5331, %v4894
    %v5333 = vpop.permute.xlu0 %5332
    %5335 = vset.pattern.permute.xlu0 2
    %5336 = vperm.xlu0 %5335, %v4895
    %v5337 = vpop.permute.xlu0 %5336
    %5339 = vset.pattern.permute.xlu0 2
    %5340 = vperm.xlu0 %5339, %v4896
    %v5341 = vpop.permute.xlu0 %5340
    %5343 = vset.pattern.permute.xlu0 2
    %5344 = vperm.xlu0 %5343, %v4897
    %v5345 = vpop.permute.xlu0 %5344
    %5347 = vset.pattern.permute.xlu0 2
    %5348 = vperm.xlu0 %5347, %v4898
    %v5349 = vpop.permute.xlu0 %5348
    %5351 = vset.pattern.permute.xlu0 2
    %5352 = vperm.xlu0 %5351, %v4899
    %v5353 = vpop.permute.xlu0 %5352
    %5355 = vset.pattern.permute.xlu0 2
    %5356 = vperm.xlu0 %5355, %v4900
    %v5357 = vpop.permute.xlu0 %5356
    %5359 = vset.pattern.permute.xlu0 2
    %5360 = vperm.xlu0 %5359, %v4901
    %v5361 = vpop.permute.xlu0 %5360
    %5363 = vset.pattern.permute.xlu0 2
    %5364 = vperm.xlu0 %5363, %v4902
    %v5365 = vpop.permute.xlu0 %5364
    %5367 = vset.pattern.permute.xlu0 2
    %5368 = vperm.xlu0 %5367, %v4903
    %v5369 = vpop.permute.xlu0 %5368
    %5371 = vset.pattern.permute.xlu0 2
    %5372 = vperm.xlu0 %5371, %v4904
    %v5373 = vpop.permute.xlu0 %5372
    %5375 = vset.pattern.permute.xlu0 2
    %5376 = vperm.xlu0 %5375, %v4905
    %v5377 = vpop.permute.xlu0 %5376
    %5379 = vset.pattern.permute.xlu0 2
    %5380 = vperm.xlu0 %5379, %v4906
    %v5381 = vpop.permute.xlu0 %5380
    %5383 = vset.pattern.permute.xlu0 2
    %5384 = vperm.xlu0 %5383, %v4907
    %v5385 = vpop.permute.xlu0 %5384
    %5387 = vset.pattern.permute.xlu0 2
    %5388 = vperm.xlu0 %5387, %v4908
    %v5389 = vpop.permute.xlu0 %5388
    %5391 = vset.pattern.permute.xlu0 2
    %5392 = vperm.xlu0 %5391, %v4909
    %v5393 = vpop.permute.xlu0 %5392
    %5395 = vset.pattern.permute.xlu0 2
    %5396 = vperm.xlu0 %5395, %v4910
    %v5397 = vpop.permute.xlu0 %5396
    %5399 = vset.pattern.permute.xlu0 2
    %5400 = vperm.xlu0 %5399, %v4911
    %v5401 = vpop.permute.xlu0 %5400
    %5403 = vset.pattern.permute.xlu0 2
    %5404 = vperm.xlu0 %5403, %v4912
    %v5405 = vpop.permute.xlu0 %5404
    %5407 = vset.pattern.permute.xlu0 2
    %5408 = vperm.xlu0 %5407, %v4913
    %v5409 = vpop.permute.xlu0 %5408
    %5411 = vset.pattern.permute.xlu0 2
    %5412 = vperm.xlu0 %5411, %v4914
    %v5413 = vpop.permute.xlu0 %5412
    %5415 = vset.pattern.permute.xlu0 2
    %5416 = vperm.xlu0 %5415, %v4915
    %v5417 = vpop.permute.xlu0 %5416
    %5419 = vset.pattern.permute.xlu0 2
    %5420 = vperm.xlu0 %5419, %v4916
    %v5421 = vpop.permute.xlu0 %5420
    %5423 = vset.pattern.permute.xlu0 2
    %5424 = vperm.xlu0 %5423, %v4917
    %v5425 = vpop.permute.xlu0 %5424
    %5427 = vset.pattern.permute.xlu0 2
    %5428 = vperm.xlu0 %5427, %v4918
    %v5429 = vpop.permute.xlu0 %5428
    %v5431 = vmul.f32 %v5305, %v31
    %v5432 = vmul.f32 %v5309, %v31
    %v5433 = vmul.f32 %v5313, %v31
    %v5434 = vmul.f32 %v5317, %v31
    %v5435 = vmul.f32 %v5321, %v31
    %v5436 = vmul.f32 %v5325, %v31
    %v5437 = vmul.f32 %v5329, %v31
    %v5438 = vmul.f32 %v5333, %v31
    %v5439 = vmul.f32 %v5337, %v31
    %v5440 = vmul.f32 %v5341, %v31
    %v5441 = vmul.f32 %v5345, %v31
    %v5442 = vmul.f32 %v5349, %v31
    %v5443 = vmul.f32 %v5353, %v31
    %v5444 = vmul.f32 %v5357, %v31
    %v5445 = vmul.f32 %v5361, %v31
    %v5446 = vmul.f32 %v5365, %v31
    %v5447 = vmul.f32 %v5369, %v31
    %v5448 = vmul.f32 %v5373, %v31
    %v5449 = vmul.f32 %v5377, %v31
    %v5450 = vmul.f32 %v5381, %v31
    %v5451 = vmul.f32 %v5385, %v31
    %v5452 = vmul.f32 %v5389, %v31
    %v5453 = vmul.f32 %v5393, %v31
    %v5454 = vmul.f32 %v5397, %v31
    %v5455 = vmul.f32 %v5401, %v31
    %v5456 = vmul.f32 %v5405, %v31
    %v5457 = vmul.f32 %v5409, %v31
    %v5458 = vmul.f32 %v5413, %v31
    %v5459 = vmul.f32 %v5417, %v31
    %v5460 = vmul.f32 %v5421, %v31
    %v5461 = vmul.f32 %v5425, %v31
    %v5462 = vmul.f32 %v5429, %v31
    %v5463 = vadd.f32 %v5271, %v5431
    %v5464 = vadd.f32 %v5272, %v5432
    %v5465 = vadd.f32 %v5273, %v5433
    %v5466 = vadd.f32 %v5274, %v5434
    %v5467 = vadd.f32 %v5275, %v5435
    %v5468 = vadd.f32 %v5276, %v5436
    %v5469 = vadd.f32 %v5277, %v5437
    %v5470 = vadd.f32 %v5278, %v5438
    %v5471 = vadd.f32 %v5279, %v5439
    %v5472 = vadd.f32 %v5280, %v5440
    %v5473 = vadd.f32 %v5281, %v5441
    %v5474 = vadd.f32 %v5282, %v5442
    %v5475 = vadd.f32 %v5283, %v5443
    %v5476 = vadd.f32 %v5284, %v5444
    %v5477 = vadd.f32 %v5285, %v5445
    %v5478 = vadd.f32 %v5286, %v5446
    %v5479 = vadd.f32 %v5287, %v5447
    %v5480 = vadd.f32 %v5288, %v5448
    %v5481 = vadd.f32 %v5289, %v5449
    %v5482 = vadd.f32 %v5290, %v5450
    %v5483 = vadd.f32 %v5291, %v5451
    %v5484 = vadd.f32 %v5292, %v5452
    %v5485 = vadd.f32 %v5293, %v5453
    %v5486 = vadd.f32 %v5294, %v5454
    %v5487 = vadd.f32 %v5295, %v5455
    %v5488 = vadd.f32 %v5296, %v5456
    %v5489 = vadd.f32 %v5297, %v5457
    %v5490 = vadd.f32 %v5298, %v5458
    %v5491 = vadd.f32 %v5299, %v5459
    %v5492 = vadd.f32 %v5300, %v5460
    %v5493 = vadd.f32 %v5301, %v5461
    %v5494 = vadd.f32 %v5302, %v5462
    %v5527 = vrot.slane %v5463, 3
    %v5528 = vrot.slane %v5464, 3
    %v5529 = vrot.slane %v5465, 3
    %v5530 = vrot.slane %v5466, 3
    %v5531 = vrot.slane %v5467, 3
    %v5532 = vrot.slane %v5468, 3
    %v5533 = vrot.slane %v5469, 3
    %v5534 = vrot.slane %v5470, 3
    %v5535 = vrot.slane %v5471, 3
    %v5536 = vrot.slane %v5472, 3
    %v5537 = vrot.slane %v5473, 3
    %v5538 = vrot.slane %v5474, 3
    %v5539 = vrot.slane %v5475, 3
    %v5540 = vrot.slane %v5476, 3
    %v5541 = vrot.slane %v5477, 3
    %v5542 = vrot.slane %v5478, 3
    %v5543 = vrot.slane %v5479, 3
    %v5544 = vrot.slane %v5480, 3
    %v5545 = vrot.slane %v5481, 3
    %v5546 = vrot.slane %v5482, 3
    %v5547 = vrot.slane %v5483, 3
    %v5548 = vrot.slane %v5484, 3
    %v5549 = vrot.slane %v5485, 3
    %v5550 = vrot.slane %v5486, 3
    %v5551 = vrot.slane %v5487, 3
    %v5552 = vrot.slane %v5488, 3
    %v5553 = vrot.slane %v5489, 3
    %v5554 = vrot.slane %v5490, 3
    %v5555 = vrot.slane %v5491, 3
    %v5556 = vrot.slane %v5492, 3
    %v5557 = vrot.slane %v5493, 3
    %v5558 = vrot.slane %v5494, 3
    %v5591 = vmul.f32 %v3906, %v5527
    %v5592 = vmul.f32 %v3907, %v5528
    %v5593 = vmul.f32 %v3908, %v5529
    %v5594 = vmul.f32 %v3909, %v5530
    %v5595 = vmul.f32 %v3910, %v5531
    %v5596 = vmul.f32 %v3911, %v5532
    %v5597 = vmul.f32 %v3912, %v5533
    %v5598 = vmul.f32 %v3913, %v5534
    %v5599 = vmul.f32 %v3914, %v5535
    %v5600 = vmul.f32 %v3915, %v5536
    %v5601 = vmul.f32 %v3916, %v5537
    %v5602 = vmul.f32 %v3917, %v5538
    %v5603 = vmul.f32 %v3918, %v5539
    %v5604 = vmul.f32 %v3919, %v5540
    %v5605 = vmul.f32 %v3920, %v5541
    %v5606 = vmul.f32 %v3921, %v5542
    %v5607 = vmul.f32 %v3922, %v5543
    %v5608 = vmul.f32 %v3923, %v5544
    %v5609 = vmul.f32 %v3924, %v5545
    %v5610 = vmul.f32 %v3925, %v5546
    %v5611 = vmul.f32 %v3926, %v5547
    %v5612 = vmul.f32 %v3927, %v5548
    %v5613 = vmul.f32 %v3928, %v5549
    %v5614 = vmul.f32 %v3929, %v5550
    %v5615 = vmul.f32 %v3930, %v5551
    %v5616 = vmul.f32 %v3931, %v5552
    %v5617 = vmul.f32 %v3932, %v5553
    %v5618 = vmul.f32 %v3933, %v5554
    %v5619 = vmul.f32 %v3934, %v5555
    %v5620 = vmul.f32 %v3935, %v5556
    %v5621 = vmul.f32 %v3936, %v5557
    %v5622 = vmul.f32 %v3937, %v5558
    %v5623 = vpack.c.bf16 %v5591, %v5591
    %v5624 = vpack.c.bf16 %v5592, %v5592
    %v5625 = vpack.c.bf16 %v5593, %v5593
    %v5626 = vpack.c.bf16 %v5594, %v5594
    %v5627 = vpack.c.bf16 %v5595, %v5595
    %v5628 = vpack.c.bf16 %v5596, %v5596
    %v5629 = vpack.c.bf16 %v5597, %v5597
    %v5630 = vpack.c.bf16 %v5598, %v5598
    %v5631 = vpack.c.bf16 %v5599, %v5599
    %v5632 = vpack.c.bf16 %v5600, %v5600
    %v5633 = vpack.c.bf16 %v5601, %v5601
    %v5634 = vpack.c.bf16 %v5602, %v5602
    %v5635 = vpack.c.bf16 %v5603, %v5603
    %v5636 = vpack.c.bf16 %v5604, %v5604
    %v5637 = vpack.c.bf16 %v5605, %v5605
    %v5638 = vpack.c.bf16 %v5606, %v5606
    %v5639 = vpack.c.bf16 %v5607, %v5607
    %v5640 = vpack.c.bf16 %v5608, %v5608
    %v5641 = vpack.c.bf16 %v5609, %v5609
    %v5642 = vpack.c.bf16 %v5610, %v5610
    %v5643 = vpack.c.bf16 %v5611, %v5611
    %v5644 = vpack.c.bf16 %v5612, %v5612
    %v5645 = vpack.c.bf16 %v5613, %v5613
    %v5646 = vpack.c.bf16 %v5614, %v5614
    %v5647 = vpack.c.bf16 %v5615, %v5615
    %v5648 = vpack.c.bf16 %v5616, %v5616
    %v5649 = vpack.c.bf16 %v5617, %v5617
    %v5650 = vpack.c.bf16 %v5618, %v5618
    %v5651 = vpack.c.bf16 %v5619, %v5619
    %v5652 = vpack.c.bf16 %v5620, %v5620
    %v5653 = vpack.c.bf16 %v5621, %v5621
    %v5654 = vpack.c.bf16 %v5622, %v5622
    %v5687 = vunpack.c.l.b16 %v5623
    %v5688 = vunpack.c.l.b16 %v5624
    %v5689 = vunpack.c.l.b16 %v5625
    %v5690 = vunpack.c.l.b16 %v5626
    %v5691 = vunpack.c.l.b16 %v5627
    %v5692 = vunpack.c.l.b16 %v5628
    %v5693 = vunpack.c.l.b16 %v5629
    %v5694 = vunpack.c.l.b16 %v5630
    %v5695 = vunpack.c.l.b16 %v5631
    %v5696 = vunpack.c.l.b16 %v5632
    %v5697 = vunpack.c.l.b16 %v5633
    %v5698 = vunpack.c.l.b16 %v5634
    %v5699 = vunpack.c.l.b16 %v5635
    %v5700 = vunpack.c.l.b16 %v5636
    %v5701 = vunpack.c.l.b16 %v5637
    %v5702 = vunpack.c.l.b16 %v5638
    %v5703 = vunpack.c.l.b16 %v5639
    %v5704 = vunpack.c.l.b16 %v5640
    %v5705 = vunpack.c.l.b16 %v5641
    %v5706 = vunpack.c.l.b16 %v5642
    %v5707 = vunpack.c.l.b16 %v5643
    %v5708 = vunpack.c.l.b16 %v5644
    %v5709 = vunpack.c.l.b16 %v5645
    %v5710 = vunpack.c.l.b16 %v5646
    %v5711 = vunpack.c.l.b16 %v5647
    %v5712 = vunpack.c.l.b16 %v5648
    %v5713 = vunpack.c.l.b16 %v5649
    %v5714 = vunpack.c.l.b16 %v5650
    %v5715 = vunpack.c.l.b16 %v5651
    %v5716 = vunpack.c.l.b16 %v5652
    %v5717 = vunpack.c.l.b16 %v5653
    %v5718 = vunpack.c.l.b16 %v5654
    %v5719 = vrot.slane %v5687, 5
    %v5720 = vrot.slane %v5688, 4
    %v5721 = vsel %vm836, %v5720, %v5719
    %v5722 = vrot.slane %v5689, 3
    %v5723 = vsel %vm839, %v5722, %v5721
    %v5724 = vrot.slane %v5690, 2
    %v5725 = vsel %vm842, %v5724, %v5723
    %v5726 = vrot.slane %v5691, 1
    %v5727 = vsel %vm845, %v5726, %v5725
    %v5728 = vsel %vm848, %v5692, %v5727
    %v5729 = vrot.slane %v5693, 7
    %v5730 = vsel %vm851, %v5729, %v5728
    %v5731 = vrot.slane %v5694, 6
    %v5732 = vsel %vm854, %v5731, %v5730
    %v5733 = vrot.slane %v5695, 5
    %v5734 = vrot.slane %v5696, 4
    %v5735 = vsel %vm836, %v5734, %v5733
    %v5736 = vrot.slane %v5697, 3
    %v5737 = vsel %vm839, %v5736, %v5735
    %v5738 = vrot.slane %v5698, 2
    %v5739 = vsel %vm842, %v5738, %v5737
    %v5740 = vrot.slane %v5699, 1
    %v5741 = vsel %vm845, %v5740, %v5739
    %v5742 = vsel %vm848, %v5700, %v5741
    %v5743 = vrot.slane %v5701, 7
    %v5744 = vsel %vm851, %v5743, %v5742
    %v5745 = vrot.slane %v5702, 6
    %v5746 = vsel %vm854, %v5745, %v5744
    %v5747 = vrot.slane %v5703, 5
    %v5748 = vrot.slane %v5704, 4
    %v5749 = vsel %vm836, %v5748, %v5747
    %v5750 = vrot.slane %v5705, 3
    %v5751 = vsel %vm839, %v5750, %v5749
    %v5752 = vrot.slane %v5706, 2
    %v5753 = vsel %vm842, %v5752, %v5751
    %v5754 = vrot.slane %v5707, 1
    %v5755 = vsel %vm845, %v5754, %v5753
    %v5756 = vsel %vm848, %v5708, %v5755
    %v5757 = vrot.slane %v5709, 7
    %v5758 = vsel %vm851, %v5757, %v5756
    %v5759 = vrot.slane %v5710, 6
    %v5760 = vsel %vm854, %v5759, %v5758
    %v5761 = vrot.slane %v5711, 5
    %v5762 = vrot.slane %v5712, 4
    %v5763 = vsel %vm836, %v5762, %v5761
    %v5764 = vrot.slane %v5713, 3
    %v5765 = vsel %vm839, %v5764, %v5763
    %v5766 = vrot.slane %v5714, 2
    %v5767 = vsel %vm842, %v5766, %v5765
    %v5768 = vrot.slane %v5715, 1
    %v5769 = vsel %vm845, %v5768, %v5767
    %v5770 = vsel %vm848, %v5716, %v5769
    %v5771 = vrot.slane %v5717, 7
    %v5772 = vsel %vm851, %v5771, %v5770
    %v5773 = vrot.slane %v5718, 6
    %v5774 = vsel %vm854, %v5773, %v5772
    %v5775 = vpack.c.b16 %v5746, %v5732
    %v5776 = vpack.c.b16 %v5774, %v5760
    %v5778 = vsel %vm900, %v5775, 0
    %v5781 = vsel %vm900, %v5776, 0
    %5783 = vmatprep.subr.bf16.mxu0 0
    %5784 = vmatpush1.bf16.msra.mxu0 %v912
    %5785 = vmatprep.subr.bf16.mxu0 0
    %5786 = vmatpush1.bf16.msra.mxu0 0
    %5787 = vmatprep.subr.bf16.mxu0 0
    %5788 = vmatpush1.bf16.msra.mxu0 0
    %5789 = vmatprep.subr.bf16.mxu0 0
    %5790 = vmatpush1.bf16.msra.mxu0 0
    %5791 = vmatprep.subr.bf16.mxu0 0
    %5792 = vmatpush1.bf16.msra.mxu0 0
    %5793 = vmatprep.subr.bf16.mxu0 0
    %5794 = vmatpush1.bf16.msra.mxu0 0
    %5795 = vmatprep.subr.bf16.mxu0 0
    %5796 = vmatpush1.bf16.msra.mxu0 0
    %5797 = vmatprep.subr.bf16.mxu0 0
    %5798 = vmatpush1.bf16.msra.mxu0 0
    %5799 = vmatprep.subr.bf16.mxu0 0
    %5800 = vmatpush1.bf16.msra.mxu0 0
    %5801 = vmatprep.subr.bf16.mxu0 0
    %5802 = vmatpush1.bf16.msra.mxu0 0
    %5803 = vmatprep.subr.bf16.mxu0 0
    %5804 = vmatpush1.bf16.msra.mxu0 0
    %5805 = vmatprep.subr.bf16.mxu0 0
    %5806 = vmatpush1.bf16.msra.mxu0 0
    %5807 = vmatprep.subr.bf16.mxu0 0
    %5808 = vmatpush1.bf16.msra.mxu0 0
    %5809 = vmatprep.subr.bf16.mxu0 0
    %5810 = vmatpush1.bf16.msra.mxu0 0
    %5811 = vmatprep.subr.bf16.mxu0 0
    %5812 = vmatpush1.bf16.msra.mxu0 0
    %5813 = vmatprep.subr.bf16.mxu0 0
    %5814 = vmatpush1.bf16.msra.mxu0 0
    %5815 = vmatprep.mubr.bf16.mxu0 0
    %5816 = vmatmul.mubr.bf16.gmra.mrb[0].mxu0 %v5778
    %v5817 = vpop.f32.mrb[0].mxu0
    %v5818 = vadd.f32 0.0, %v5817
    %v5819 = vpop.f32.mrb[0].mxu0
    %v5820 = vpop.f32.mrb[0].mxu0
    %v5821 = vadd.f32 0.0, %v5820
    %v5822 = vpop.f32.mrb[0].mxu0
    %5823 = vmatprep.mubr.bf16.mxu0 0
    %5824 = vmatmul.mubr.bf16.gmra.mrb[0].mxu0 %v5781
    %v5825 = vpop.f32.mrb[0].mxu0
    %v5826 = vadd.f32 0.0, %v5825
    %v5827 = vpop.f32.mrb[0].mxu0
    %v5828 = vpop.f32.mrb[0].mxu0
    %v5829 = vadd.f32 0.0, %v5828
    %v5830 = vpop.f32.mrb[0].mxu0
    %5831 = vdwg.mxu0
    %v5832 = vmax.f32 %v4883, %v5818
    %v5833 = vmax.f32 %v4884, %v5821
    %v5834 = vmax.f32 %v4885, %v5826
    %v5835 = vmax.f32 %v4886, %v5829
    %v5836 = vld [vmem:[%s0] sm:$0x8]
    %v5837 = vld [vmem:[%s0 + $0x4] sm:$0x8]
    %v5838 = vld [vmem:[%s0 + $0x8] sm:$0x8]
    %v5839 = vld [vmem:[%s0 + $0xc] sm:$0x8]
    %v5840 = vld [vmem:[%s0 + $0x10] sm:$0x8]
    %v5841 = vld [vmem:[%s0 + $0x14] sm:$0x8]
    %v5842 = vld [vmem:[%s0 + $0x18] sm:$0x8]
    %v5843 = vld [vmem:[%s0 + $0x1c] sm:$0x8]
    %v5844 = vld [vmem:[%s0 + $0x20] sm:$0x8]
    %v5845 = vld [vmem:[%s0 + $0x24] sm:$0x8]
    %v5846 = vld [vmem:[%s0 + $0x28] sm:$0x8]
    %v5847 = vld [vmem:[%s0 + $0x2c] sm:$0x8]
    %v5848 = vld [vmem:[%s0 + $0x30] sm:$0x8]
    %v5849 = vld [vmem:[%s0 + $0x34] sm:$0x8]
    %v5850 = vld [vmem:[%s0 + $0x38] sm:$0x8]
    %v5851 = vld [vmem:[%s0 + $0x3c] sm:$0x8]
    %v5852 = vld [vmem:[%s0 + $0x40] sm:$0x8]
    %v5853 = vld [vmem:[%s0 + $0x44] sm:$0x8]
    %v5854 = vld [vmem:[%s0 + $0x48] sm:$0x8]
    %v5855 = vld [vmem:[%s0 + $0x4c] sm:$0x8]
    %v5856 = vld [vmem:[%s0 + $0x50] sm:$0x8]
    %v5857 = vld [vmem:[%s0 + $0x54] sm:$0x8]
    %v5858 = vld [vmem:[%s0 + $0x58] sm:$0x8]
    %v5859 = vld [vmem:[%s0 + $0x5c] sm:$0x8]
    %v5860 = vld [vmem:[%s0 + $0x60] sm:$0x8]
    %v5861 = vld [vmem:[%s0 + $0x64] sm:$0x8]
    %v5862 = vld [vmem:[%s0 + $0x68] sm:$0x8]
    %v5863 = vld [vmem:[%s0 + $0x6c] sm:$0x8]
    %v5864 = vld [vmem:[%s0 + $0x70] sm:$0x8]
    %v5865 = vld [vmem:[%s0 + $0x74] sm:$0x8]
    %v5866 = vld [vmem:[%s0 + $0x78] sm:$0x8]
    %v5867 = vld [vmem:[%s0 + $0x7c] sm:$0x8]
    %v5868 = vunpack.c.l.bf16 %v5836
    %v5869 = vunpack.c.l.bf16 %v5837
    %v5870 = vunpack.c.l.bf16 %v5838
    %v5871 = vunpack.c.l.bf16 %v5839
    %v5872 = vunpack.c.l.bf16 %v5840
    %v5873 = vunpack.c.l.bf16 %v5841
    %v5874 = vunpack.c.l.bf16 %v5842
    %v5875 = vunpack.c.l.bf16 %v5843
    %v5876 = vunpack.c.l.bf16 %v5844
    %v5877 = vunpack.c.l.bf16 %v5845
    %v5878 = vunpack.c.l.bf16 %v5846
    %v5879 = vunpack.c.l.bf16 %v5847
    %v5880 = vunpack.c.l.bf16 %v5848
    %v5881 = vunpack.c.l.bf16 %v5849
    %v5882 = vunpack.c.l.bf16 %v5850
    %v5883 = vunpack.c.l.bf16 %v5851
    %v5884 = vunpack.c.l.bf16 %v5852
    %v5885 = vunpack.c.l.bf16 %v5853
    %v5886 = vunpack.c.l.bf16 %v5854
    %v5887 = vunpack.c.l.bf16 %v5855
    %v5888 = vunpack.c.l.bf16 %v5856
    %v5889 = vunpack.c.l.bf16 %v5857
    %v5890 = vunpack.c.l.bf16 %v5858
    %v5891 = vunpack.c.l.bf16 %v5859
    %v5892 = vunpack.c.l.bf16 %v5860
    %v5893 = vunpack.c.l.bf16 %v5861
    %v5894 = vunpack.c.l.bf16 %v5862
    %v5895 = vunpack.c.l.bf16 %v5863
    %v5896 = vunpack.c.l.bf16 %v5864
    %v5897 = vunpack.c.l.bf16 %v5865
    %v5898 = vunpack.c.l.bf16 %v5866
    %v5899 = vunpack.c.l.bf16 %v5867
    %v5900 = vld [vmem:[%s1 + $0x6] sm:$0x1]
    %v5901 = vld [vmem:[%s1 + $0xe] sm:$0x1]
    %v5902 = vld [vmem:[%s1 + $0x16] sm:$0x1]
    %v5903 = vld [vmem:[%s1 + $0x1e] sm:$0x1]
    %v5904 = vld [vmem:[%s1 + $0x26] sm:$0x1]
    %v5905 = vld [vmem:[%s1 + $0x2e] sm:$0x1]
    %v5906 = vld [vmem:[%s1 + $0x36] sm:$0x1]
    %v5907 = vld [vmem:[%s1 + $0x3e] sm:$0x1]
    %v5908 = vld [vmem:[%s1 + $0x46] sm:$0x1]
    %v5909 = vld [vmem:[%s1 + $0x4e] sm:$0x1]
    %v5910 = vld [vmem:[%s1 + $0x56] sm:$0x1]
    %v5911 = vld [vmem:[%s1 + $0x5e] sm:$0x1]
    %v5912 = vld [vmem:[%s1 + $0x66] sm:$0x1]
    %v5913 = vld [vmem:[%s1 + $0x6e] sm:$0x1]
    %v5914 = vld [vmem:[%s1 + $0x76] sm:$0x1]
    %v5915 = vld [vmem:[%s1 + $0x7e] sm:$0x1]
    %v5916 = vld [vmem:[%s1 + $0x86] sm:$0x1]
    %v5917 = vld [vmem:[%s1 + $0x8e] sm:$0x1]
    %v5918 = vld [vmem:[%s1 + $0x96] sm:$0x1]
    %v5919 = vld [vmem:[%s1 + $0x9e] sm:$0x1]
    %v5920 = vld [vmem:[%s1 + $0xa6] sm:$0x1]
    %v5921 = vld [vmem:[%s1 + $0xae] sm:$0x1]
    %v5922 = vld [vmem:[%s1 + $0xb6] sm:$0x1]
    %v5923 = vld [vmem:[%s1 + $0xbe] sm:$0x1]
    %v5924 = vld [vmem:[%s1 + $0xc6] sm:$0x1]
    %v5925 = vld [vmem:[%s1 + $0xce] sm:$0x1]
    %v5926 = vld [vmem:[%s1 + $0xd6] sm:$0x1]
    %v5927 = vld [vmem:[%s1 + $0xde] sm:$0x1]
    %v5928 = vld [vmem:[%s1 + $0xe6] sm:$0x1]
    %v5929 = vld [vmem:[%s1 + $0xee] sm:$0x1]
    %v5930 = vld [vmem:[%s1 + $0xf6] sm:$0x1]
    %v5931 = vld [vmem:[%s1 + $0xfe] sm:$0x1]
    %5933 = vset.pattern.permute.xlu0 0
    %5934 = vperm.xlu0 %5933, %v5900
    %v5935 = vpop.permute.xlu0 %5934
    %5938 = vset.pattern.permute.xlu0 0
    %5939 = vperm.xlu0 %5938, %v5901
    %v5940 = vpop.permute.xlu0 %5939
    %5943 = vset.pattern.permute.xlu0 0
    %5944 = vperm.xlu0 %5943, %v5902
    %v5945 = vpop.permute.xlu0 %5944
    %5948 = vset.pattern.permute.xlu0 0
    %5949 = vperm.xlu0 %5948, %v5903
    %v5950 = vpop.permute.xlu0 %5949
    %5953 = vset.pattern.permute.xlu0 0
    %5954 = vperm.xlu0 %5953, %v5904
    %v5955 = vpop.permute.xlu0 %5954
    %5958 = vset.pattern.permute.xlu0 0
    %5959 = vperm.xlu0 %5958, %v5905
    %v5960 = vpop.permute.xlu0 %5959
    %5963 = vset.pattern.permute.xlu0 0
    %5964 = vperm.xlu0 %5963, %v5906
    %v5965 = vpop.permute.xlu0 %5964
    %5968 = vset.pattern.permute.xlu0 0
    %5969 = vperm.xlu0 %5968, %v5907
    %v5970 = vpop.permute.xlu0 %5969
    %5973 = vset.pattern.permute.xlu0 0
    %5974 = vperm.xlu0 %5973, %v5908
    %v5975 = vpop.permute.xlu0 %5974
    %5978 = vset.pattern.permute.xlu0 0
    %5979 = vperm.xlu0 %5978, %v5909
    %v5980 = vpop.permute.xlu0 %5979
    %5983 = vset.pattern.permute.xlu0 0
    %5984 = vperm.xlu0 %5983, %v5910
    %v5985 = vpop.permute.xlu0 %5984
    %5988 = vset.pattern.permute.xlu0 0
    %5989 = vperm.xlu0 %5988, %v5911
    %v5990 = vpop.permute.xlu0 %5989
    %5993 = vset.pattern.permute.xlu0 0
    %5994 = vperm.xlu0 %5993, %v5912
    %v5995 = vpop.permute.xlu0 %5994
    %5998 = vset.pattern.permute.xlu0 0
    %5999 = vperm.xlu0 %5998, %v5913
    %v6000 = vpop.permute.xlu0 %5999
    %6003 = vset.pattern.permute.xlu0 0
    %6004 = vperm.xlu0 %6003, %v5914
    %v6005 = vpop.permute.xlu0 %6004
    %6008 = vset.pattern.permute.xlu0 0
    %6009 = vperm.xlu0 %6008, %v5915
    %v6010 = vpop.permute.xlu0 %6009
    %6013 = vset.pattern.permute.xlu0 0
    %6014 = vperm.xlu0 %6013, %v5916
    %v6015 = vpop.permute.xlu0 %6014
    %6018 = vset.pattern.permute.xlu0 0
    %6019 = vperm.xlu0 %6018, %v5917
    %v6020 = vpop.permute.xlu0 %6019
    %6023 = vset.pattern.permute.xlu0 0
    %6024 = vperm.xlu0 %6023, %v5918
    %v6025 = vpop.permute.xlu0 %6024
    %6028 = vset.pattern.permute.xlu0 0
    %6029 = vperm.xlu0 %6028, %v5919
    %v6030 = vpop.permute.xlu0 %6029
    %6033 = vset.pattern.permute.xlu0 0
    %6034 = vperm.xlu0 %6033, %v5920
    %v6035 = vpop.permute.xlu0 %6034
    %6038 = vset.pattern.permute.xlu0 0
    %6039 = vperm.xlu0 %6038, %v5921
    %v6040 = vpop.permute.xlu0 %6039
    %6043 = vset.pattern.permute.xlu0 0
    %6044 = vperm.xlu0 %6043, %v5922
    %v6045 = vpop.permute.xlu0 %6044
    %6048 = vset.pattern.permute.xlu0 0
    %6049 = vperm.xlu0 %6048, %v5923
    %v6050 = vpop.permute.xlu0 %6049
    %6053 = vset.pattern.permute.xlu0 0
    %6054 = vperm.xlu0 %6053, %v5924
    %v6055 = vpop.permute.xlu0 %6054
    %6058 = vset.pattern.permute.xlu0 0
    %6059 = vperm.xlu0 %6058, %v5925
    %v6060 = vpop.permute.xlu0 %6059
    %6063 = vset.pattern.permute.xlu0 0
    %6064 = vperm.xlu0 %6063, %v5926
    %v6065 = vpop.permute.xlu0 %6064
    %6068 = vset.pattern.permute.xlu0 0
    %6069 = vperm.xlu0 %6068, %v5927
    %v6070 = vpop.permute.xlu0 %6069
    %6073 = vset.pattern.permute.xlu0 0
    %6074 = vperm.xlu0 %6073, %v5928
    %v6075 = vpop.permute.xlu0 %6074
    %6078 = vset.pattern.permute.xlu0 0
    %6079 = vperm.xlu0 %6078, %v5929
    %v6080 = vpop.permute.xlu0 %6079
    %6083 = vset.pattern.permute.xlu0 0
    %6084 = vperm.xlu0 %6083, %v5930
    %v6085 = vpop.permute.xlu0 %6084
    %6088 = vset.pattern.permute.xlu0 0
    %6089 = vperm.xlu0 %6088, %v5931
    %v6090 = vpop.permute.xlu0 %6089
    %v6092 = vmul.f32 %v5935, %v23
    %v6093 = vmul.f32 %v5940, %v23
    %v6094 = vmul.f32 %v5945, %v23
    %v6095 = vmul.f32 %v5950, %v23
    %v6096 = vmul.f32 %v5955, %v23
    %v6097 = vmul.f32 %v5960, %v23
    %v6098 = vmul.f32 %v5965, %v23
    %v6099 = vmul.f32 %v5970, %v23
    %v6100 = vmul.f32 %v5975, %v23
    %v6101 = vmul.f32 %v5980, %v23
    %v6102 = vmul.f32 %v5985, %v23
    %v6103 = vmul.f32 %v5990, %v23
    %v6104 = vmul.f32 %v5995, %v23
    %v6105 = vmul.f32 %v6000, %v23
    %v6106 = vmul.f32 %v6005, %v23
    %v6107 = vmul.f32 %v6010, %v23
    %v6108 = vmul.f32 %v6015, %v23
    %v6109 = vmul.f32 %v6020, %v23
    %v6110 = vmul.f32 %v6025, %v23
    %v6111 = vmul.f32 %v6030, %v23
    %v6112 = vmul.f32 %v6035, %v23
    %v6113 = vmul.f32 %v6040, %v23
    %v6114 = vmul.f32 %v6045, %v23
    %v6115 = vmul.f32 %v6050, %v23
    %v6116 = vmul.f32 %v6055, %v23
    %v6117 = vmul.f32 %v6060, %v23
    %v6118 = vmul.f32 %v6065, %v23
    %v6119 = vmul.f32 %v6070, %v23
    %v6120 = vmul.f32 %v6075, %v23
    %v6121 = vmul.f32 %v6080, %v23
    %v6122 = vmul.f32 %v6085, %v23
    %v6123 = vmul.f32 %v6090, %v23
    %6124 = vset.pattern.permute.xlu0 1
    %6125 = vperm.xlu0 %6124, %v5900
    %v6126 = vpop.permute.xlu0 %6125
    %6128 = vset.pattern.permute.xlu0 1
    %6129 = vperm.xlu0 %6128, %v5901
    %v6130 = vpop.permute.xlu0 %6129
    %6132 = vset.pattern.permute.xlu0 1
    %6133 = vperm.xlu0 %6132, %v5902
    %v6134 = vpop.permute.xlu0 %6133
    %6136 = vset.pattern.permute.xlu0 1
    %6137 = vperm.xlu0 %6136, %v5903
    %v6138 = vpop.permute.xlu0 %6137
    %6140 = vset.pattern.permute.xlu0 1
    %6141 = vperm.xlu0 %6140, %v5904
    %v6142 = vpop.permute.xlu0 %6141
    %6144 = vset.pattern.permute.xlu0 1
    %6145 = vperm.xlu0 %6144, %v5905
    %v6146 = vpop.permute.xlu0 %6145
    %6148 = vset.pattern.permute.xlu0 1
    %6149 = vperm.xlu0 %6148, %v5906
    %v6150 = vpop.permute.xlu0 %6149
    %6152 = vset.pattern.permute.xlu0 1
    %6153 = vperm.xlu0 %6152, %v5907
    %v6154 = vpop.permute.xlu0 %6153
    %6156 = vset.pattern.permute.xlu0 1
    %6157 = vperm.xlu0 %6156, %v5908
    %v6158 = vpop.permute.xlu0 %6157
    %6160 = vset.pattern.permute.xlu0 1
    %6161 = vperm.xlu0 %6160, %v5909
    %v6162 = vpop.permute.xlu0 %6161
    %6164 = vset.pattern.permute.xlu0 1
    %6165 = vperm.xlu0 %6164, %v5910
    %v6166 = vpop.permute.xlu0 %6165
    %6168 = vset.pattern.permute.xlu0 1
    %6169 = vperm.xlu0 %6168, %v5911
    %v6170 = vpop.permute.xlu0 %6169
    %6172 = vset.pattern.permute.xlu0 1
    %6173 = vperm.xlu0 %6172, %v5912
    %v6174 = vpop.permute.xlu0 %6173
    %6176 = vset.pattern.permute.xlu0 1
    %6177 = vperm.xlu0 %6176, %v5913
    %v6178 = vpop.permute.xlu0 %6177
    %6180 = vset.pattern.permute.xlu0 1
    %6181 = vperm.xlu0 %6180, %v5914
    %v6182 = vpop.permute.xlu0 %6181
    %6184 = vset.pattern.permute.xlu0 1
    %6185 = vperm.xlu0 %6184, %v5915
    %v6186 = vpop.permute.xlu0 %6185
    %6188 = vset.pattern.permute.xlu0 1
    %6189 = vperm.xlu0 %6188, %v5916
    %v6190 = vpop.permute.xlu0 %6189
    %6192 = vset.pattern.permute.xlu0 1
    %6193 = vperm.xlu0 %6192, %v5917
    %v6194 = vpop.permute.xlu0 %6193
    %6196 = vset.pattern.permute.xlu0 1
    %6197 = vperm.xlu0 %6196, %v5918
    %v6198 = vpop.permute.xlu0 %6197
    %6200 = vset.pattern.permute.xlu0 1
    %6201 = vperm.xlu0 %6200, %v5919
    %v6202 = vpop.permute.xlu0 %6201
    %6204 = vset.pattern.permute.xlu0 1
    %6205 = vperm.xlu0 %6204, %v5920
    %v6206 = vpop.permute.xlu0 %6205
    %6208 = vset.pattern.permute.xlu0 1
    %6209 = vperm.xlu0 %6208, %v5921
    %v6210 = vpop.permute.xlu0 %6209
    %6212 = vset.pattern.permute.xlu0 1
    %6213 = vperm.xlu0 %6212, %v5922
    %v6214 = vpop.permute.xlu0 %6213
    %6216 = vset.pattern.permute.xlu0 1
    %6217 = vperm.xlu0 %6216, %v5923
    %v6218 = vpop.permute.xlu0 %6217
    %6220 = vset.pattern.permute.xlu0 1
    %6221 = vperm.xlu0 %6220, %v5924
    %v6222 = vpop.permute.xlu0 %6221
    %6224 = vset.pattern.permute.xlu0 1
    %6225 = vperm.xlu0 %6224, %v5925
    %v6226 = vpop.permute.xlu0 %6225
    %6228 = vset.pattern.permute.xlu0 1
    %6229 = vperm.xlu0 %6228, %v5926
    %v6230 = vpop.permute.xlu0 %6229
    %6232 = vset.pattern.permute.xlu0 1
    %6233 = vperm.xlu0 %6232, %v5927
    %v6234 = vpop.permute.xlu0 %6233
    %6236 = vset.pattern.permute.xlu0 1
    %6237 = vperm.xlu0 %6236, %v5928
    %v6238 = vpop.permute.xlu0 %6237
    %6240 = vset.pattern.permute.xlu0 1
    %6241 = vperm.xlu0 %6240, %v5929
    %v6242 = vpop.permute.xlu0 %6241
    %6244 = vset.pattern.permute.xlu0 1
    %6245 = vperm.xlu0 %6244, %v5930
    %v6246 = vpop.permute.xlu0 %6245
    %6248 = vset.pattern.permute.xlu0 1
    %6249 = vperm.xlu0 %6248, %v5931
    %v6250 = vpop.permute.xlu0 %6249
    %v6252 = vmul.f32 %v6126, %v28
    %v6253 = vmul.f32 %v6130, %v28
    %v6254 = vmul.f32 %v6134, %v28
    %v6255 = vmul.f32 %v6138, %v28
    %v6256 = vmul.f32 %v6142, %v28
    %v6257 = vmul.f32 %v6146, %v28
    %v6258 = vmul.f32 %v6150, %v28
    %v6259 = vmul.f32 %v6154, %v28
    %v6260 = vmul.f32 %v6158, %v28
    %v6261 = vmul.f32 %v6162, %v28
    %v6262 = vmul.f32 %v6166, %v28
    %v6263 = vmul.f32 %v6170, %v28
    %v6264 = vmul.f32 %v6174, %v28
    %v6265 = vmul.f32 %v6178, %v28
    %v6266 = vmul.f32 %v6182, %v28
    %v6267 = vmul.f32 %v6186, %v28
    %v6268 = vmul.f32 %v6190, %v28
    %v6269 = vmul.f32 %v6194, %v28
    %v6270 = vmul.f32 %v6198, %v28
    %v6271 = vmul.f32 %v6202, %v28
    %v6272 = vmul.f32 %v6206, %v28
    %v6273 = vmul.f32 %v6210, %v28
    %v6274 = vmul.f32 %v6214, %v28
    %v6275 = vmul.f32 %v6218, %v28
    %v6276 = vmul.f32 %v6222, %v28
    %v6277 = vmul.f32 %v6226, %v28
    %v6278 = vmul.f32 %v6230, %v28
    %v6279 = vmul.f32 %v6234, %v28
    %v6280 = vmul.f32 %v6238, %v28
    %v6281 = vmul.f32 %v6242, %v28
    %v6282 = vmul.f32 %v6246, %v28
    %v6283 = vmul.f32 %v6250, %v28
    %v6284 = vadd.f32 %v6092, %v6252
    %v6285 = vadd.f32 %v6093, %v6253
    %v6286 = vadd.f32 %v6094, %v6254
    %v6287 = vadd.f32 %v6095, %v6255
    %v6288 = vadd.f32 %v6096, %v6256
    %v6289 = vadd.f32 %v6097, %v6257
    %v6290 = vadd.f32 %v6098, %v6258
    %v6291 = vadd.f32 %v6099, %v6259
    %v6292 = vadd.f32 %v6100, %v6260
    %v6293 = vadd.f32 %v6101, %v6261
    %v6294 = vadd.f32 %v6102, %v6262
    %v6295 = vadd.f32 %v6103, %v6263
    %v6296 = vadd.f32 %v6104, %v6264
    %v6297 = vadd.f32 %v6105, %v6265
    %v6298 = vadd.f32 %v6106, %v6266
    %v6299 = vadd.f32 %v6107, %v6267
    %v6300 = vadd.f32 %v6108, %v6268
    %v6301 = vadd.f32 %v6109, %v6269
    %v6302 = vadd.f32 %v6110, %v6270
    %v6303 = vadd.f32 %v6111, %v6271
    %v6304 = vadd.f32 %v6112, %v6272
    %v6305 = vadd.f32 %v6113, %v6273
    %v6306 = vadd.f32 %v6114, %v6274
    %v6307 = vadd.f32 %v6115, %v6275
    %v6308 = vadd.f32 %v6116, %v6276
    %v6309 = vadd.f32 %v6117, %v6277
    %v6310 = vadd.f32 %v6118, %v6278
    %v6311 = vadd.f32 %v6119, %v6279
    %v6312 = vadd.f32 %v6120, %v6280
    %v6313 = vadd.f32 %v6121, %v6281
    %v6314 = vadd.f32 %v6122, %v6282
    %v6315 = vadd.f32 %v6123, %v6283
    %6316 = vset.pattern.permute.xlu0 2
    %6317 = vperm.xlu0 %6316, %v5900
    %v6318 = vpop.permute.xlu0 %6317
    %6320 = vset.pattern.permute.xlu0 2
    %6321 = vperm.xlu0 %6320, %v5901
    %v6322 = vpop.permute.xlu0 %6321
    %6324 = vset.pattern.permute.xlu0 2
    %6325 = vperm.xlu0 %6324, %v5902
    %v6326 = vpop.permute.xlu0 %6325
    %6328 = vset.pattern.permute.xlu0 2
    %6329 = vperm.xlu0 %6328, %v5903
    %v6330 = vpop.permute.xlu0 %6329
    %6332 = vset.pattern.permute.xlu0 2
    %6333 = vperm.xlu0 %6332, %v5904
    %v6334 = vpop.permute.xlu0 %6333
    %6336 = vset.pattern.permute.xlu0 2
    %6337 = vperm.xlu0 %6336, %v5905
    %v6338 = vpop.permute.xlu0 %6337
    %6340 = vset.pattern.permute.xlu0 2
    %6341 = vperm.xlu0 %6340, %v5906
    %v6342 = vpop.permute.xlu0 %6341
    %6344 = vset.pattern.permute.xlu0 2
    %6345 = vperm.xlu0 %6344, %v5907
    %v6346 = vpop.permute.xlu0 %6345
    %6348 = vset.pattern.permute.xlu0 2
    %6349 = vperm.xlu0 %6348, %v5908
    %v6350 = vpop.permute.xlu0 %6349
    %6352 = vset.pattern.permute.xlu0 2
    %6353 = vperm.xlu0 %6352, %v5909
    %v6354 = vpop.permute.xlu0 %6353
    %6356 = vset.pattern.permute.xlu0 2
    %6357 = vperm.xlu0 %6356, %v5910
    %v6358 = vpop.permute.xlu0 %6357
    %6360 = vset.pattern.permute.xlu0 2
    %6361 = vperm.xlu0 %6360, %v5911
    %v6362 = vpop.permute.xlu0 %6361
    %6364 = vset.pattern.permute.xlu0 2
    %6365 = vperm.xlu0 %6364, %v5912
    %v6366 = vpop.permute.xlu0 %6365
    %6368 = vset.pattern.permute.xlu0 2
    %6369 = vperm.xlu0 %6368, %v5913
    %v6370 = vpop.permute.xlu0 %6369
    %6372 = vset.pattern.permute.xlu0 2
    %6373 = vperm.xlu0 %6372, %v5914
    %v6374 = vpop.permute.xlu0 %6373
    %6376 = vset.pattern.permute.xlu0 2
    %6377 = vperm.xlu0 %6376, %v5915
    %v6378 = vpop.permute.xlu0 %6377
    %6380 = vset.pattern.permute.xlu0 2
    %6381 = vperm.xlu0 %6380, %v5916
    %v6382 = vpop.permute.xlu0 %6381
    %6384 = vset.pattern.permute.xlu0 2
    %6385 = vperm.xlu0 %6384, %v5917
    %v6386 = vpop.permute.xlu0 %6385
    %6388 = vset.pattern.permute.xlu0 2
    %6389 = vperm.xlu0 %6388, %v5918
    %v6390 = vpop.permute.xlu0 %6389
    %6392 = vset.pattern.permute.xlu0 2
    %6393 = vperm.xlu0 %6392, %v5919
    %v6394 = vpop.permute.xlu0 %6393
    %6396 = vset.pattern.permute.xlu0 2
    %6397 = vperm.xlu0 %6396, %v5920
    %v6398 = vpop.permute.xlu0 %6397
    %6400 = vset.pattern.permute.xlu0 2
    %6401 = vperm.xlu0 %6400, %v5921
    %v6402 = vpop.permute.xlu0 %6401
    %6404 = vset.pattern.permute.xlu0 2
    %6405 = vperm.xlu0 %6404, %v5922
    %v6406 = vpop.permute.xlu0 %6405
    %6408 = vset.pattern.permute.xlu0 2
    %6409 = vperm.xlu0 %6408, %v5923
    %v6410 = vpop.permute.xlu0 %6409
    %6412 = vset.pattern.permute.xlu0 2
    %6413 = vperm.xlu0 %6412, %v5924
    %v6414 = vpop.permute.xlu0 %6413
    %6416 = vset.pattern.permute.xlu0 2
    %6417 = vperm.xlu0 %6416, %v5925
    %v6418 = vpop.permute.xlu0 %6417
    %6420 = vset.pattern.permute.xlu0 2
    %6421 = vperm.xlu0 %6420, %v5926
    %v6422 = vpop.permute.xlu0 %6421
    %6424 = vset.pattern.permute.xlu0 2
    %6425 = vperm.xlu0 %6424, %v5927
    %v6426 = vpop.permute.xlu0 %6425
    %6428 = vset.pattern.permute.xlu0 2
    %6429 = vperm.xlu0 %6428, %v5928
    %v6430 = vpop.permute.xlu0 %6429
    %6432 = vset.pattern.permute.xlu0 2
    %6433 = vperm.xlu0 %6432, %v5929
    %v6434 = vpop.permute.xlu0 %6433
    %6436 = vset.pattern.permute.xlu0 2
    %6437 = vperm.xlu0 %6436, %v5930
    %v6438 = vpop.permute.xlu0 %6437
    %6440 = vset.pattern.permute.xlu0 2
    %6441 = vperm.xlu0 %6440, %v5931
    %v6442 = vpop.permute.xlu0 %6441
    %v6444 = vmul.f32 %v6318, %v31
    %v6445 = vmul.f32 %v6322, %v31
    %v6446 = vmul.f32 %v6326, %v31
    %v6447 = vmul.f32 %v6330, %v31
    %v6448 = vmul.f32 %v6334, %v31
    %v6449 = vmul.f32 %v6338, %v31
    %v6450 = vmul.f32 %v6342, %v31
    %v6451 = vmul.f32 %v6346, %v31
    %v6452 = vmul.f32 %v6350, %v31
    %v6453 = vmul.f32 %v6354, %v31
    %v6454 = vmul.f32 %v6358, %v31
    %v6455 = vmul.f32 %v6362, %v31
    %v6456 = vmul.f32 %v6366, %v31
    %v6457 = vmul.f32 %v6370, %v31
    %v6458 = vmul.f32 %v6374, %v31
    %v6459 = vmul.f32 %v6378, %v31
    %v6460 = vmul.f32 %v6382, %v31
    %v6461 = vmul.f32 %v6386, %v31
    %v6462 = vmul.f32 %v6390, %v31
    %v6463 = vmul.f32 %v6394, %v31
    %v6464 = vmul.f32 %v6398, %v31
    %v6465 = vmul.f32 %v6402, %v31
    %v6466 = vmul.f32 %v6406, %v31
    %v6467 = vmul.f32 %v6410, %v31
    %v6468 = vmul.f32 %v6414, %v31
    %v6469 = vmul.f32 %v6418, %v31
    %v6470 = vmul.f32 %v6422, %v31
    %v6471 = vmul.f32 %v6426, %v31
    %v6472 = vmul.f32 %v6430, %v31
    %v6473 = vmul.f32 %v6434, %v31
    %v6474 = vmul.f32 %v6438, %v31
    %v6475 = vmul.f32 %v6442, %v31
    %v6476 = vadd.f32 %v6284, %v6444
    %v6477 = vadd.f32 %v6285, %v6445
    %v6478 = vadd.f32 %v6286, %v6446
    %v6479 = vadd.f32 %v6287, %v6447
    %v6480 = vadd.f32 %v6288, %v6448
    %v6481 = vadd.f32 %v6289, %v6449
    %v6482 = vadd.f32 %v6290, %v6450
    %v6483 = vadd.f32 %v6291, %v6451
    %v6484 = vadd.f32 %v6292, %v6452
    %v6485 = vadd.f32 %v6293, %v6453
    %v6486 = vadd.f32 %v6294, %v6454
    %v6487 = vadd.f32 %v6295, %v6455
    %v6488 = vadd.f32 %v6296, %v6456
    %v6489 = vadd.f32 %v6297, %v6457
    %v6490 = vadd.f32 %v6298, %v6458
    %v6491 = vadd.f32 %v6299, %v6459
    %v6492 = vadd.f32 %v6300, %v6460
    %v6493 = vadd.f32 %v6301, %v6461
    %v6494 = vadd.f32 %v6302, %v6462
    %v6495 = vadd.f32 %v6303, %v6463
    %v6496 = vadd.f32 %v6304, %v6464
    %v6497 = vadd.f32 %v6305, %v6465
    %v6498 = vadd.f32 %v6306, %v6466
    %v6499 = vadd.f32 %v6307, %v6467
    %v6500 = vadd.f32 %v6308, %v6468
    %v6501 = vadd.f32 %v6309, %v6469
    %v6502 = vadd.f32 %v6310, %v6470
    %v6503 = vadd.f32 %v6311, %v6471
    %v6504 = vadd.f32 %v6312, %v6472
    %v6505 = vadd.f32 %v6313, %v6473
    %v6506 = vadd.f32 %v6314, %v6474
    %v6507 = vadd.f32 %v6315, %v6475
    %v6540 = vrot.slane %v6476, 2
    %v6541 = vrot.slane %v6477, 2
    %v6542 = vrot.slane %v6478, 2
    %v6543 = vrot.slane %v6479, 2
    %v6544 = vrot.slane %v6480, 2
    %v6545 = vrot.slane %v6481, 2
    %v6546 = vrot.slane %v6482, 2
    %v6547 = vrot.slane %v6483, 2
    %v6548 = vrot.slane %v6484, 2
    %v6549 = vrot.slane %v6485, 2
    %v6550 = vrot.slane %v6486, 2
    %v6551 = vrot.slane %v6487, 2
    %v6552 = vrot.slane %v6488, 2
    %v6553 = vrot.slane %v6489, 2
    %v6554 = vrot.slane %v6490, 2
    %v6555 = vrot.slane %v6491, 2
    %v6556 = vrot.slane %v6492, 2
    %v6557 = vrot.slane %v6493, 2
    %v6558 = vrot.slane %v6494, 2
    %v6559 = vrot.slane %v6495, 2
    %v6560 = vrot.slane %v6496, 2
    %v6561 = vrot.slane %v6497, 2
    %v6562 = vrot.slane %v6498, 2
    %v6563 = vrot.slane %v6499, 2
    %v6564 = vrot.slane %v6500, 2
    %v6565 = vrot.slane %v6501, 2
    %v6566 = vrot.slane %v6502, 2
    %v6567 = vrot.slane %v6503, 2
    %v6568 = vrot.slane %v6504, 2
    %v6569 = vrot.slane %v6505, 2
    %v6570 = vrot.slane %v6506, 2
    %v6571 = vrot.slane %v6507, 2
    %v6604 = vmul.f32 %v5868, %v6540
    %v6605 = vmul.f32 %v5869, %v6541
    %v6606 = vmul.f32 %v5870, %v6542
    %v6607 = vmul.f32 %v5871, %v6543
    %v6608 = vmul.f32 %v5872, %v6544
    %v6609 = vmul.f32 %v5873, %v6545
    %v6610 = vmul.f32 %v5874, %v6546
    %v6611 = vmul.f32 %v5875, %v6547
    %v6612 = vmul.f32 %v5876, %v6548
    %v6613 = vmul.f32 %v5877, %v6549
    %v6614 = vmul.f32 %v5878, %v6550
    %v6615 = vmul.f32 %v5879, %v6551
    %v6616 = vmul.f32 %v5880, %v6552
    %v6617 = vmul.f32 %v5881, %v6553
    %v6618 = vmul.f32 %v5882, %v6554
    %v6619 = vmul.f32 %v5883, %v6555
    %v6620 = vmul.f32 %v5884, %v6556
    %v6621 = vmul.f32 %v5885, %v6557
    %v6622 = vmul.f32 %v5886, %v6558
    %v6623 = vmul.f32 %v5887, %v6559
    %v6624 = vmul.f32 %v5888, %v6560
    %v6625 = vmul.f32 %v5889, %v6561
    %v6626 = vmul.f32 %v5890, %v6562
    %v6627 = vmul.f32 %v5891, %v6563
    %v6628 = vmul.f32 %v5892, %v6564
    %v6629 = vmul.f32 %v5893, %v6565
    %v6630 = vmul.f32 %v5894, %v6566
    %v6631 = vmul.f32 %v5895, %v6567
    %v6632 = vmul.f32 %v5896, %v6568
    %v6633 = vmul.f32 %v5897, %v6569
    %v6634 = vmul.f32 %v5898, %v6570
    %v6635 = vmul.f32 %v5899, %v6571
    %v6636 = vpack.c.bf16 %v6604, %v6604
    %v6637 = vpack.c.bf16 %v6605, %v6605
    %v6638 = vpack.c.bf16 %v6606, %v6606
    %v6639 = vpack.c.bf16 %v6607, %v6607
    %v6640 = vpack.c.bf16 %v6608, %v6608
    %v6641 = vpack.c.bf16 %v6609, %v6609
    %v6642 = vpack.c.bf16 %v6610, %v6610
    %v6643 = vpack.c.bf16 %v6611, %v6611
    %v6644 = vpack.c.bf16 %v6612, %v6612
    %v6645 = vpack.c.bf16 %v6613, %v6613
    %v6646 = vpack.c.bf16 %v6614, %v6614
    %v6647 = vpack.c.bf16 %v6615, %v6615
    %v6648 = vpack.c.bf16 %v6616, %v6616
    %v6649 = vpack.c.bf16 %v6617, %v6617
    %v6650 = vpack.c.bf16 %v6618, %v6618
    %v6651 = vpack.c.bf16 %v6619, %v6619
    %v6652 = vpack.c.bf16 %v6620, %v6620
    %v6653 = vpack.c.bf16 %v6621, %v6621
    %v6654 = vpack.c.bf16 %v6622, %v6622
    %v6655 = vpack.c.bf16 %v6623, %v6623
    %v6656 = vpack.c.bf16 %v6624, %v6624
    %v6657 = vpack.c.bf16 %v6625, %v6625
    %v6658 = vpack.c.bf16 %v6626, %v6626
    %v6659 = vpack.c.bf16 %v6627, %v6627
    %v6660 = vpack.c.bf16 %v6628, %v6628
    %v6661 = vpack.c.bf16 %v6629, %v6629
    %v6662 = vpack.c.bf16 %v6630, %v6630
    %v6663 = vpack.c.bf16 %v6631, %v6631
    %v6664 = vpack.c.bf16 %v6632, %v6632
    %v6665 = vpack.c.bf16 %v6633, %v6633
    %v6666 = vpack.c.bf16 %v6634, %v6634
    %v6667 = vpack.c.bf16 %v6635, %v6635
    %v6700 = vunpack.c.l.b16 %v6636
    %v6701 = vunpack.c.l.b16 %v6637
    %v6702 = vunpack.c.l.b16 %v6638
    %v6703 = vunpack.c.l.b16 %v6639
    %v6704 = vunpack.c.l.b16 %v6640
    %v6705 = vunpack.c.l.b16 %v6641
    %v6706 = vunpack.c.l.b16 %v6642
    %v6707 = vunpack.c.l.b16 %v6643
    %v6708 = vunpack.c.l.b16 %v6644
    %v6709 = vunpack.c.l.b16 %v6645
    %v6710 = vunpack.c.l.b16 %v6646
    %v6711 = vunpack.c.l.b16 %v6647
    %v6712 = vunpack.c.l.b16 %v6648
    %v6713 = vunpack.c.l.b16 %v6649
    %v6714 = vunpack.c.l.b16 %v6650
    %v6715 = vunpack.c.l.b16 %v6651
    %v6716 = vunpack.c.l.b16 %v6652
    %v6717 = vunpack.c.l.b16 %v6653
    %v6718 = vunpack.c.l.b16 %v6654
    %v6719 = vunpack.c.l.b16 %v6655
    %v6720 = vunpack.c.l.b16 %v6656
    %v6721 = vunpack.c.l.b16 %v6657
    %v6722 = vunpack.c.l.b16 %v6658
    %v6723 = vunpack.c.l.b16 %v6659
    %v6724 = vunpack.c.l.b16 %v6660
    %v6725 = vunpack.c.l.b16 %v6661
    %v6726 = vunpack.c.l.b16 %v6662
    %v6727 = vunpack.c.l.b16 %v6663
    %v6728 = vunpack.c.l.b16 %v6664
    %v6729 = vunpack.c.l.b16 %v6665
    %v6730 = vunpack.c.l.b16 %v6666
    %v6731 = vunpack.c.l.b16 %v6667
    %v6732 = vrot.slane %v6700, 6
    %v6733 = vrot.slane %v6701, 5
    %v6734 = vsel %vm836, %v6733, %v6732
    %v6735 = vrot.slane %v6702, 4
    %v6736 = vsel %vm839, %v6735, %v6734
    %v6737 = vrot.slane %v6703, 3
    %v6738 = vsel %vm842, %v6737, %v6736
    %v6739 = vrot.slane %v6704, 2
    %v6740 = vsel %vm845, %v6739, %v6738
    %v6741 = vrot.slane %v6705, 1
    %v6742 = vsel %vm848, %v6741, %v6740
    %v6743 = vsel %vm851, %v6706, %v6742
    %v6744 = vrot.slane %v6707, 7
    %v6745 = vsel %vm854, %v6744, %v6743
    %v6746 = vrot.slane %v6708, 6
    %v6747 = vrot.slane %v6709, 5
    %v6748 = vsel %vm836, %v6747, %v6746
    %v6749 = vrot.slane %v6710, 4
    %v6750 = vsel %vm839, %v6749, %v6748
    %v6751 = vrot.slane %v6711, 3
    %v6752 = vsel %vm842, %v6751, %v6750
    %v6753 = vrot.slane %v6712, 2
    %v6754 = vsel %vm845, %v6753, %v6752
    %v6755 = vrot.slane %v6713, 1
    %v6756 = vsel %vm848, %v6755, %v6754
    %v6757 = vsel %vm851, %v6714, %v6756
    %v6758 = vrot.slane %v6715, 7
    %v6759 = vsel %vm854, %v6758, %v6757
    %v6760 = vrot.slane %v6716, 6
    %v6761 = vrot.slane %v6717, 5
    %v6762 = vsel %vm836, %v6761, %v6760
    %v6763 = vrot.slane %v6718, 4
    %v6764 = vsel %vm839, %v6763, %v6762
    %v6765 = vrot.slane %v6719, 3
    %v6766 = vsel %vm842, %v6765, %v6764
    %v6767 = vrot.slane %v6720, 2
    %v6768 = vsel %vm845, %v6767, %v6766
    %v6769 = vrot.slane %v6721, 1
    %v6770 = vsel %vm848, %v6769, %v6768
    %v6771 = vsel %vm851, %v6722, %v6770
    %v6772 = vrot.slane %v6723, 7
    %v6773 = vsel %vm854, %v6772, %v6771
    %v6774 = vrot.slane %v6724, 6
    %v6775 = vrot.slane %v6725, 5
    %v6776 = vsel %vm836, %v6775, %v6774
    %v6777 = vrot.slane %v6726, 4
    %v6778 = vsel %vm839, %v6777, %v6776
    %v6779 = vrot.slane %v6727, 3
    %v6780 = vsel %vm842, %v6779, %v6778
    %v6781 = vrot.slane %v6728, 2
    %v6782 = vsel %vm845, %v6781, %v6780
    %v6783 = vrot.slane %v6729, 1
    %v6784 = vsel %vm848, %v6783, %v6782
    %v6785 = vsel %vm851, %v6730, %v6784
    %v6786 = vrot.slane %v6731, 7
    %v6787 = vsel %vm854, %v6786, %v6785
    %v6788 = vpack.c.b16 %v6759, %v6745
    %v6789 = vpack.c.b16 %v6787, %v6773
    %v6791 = vsel %vm900, %v6788, 0
    %v6794 = vsel %vm900, %v6789, 0
    %6796 = vmatprep.subr.bf16.mxu0 0
    %6797 = vmatpush1.bf16.msra.mxu0 %v912
    %6798 = vmatprep.subr.bf16.mxu0 0
    %6799 = vmatpush1.bf16.msra.mxu0 0
    %6800 = vmatprep.subr.bf16.mxu0 0
    %6801 = vmatpush1.bf16.msra.mxu0 0
    %6802 = vmatprep.subr.bf16.mxu0 0
    %6803 = vmatpush1.bf16.msra.mxu0 0
    %6804 = vmatprep.subr.bf16.mxu0 0
    %6805 = vmatpush1.bf16.msra.mxu0 0
    %6806 = vmatprep.subr.bf16.mxu0 0
    %6807 = vmatpush1.bf16.msra.mxu0 0
    %6808 = vmatprep.subr.bf16.mxu0 0
    %6809 = vmatpush1.bf16.msra.mxu0 0
    %6810 = vmatprep.subr.bf16.mxu0 0
    %6811 = vmatpush1.bf16.msra.mxu0 0
    %6812 = vmatprep.subr.bf16.mxu0 0
    %6813 = vmatpush1.bf16.msra.mxu0 0
    %6814 = vmatprep.subr.bf16.mxu0 0
    %6815 = vmatpush1.bf16.msra.mxu0 0
    %6816 = vmatprep.subr.bf16.mxu0 0
    %6817 = vmatpush1.bf16.msra.mxu0 0
    %6818 = vmatprep.subr.bf16.mxu0 0
    %6819 = vmatpush1.bf16.msra.mxu0 0
    %6820 = vmatprep.subr.bf16.mxu0 0
    %6821 = vmatpush1.bf16.msra.mxu0 0
    %6822 = vmatprep.subr.bf16.mxu0 0
    %6823 = vmatpush1.bf16.msra.mxu0 0
    %6824 = vmatprep.subr.bf16.mxu0 0
    %6825 = vmatpush1.bf16.msra.mxu0 0
    %6826 = vmatprep.subr.bf16.mxu0 0
    %6827 = vmatpush1.bf16.msra.mxu0 0
    %6828 = vmatprep.mubr.bf16.mxu0 0
    %6829 = vmatmul.mubr.bf16.gmra.mrb[0].mxu0 %v6791
    %v6830 = vpop.f32.mrb[0].mxu0
    %v6831 = vadd.f32 0.0, %v6830
    %v6832 = vpop.f32.mrb[0].mxu0
    %v6833 = vpop.f32.mrb[0].mxu0
    %v6834 = vadd.f32 0.0, %v6833
    %v6835 = vpop.f32.mrb[0].mxu0
    %6836 = vmatprep.mubr.bf16.mxu0 0
    %6837 = vmatmul.mubr.bf16.gmra.mrb[0].mxu0 %v6794
    %v6838 = vpop.f32.mrb[0].mxu0
    %v6839 = vadd.f32 0.0, %v6838
    %v6840 = vpop.f32.mrb[0].mxu0
    %v6841 = vpop.f32.mrb[0].mxu0
    %v6842 = vadd.f32 0.0, %v6841
    %v6843 = vpop.f32.mrb[0].mxu0
    %6844 = vdwg.mxu0
    %v6845 = vmax.f32 %v5832, %v6831
    %v6846 = vmax.f32 %v5833, %v6834
    %v6847 = vmax.f32 %v5834, %v6839
    %v6848 = vmax.f32 %v5835, %v6842
    %v6849 = vld [vmem:[%s1 + $0x7] sm:$0x1]
    %v6850 = vld [vmem:[%s1 + $0xf] sm:$0x1]
    %v6851 = vld [vmem:[%s1 + $0x17] sm:$0x1]
    %v6852 = vld [vmem:[%s1 + $0x1f] sm:$0x1]
    %v6853 = vld [vmem:[%s1 + $0x27] sm:$0x1]
    %v6854 = vld [vmem:[%s1 + $0x2f] sm:$0x1]
    %v6855 = vld [vmem:[%s1 + $0x37] sm:$0x1]
    %v6856 = vld [vmem:[%s1 + $0x3f] sm:$0x1]
    %v6857 = vld [vmem:[%s1 + $0x47] sm:$0x1]
    %v6858 = vld [vmem:[%s1 + $0x4f] sm:$0x1]
    %v6859 = vld [vmem:[%s1 + $0x57] sm:$0x1]
    %v6860 = vld [vmem:[%s1 + $0x5f] sm:$0x1]
    %v6861 = vld [vmem:[%s1 + $0x67] sm:$0x1]
    %v6862 = vld [vmem:[%s1 + $0x6f] sm:$0x1]
    %v6863 = vld [vmem:[%s1 + $0x77] sm:$0x1]
    %v6864 = vld [vmem:[%s1 + $0x7f] sm:$0x1]
    %v6865 = vld [vmem:[%s1 + $0x87] sm:$0x1]
    %v6866 = vld [vmem:[%s1 + $0x8f] sm:$0x1]
    %v6867 = vld [vmem:[%s1 + $0x97] sm:$0x1]
    %v6868 = vld [vmem:[%s1 + $0x9f] sm:$0x1]
    %v6869 = vld [vmem:[%s1 + $0xa7] sm:$0x1]
    %v6870 = vld [vmem:[%s1 + $0xaf] sm:$0x1]
    %v6871 = vld [vmem:[%s1 + $0xb7] sm:$0x1]
    %v6872 = vld [vmem:[%s1 + $0xbf] sm:$0x1]
    %v6873 = vld [vmem:[%s1 + $0xc7] sm:$0x1]
    %v6874 = vld [vmem:[%s1 + $0xcf] sm:$0x1]
    %v6875 = vld [vmem:[%s1 + $0xd7] sm:$0x1]
    %v6876 = vld [vmem:[%s1 + $0xdf] sm:$0x1]
    %v6877 = vld [vmem:[%s1 + $0xe7] sm:$0x1]
    %v6878 = vld [vmem:[%s1 + $0xef] sm:$0x1]
    %v6879 = vld [vmem:[%s1 + $0xf7] sm:$0x1]
    %v6880 = vld [vmem:[%s1 + $0xff] sm:$0x1]
    %6882 = vset.pattern.permute.xlu0 0
    %6883 = vperm.xlu0 %6882, %v6849
    %v6884 = vpop.permute.xlu0 %6883
    %6887 = vset.pattern.permute.xlu0 0
    %6888 = vperm.xlu0 %6887, %v6850
    %v6889 = vpop.permute.xlu0 %6888
    %6892 = vset.pattern.permute.xlu0 0
    %6893 = vperm.xlu0 %6892, %v6851
    %v6894 = vpop.permute.xlu0 %6893
    %6897 = vset.pattern.permute.xlu0 0
    %6898 = vperm.xlu0 %6897, %v6852
    %v6899 = vpop.permute.xlu0 %6898
    %6902 = vset.pattern.permute.xlu0 0
    %6903 = vperm.xlu0 %6902, %v6853
    %v6904 = vpop.permute.xlu0 %6903
    %6907 = vset.pattern.permute.xlu0 0
    %6908 = vperm.xlu0 %6907, %v6854
    %v6909 = vpop.permute.xlu0 %6908
    %6912 = vset.pattern.permute.xlu0 0
    %6913 = vperm.xlu0 %6912, %v6855
    %v6914 = vpop.permute.xlu0 %6913
    %6917 = vset.pattern.permute.xlu0 0
    %6918 = vperm.xlu0 %6917, %v6856
    %v6919 = vpop.permute.xlu0 %6918
    %6922 = vset.pattern.permute.xlu0 0
    %6923 = vperm.xlu0 %6922, %v6857
    %v6924 = vpop.permute.xlu0 %6923
    %6927 = vset.pattern.permute.xlu0 0
    %6928 = vperm.xlu0 %6927, %v6858
    %v6929 = vpop.permute.xlu0 %6928
    %6932 = vset.pattern.permute.xlu0 0
    %6933 = vperm.xlu0 %6932, %v6859
    %v6934 = vpop.permute.xlu0 %6933
    %6937 = vset.pattern.permute.xlu0 0
    %6938 = vperm.xlu0 %6937, %v6860
    %v6939 = vpop.permute.xlu0 %6938
    %6942 = vset.pattern.permute.xlu0 0
    %6943 = vperm.xlu0 %6942, %v6861
    %v6944 = vpop.permute.xlu0 %6943
    %6947 = vset.pattern.permute.xlu0 0
    %6948 = vperm.xlu0 %6947, %v6862
    %v6949 = vpop.permute.xlu0 %6948
    %6952 = vset.pattern.permute.xlu0 0
    %6953 = vperm.xlu0 %6952, %v6863
    %v6954 = vpop.permute.xlu0 %6953
    %6957 = vset.pattern.permute.xlu0 0
    %6958 = vperm.xlu0 %6957, %v6864
    %v6959 = vpop.permute.xlu0 %6958
    %6962 = vset.pattern.permute.xlu0 0
    %6963 = vperm.xlu0 %6962, %v6865
    %v6964 = vpop.permute.xlu0 %6963
    %6967 = vset.pattern.permute.xlu0 0
    %6968 = vperm.xlu0 %6967, %v6866
    %v6969 = vpop.permute.xlu0 %6968
    %6972 = vset.pattern.permute.xlu0 0
    %6973 = vperm.xlu0 %6972, %v6867
    %v6974 = vpop.permute.xlu0 %6973
    %6977 = vset.pattern.permute.xlu0 0
    %6978 = vperm.xlu0 %6977, %v6868
    %v6979 = vpop.permute.xlu0 %6978
    %6982 = vset.pattern.permute.xlu0 0
    %6983 = vperm.xlu0 %6982, %v6869
    %v6984 = vpop.permute.xlu0 %6983
    %6987 = vset.pattern.permute.xlu0 0
    %6988 = vperm.xlu0 %6987, %v6870
    %v6989 = vpop.permute.xlu0 %6988
    %6992 = vset.pattern.permute.xlu0 0
    %6993 = vperm.xlu0 %6992, %v6871
    %v6994 = vpop.permute.xlu0 %6993
    %6997 = vset.pattern.permute.xlu0 0
    %6998 = vperm.xlu0 %6997, %v6872
    %v6999 = vpop.permute.xlu0 %6998
    %7002 = vset.pattern.permute.xlu0 0
    %7003 = vperm.xlu0 %7002, %v6873
    %v7004 = vpop.permute.xlu0 %7003
    %7007 = vset.pattern.permute.xlu0 0
    %7008 = vperm.xlu0 %7007, %v6874
    %v7009 = vpop.permute.xlu0 %7008
    %7012 = vset.pattern.permute.xlu0 0
    %7013 = vperm.xlu0 %7012, %v6875
    %v7014 = vpop.permute.xlu0 %7013
    %7017 = vset.pattern.permute.xlu0 0
    %7018 = vperm.xlu0 %7017, %v6876
    %v7019 = vpop.permute.xlu0 %7018
    %7022 = vset.pattern.permute.xlu0 0
    %7023 = vperm.xlu0 %7022, %v6877
    %v7024 = vpop.permute.xlu0 %7023
    %7027 = vset.pattern.permute.xlu0 0
    %7028 = vperm.xlu0 %7027, %v6878
    %v7029 = vpop.permute.xlu0 %7028
    %7032 = vset.pattern.permute.xlu0 0
    %7033 = vperm.xlu0 %7032, %v6879
    %v7034 = vpop.permute.xlu0 %7033
    %7037 = vset.pattern.permute.xlu0 0
    %7038 = vperm.xlu0 %7037, %v6880
    %v7039 = vpop.permute.xlu0 %7038
    %v7041 = vmul.f32 %v6884, %v23
    %v7042 = vmul.f32 %v6889, %v23
    %v7043 = vmul.f32 %v6894, %v23
    %v7044 = vmul.f32 %v6899, %v23
    %v7045 = vmul.f32 %v6904, %v23
    %v7046 = vmul.f32 %v6909, %v23
    %v7047 = vmul.f32 %v6914, %v23
    %v7048 = vmul.f32 %v6919, %v23
    %v7049 = vmul.f32 %v6924, %v23
    %v7050 = vmul.f32 %v6929, %v23
    %v7051 = vmul.f32 %v6934, %v23
    %v7052 = vmul.f32 %v6939, %v23
    %v7053 = vmul.f32 %v6944, %v23
    %v7054 = vmul.f32 %v6949, %v23
    %v7055 = vmul.f32 %v6954, %v23
    %v7056 = vmul.f32 %v6959, %v23
    %v7057 = vmul.f32 %v6964, %v23
    %v7058 = vmul.f32 %v6969, %v23
    %v7059 = vmul.f32 %v6974, %v23
    %v7060 = vmul.f32 %v6979, %v23
    %v7061 = vmul.f32 %v6984, %v23
    %v7062 = vmul.f32 %v6989, %v23
    %v7063 = vmul.f32 %v6994, %v23
    %v7064 = vmul.f32 %v6999, %v23
    %v7065 = vmul.f32 %v7004, %v23
    %v7066 = vmul.f32 %v7009, %v23
    %v7067 = vmul.f32 %v7014, %v23
    %v7068 = vmul.f32 %v7019, %v23
    %v7069 = vmul.f32 %v7024, %v23
    %v7070 = vmul.f32 %v7029, %v23
    %v7071 = vmul.f32 %v7034, %v23
    %v7072 = vmul.f32 %v7039, %v23
    %7073 = vset.pattern.permute.xlu0 1
    %7074 = vperm.xlu0 %7073, %v6849
    %v7075 = vpop.permute.xlu0 %7074
    %7077 = vset.pattern.permute.xlu0 1
    %7078 = vperm.xlu0 %7077, %v6850
    %v7079 = vpop.permute.xlu0 %7078
    %7081 = vset.pattern.permute.xlu0 1
    %7082 = vperm.xlu0 %7081, %v6851
    %v7083 = vpop.permute.xlu0 %7082
    %7085 = vset.pattern.permute.xlu0 1
    %7086 = vperm.xlu0 %7085, %v6852
    %v7087 = vpop.permute.xlu0 %7086
    %7089 = vset.pattern.permute.xlu0 1
    %7090 = vperm.xlu0 %7089, %v6853
    %v7091 = vpop.permute.xlu0 %7090
    %7093 = vset.pattern.permute.xlu0 1
    %7094 = vperm.xlu0 %7093, %v6854
    %v7095 = vpop.permute.xlu0 %7094
    %7097 = vset.pattern.permute.xlu0 1
    %7098 = vperm.xlu0 %7097, %v6855
    %v7099 = vpop.permute.xlu0 %7098
    %7101 = vset.pattern.permute.xlu0 1
    %7102 = vperm.xlu0 %7101, %v6856
    %v7103 = vpop.permute.xlu0 %7102
    %7105 = vset.pattern.permute.xlu0 1
    %7106 = vperm.xlu0 %7105, %v6857
    %v7107 = vpop.permute.xlu0 %7106
    %7109 = vset.pattern.permute.xlu0 1
    %7110 = vperm.xlu0 %7109, %v6858
    %v7111 = vpop.permute.xlu0 %7110
    %7113 = vset.pattern.permute.xlu0 1
    %7114 = vperm.xlu0 %7113, %v6859
    %v7115 = vpop.permute.xlu0 %7114
    %7117 = vset.pattern.permute.xlu0 1
    %7118 = vperm.xlu0 %7117, %v6860
    %v7119 = vpop.permute.xlu0 %7118
    %7121 = vset.pattern.permute.xlu0 1
    %7122 = vperm.xlu0 %7121, %v6861
    %v7123 = vpop.permute.xlu0 %7122
    %7125 = vset.pattern.permute.xlu0 1
    %7126 = vperm.xlu0 %7125, %v6862
    %v7127 = vpop.permute.xlu0 %7126
    %7129 = vset.pattern.permute.xlu0 1
    %7130 = vperm.xlu0 %7129, %v6863
    %v7131 = vpop.permute.xlu0 %7130
    %7133 = vset.pattern.permute.xlu0 1
    %7134 = vperm.xlu0 %7133, %v6864
    %v7135 = vpop.permute.xlu0 %7134
    %7137 = vset.pattern.permute.xlu0 1
    %7138 = vperm.xlu0 %7137, %v6865
    %v7139 = vpop.permute.xlu0 %7138
    %7141 = vset.pattern.permute.xlu0 1
    %7142 = vperm.xlu0 %7141, %v6866
    %v7143 = vpop.permute.xlu0 %7142
    %7145 = vset.pattern.permute.xlu0 1
    %7146 = vperm.xlu0 %7145, %v6867
    %v7147 = vpop.permute.xlu0 %7146
    %7149 = vset.pattern.permute.xlu0 1
    %7150 = vperm.xlu0 %7149, %v6868
    %v7151 = vpop.permute.xlu0 %7150
    %7153 = vset.pattern.permute.xlu0 1
    %7154 = vperm.xlu0 %7153, %v6869
    %v7155 = vpop.permute.xlu0 %7154
    %7157 = vset.pattern.permute.xlu0 1
    %7158 = vperm.xlu0 %7157, %v6870
    %v7159 = vpop.permute.xlu0 %7158
    %7161 = vset.pattern.permute.xlu0 1
    %7162 = vperm.xlu0 %7161, %v6871
    %v7163 = vpop.permute.xlu0 %7162
    %7165 = vset.pattern.permute.xlu0 1
    %7166 = vperm.xlu0 %7165, %v6872
    %v7167 = vpop.permute.xlu0 %7166
    %7169 = vset.pattern.permute.xlu0 1
    %7170 = vperm.xlu0 %7169, %v6873
    %v7171 = vpop.permute.xlu0 %7170
    %7173 = vset.pattern.permute.xlu0 1
    %7174 = vperm.xlu0 %7173, %v6874
    %v7175 = vpop.permute.xlu0 %7174
    %7177 = vset.pattern.permute.xlu0 1
    %7178 = vperm.xlu0 %7177, %v6875
    %v7179 = vpop.permute.xlu0 %7178
    %7181 = vset.pattern.permute.xlu0 1
    %7182 = vperm.xlu0 %7181, %v6876
    %v7183 = vpop.permute.xlu0 %7182
    %7185 = vset.pattern.permute.xlu0 1
    %7186 = vperm.xlu0 %7185, %v6877
    %v7187 = vpop.permute.xlu0 %7186
    %7189 = vset.pattern.permute.xlu0 1
    %7190 = vperm.xlu0 %7189, %v6878
    %v7191 = vpop.permute.xlu0 %7190
    %7193 = vset.pattern.permute.xlu0 1
    %7194 = vperm.xlu0 %7193, %v6879
    %v7195 = vpop.permute.xlu0 %7194
    %7197 = vset.pattern.permute.xlu0 1
    %7198 = vperm.xlu0 %7197, %v6880
    %v7199 = vpop.permute.xlu0 %7198
    %v7201 = vmul.f32 %v7075, %v28
    %v7202 = vmul.f32 %v7079, %v28
    %v7203 = vmul.f32 %v7083, %v28
    %v7204 = vmul.f32 %v7087, %v28
    %v7205 = vmul.f32 %v7091, %v28
    %v7206 = vmul.f32 %v7095, %v28
    %v7207 = vmul.f32 %v7099, %v28
    %v7208 = vmul.f32 %v7103, %v28
    %v7209 = vmul.f32 %v7107, %v28
    %v7210 = vmul.f32 %v7111, %v28
    %v7211 = vmul.f32 %v7115, %v28
    %v7212 = vmul.f32 %v7119, %v28
    %v7213 = vmul.f32 %v7123, %v28
    %v7214 = vmul.f32 %v7127, %v28
    %v7215 = vmul.f32 %v7131, %v28
    %v7216 = vmul.f32 %v7135, %v28
    %v7217 = vmul.f32 %v7139, %v28
    %v7218 = vmul.f32 %v7143, %v28
    %v7219 = vmul.f32 %v7147, %v28
    %v7220 = vmul.f32 %v7151, %v28
    %v7221 = vmul.f32 %v7155, %v28
    %v7222 = vmul.f32 %v7159, %v28
    %v7223 = vmul.f32 %v7163, %v28
    %v7224 = vmul.f32 %v7167, %v28
    %v7225 = vmul.f32 %v7171, %v28
    %v7226 = vmul.f32 %v7175, %v28
    %v7227 = vmul.f32 %v7179, %v28
    %v7228 = vmul.f32 %v7183, %v28
    %v7229 = vmul.f32 %v7187, %v28
    %v7230 = vmul.f32 %v7191, %v28
    %v7231 = vmul.f32 %v7195, %v28
    %v7232 = vmul.f32 %v7199, %v28
    %v7233 = vadd.f32 %v7041, %v7201
    %v7234 = vadd.f32 %v7042, %v7202
    %v7235 = vadd.f32 %v7043, %v7203
    %v7236 = vadd.f32 %v7044, %v7204
    %v7237 = vadd.f32 %v7045, %v7205
    %v7238 = vadd.f32 %v7046, %v7206
    %v7239 = vadd.f32 %v7047, %v7207
    %v7240 = vadd.f32 %v7048, %v7208
    %v7241 = vadd.f32 %v7049, %v7209
    %v7242 = vadd.f32 %v7050, %v7210
    %v7243 = vadd.f32 %v7051, %v7211
    %v7244 = vadd.f32 %v7052, %v7212
    %v7245 = vadd.f32 %v7053, %v7213
    %v7246 = vadd.f32 %v7054, %v7214
    %v7247 = vadd.f32 %v7055, %v7215
    %v7248 = vadd.f32 %v7056, %v7216
    %v7249 = vadd.f32 %v7057, %v7217
    %v7250 = vadd.f32 %v7058, %v7218
    %v7251 = vadd.f32 %v7059, %v7219
    %v7252 = vadd.f32 %v7060, %v7220
    %v7253 = vadd.f32 %v7061, %v7221
    %v7254 = vadd.f32 %v7062, %v7222
    %v7255 = vadd.f32 %v7063, %v7223
    %v7256 = vadd.f32 %v7064, %v7224
    %v7257 = vadd.f32 %v7065, %v7225
    %v7258 = vadd.f32 %v7066, %v7226
    %v7259 = vadd.f32 %v7067, %v7227
    %v7260 = vadd.f32 %v7068, %v7228
    %v7261 = vadd.f32 %v7069, %v7229
    %v7262 = vadd.f32 %v7070, %v7230
    %v7263 = vadd.f32 %v7071, %v7231
    %v7264 = vadd.f32 %v7072, %v7232
    %7265 = vset.pattern.permute.xlu0 2
    %7266 = vperm.xlu0 %7265, %v6849
    %v7267 = vpop.permute.xlu0 %7266
    %7269 = vset.pattern.permute.xlu0 2
    %7270 = vperm.xlu0 %7269, %v6850
    %v7271 = vpop.permute.xlu0 %7270
    %7273 = vset.pattern.permute.xlu0 2
    %7274 = vperm.xlu0 %7273, %v6851
    %v7275 = vpop.permute.xlu0 %7274
    %7277 = vset.pattern.permute.xlu0 2
    %7278 = vperm.xlu0 %7277, %v6852
    %v7279 = vpop.permute.xlu0 %7278
    %7281 = vset.pattern.permute.xlu0 2
    %7282 = vperm.xlu0 %7281, %v6853
    %v7283 = vpop.permute.xlu0 %7282
    %7285 = vset.pattern.permute.xlu0 2
    %7286 = vperm.xlu0 %7285, %v6854
    %v7287 = vpop.permute.xlu0 %7286
    %7289 = vset.pattern.permute.xlu0 2
    %7290 = vperm.xlu0 %7289, %v6855
    %v7291 = vpop.permute.xlu0 %7290
    %7293 = vset.pattern.permute.xlu0 2
    %7294 = vperm.xlu0 %7293, %v6856
    %v7295 = vpop.permute.xlu0 %7294
    %7297 = vset.pattern.permute.xlu0 2
    %7298 = vperm.xlu0 %7297, %v6857
    %v7299 = vpop.permute.xlu0 %7298
    %7301 = vset.pattern.permute.xlu0 2
    %7302 = vperm.xlu0 %7301, %v6858
    %v7303 = vpop.permute.xlu0 %7302
    %7305 = vset.pattern.permute.xlu0 2
    %7306 = vperm.xlu0 %7305, %v6859
    %v7307 = vpop.permute.xlu0 %7306
    %7309 = vset.pattern.permute.xlu0 2
    %7310 = vperm.xlu0 %7309, %v6860
    %v7311 = vpop.permute.xlu0 %7310
    %7313 = vset.pattern.permute.xlu0 2
    %7314 = vperm.xlu0 %7313, %v6861
    %v7315 = vpop.permute.xlu0 %7314
    %7317 = vset.pattern.permute.xlu0 2
    %7318 = vperm.xlu0 %7317, %v6862
    %v7319 = vpop.permute.xlu0 %7318
    %7321 = vset.pattern.permute.xlu0 2
    %7322 = vperm.xlu0 %7321, %v6863
    %v7323 = vpop.permute.xlu0 %7322
    %7325 = vset.pattern.permute.xlu0 2
    %7326 = vperm.xlu0 %7325, %v6864
    %v7327 = vpop.permute.xlu0 %7326
    %7329 = vset.pattern.permute.xlu0 2
    %7330 = vperm.xlu0 %7329, %v6865
    %v7331 = vpop.permute.xlu0 %7330
    %7333 = vset.pattern.permute.xlu0 2
    %7334 = vperm.xlu0 %7333, %v6866
    %v7335 = vpop.permute.xlu0 %7334
    %7337 = vset.pattern.permute.xlu0 2
    %7338 = vperm.xlu0 %7337, %v6867
    %v7339 = vpop.permute.xlu0 %7338
    %7341 = vset.pattern.permute.xlu0 2
    %7342 = vperm.xlu0 %7341, %v6868
    %v7343 = vpop.permute.xlu0 %7342
    %7345 = vset.pattern.permute.xlu0 2
    %7346 = vperm.xlu0 %7345, %v6869
    %v7347 = vpop.permute.xlu0 %7346
    %7349 = vset.pattern.permute.xlu0 2
    %7350 = vperm.xlu0 %7349, %v6870
    %v7351 = vpop.permute.xlu0 %7350
    %7353 = vset.pattern.permute.xlu0 2
    %7354 = vperm.xlu0 %7353, %v6871
    %v7355 = vpop.permute.xlu0 %7354
    %7357 = vset.pattern.permute.xlu0 2
    %7358 = vperm.xlu0 %7357, %v6872
    %v7359 = vpop.permute.xlu0 %7358
    %7361 = vset.pattern.permute.xlu0 2
    %7362 = vperm.xlu0 %7361, %v6873
    %v7363 = vpop.permute.xlu0 %7362
    %7365 = vset.pattern.permute.xlu0 2
    %7366 = vperm.xlu0 %7365, %v6874
    %v7367 = vpop.permute.xlu0 %7366
    %7369 = vset.pattern.permute.xlu0 2
    %7370 = vperm.xlu0 %7369, %v6875
    %v7371 = vpop.permute.xlu0 %7370
    %7373 = vset.pattern.permute.xlu0 2
    %7374 = vperm.xlu0 %7373, %v6876
    %v7375 = vpop.permute.xlu0 %7374
    %7377 = vset.pattern.permute.xlu0 2
    %7378 = vperm.xlu0 %7377, %v6877
    %v7379 = vpop.permute.xlu0 %7378
    %7381 = vset.pattern.permute.xlu0 2
    %7382 = vperm.xlu0 %7381, %v6878
    %v7383 = vpop.permute.xlu0 %7382
    %7385 = vset.pattern.permute.xlu0 2
    %7386 = vperm.xlu0 %7385, %v6879
    %v7387 = vpop.permute.xlu0 %7386
    %7389 = vset.pattern.permute.xlu0 2
    %7390 = vperm.xlu0 %7389, %v6880
    %v7391 = vpop.permute.xlu0 %7390
    %v7393 = vmul.f32 %v7267, %v31
    %v7394 = vmul.f32 %v7271, %v31
    %v7395 = vmul.f32 %v7275, %v31
    %v7396 = vmul.f32 %v7279, %v31
    %v7397 = vmul.f32 %v7283, %v31
    %v7398 = vmul.f32 %v7287, %v31
    %v7399 = vmul.f32 %v7291, %v31
    %v7400 = vmul.f32 %v7295, %v31
    %v7401 = vmul.f32 %v7299, %v31
    %v7402 = vmul.f32 %v7303, %v31
    %v7403 = vmul.f32 %v7307, %v31
    %v7404 = vmul.f32 %v7311, %v31
    %v7405 = vmul.f32 %v7315, %v31
    %v7406 = vmul.f32 %v7319, %v31
    %v7407 = vmul.f32 %v7323, %v31
    %v7408 = vmul.f32 %v7327, %v31
    %v7409 = vmul.f32 %v7331, %v31
    %v7410 = vmul.f32 %v7335, %v31
    %v7411 = vmul.f32 %v7339, %v31
    %v7412 = vmul.f32 %v7343, %v31
    %v7413 = vmul.f32 %v7347, %v31
    %v7414 = vmul.f32 %v7351, %v31
    %v7415 = vmul.f32 %v7355, %v31
    %v7416 = vmul.f32 %v7359, %v31
    %v7417 = vmul.f32 %v7363, %v31
    %v7418 = vmul.f32 %v7367, %v31
    %v7419 = vmul.f32 %v7371, %v31
    %v7420 = vmul.f32 %v7375, %v31
    %v7421 = vmul.f32 %v7379, %v31
    %v7422 = vmul.f32 %v7383, %v31
    %v7423 = vmul.f32 %v7387, %v31
    %v7424 = vmul.f32 %v7391, %v31
    %v7425 = vadd.f32 %v7233, %v7393
    %v7426 = vadd.f32 %v7234, %v7394
    %v7427 = vadd.f32 %v7235, %v7395
    %v7428 = vadd.f32 %v7236, %v7396
    %v7429 = vadd.f32 %v7237, %v7397
    %v7430 = vadd.f32 %v7238, %v7398
    %v7431 = vadd.f32 %v7239, %v7399
    %v7432 = vadd.f32 %v7240, %v7400
    %v7433 = vadd.f32 %v7241, %v7401
    %v7434 = vadd.f32 %v7242, %v7402
    %v7435 = vadd.f32 %v7243, %v7403
    %v7436 = vadd.f32 %v7244, %v7404
    %v7437 = vadd.f32 %v7245, %v7405
    %v7438 = vadd.f32 %v7246, %v7406
    %v7439 = vadd.f32 %v7247, %v7407
    %v7440 = vadd.f32 %v7248, %v7408
    %v7441 = vadd.f32 %v7249, %v7409
    %v7442 = vadd.f32 %v7250, %v7410
    %v7443 = vadd.f32 %v7251, %v7411
    %v7444 = vadd.f32 %v7252, %v7412
    %v7445 = vadd.f32 %v7253, %v7413
    %v7446 = vadd.f32 %v7254, %v7414
    %v7447 = vadd.f32 %v7255, %v7415
    %v7448 = vadd.f32 %v7256, %v7416
    %v7449 = vadd.f32 %v7257, %v7417
    %v7450 = vadd.f32 %v7258, %v7418
    %v7451 = vadd.f32 %v7259, %v7419
    %v7452 = vadd.f32 %v7260, %v7420
    %v7453 = vadd.f32 %v7261, %v7421
    %v7454 = vadd.f32 %v7262, %v7422
    %v7455 = vadd.f32 %v7263, %v7423
    %v7456 = vadd.f32 %v7264, %v7424
    %v7489 = vrot.slane %v7425, 1
    %v7490 = vrot.slane %v7426, 1
    %v7491 = vrot.slane %v7427, 1
    %v7492 = vrot.slane %v7428, 1
    %v7493 = vrot.slane %v7429, 1
    %v7494 = vrot.slane %v7430, 1
    %v7495 = vrot.slane %v7431, 1
    %v7496 = vrot.slane %v7432, 1
    %v7497 = vrot.slane %v7433, 1
    %v7498 = vrot.slane %v7434, 1
    %v7499 = vrot.slane %v7435, 1
    %v7500 = vrot.slane %v7436, 1
    %v7501 = vrot.slane %v7437, 1
    %v7502 = vrot.slane %v7438, 1
    %v7503 = vrot.slane %v7439, 1
    %v7504 = vrot.slane %v7440, 1
    %v7505 = vrot.slane %v7441, 1
    %v7506 = vrot.slane %v7442, 1
    %v7507 = vrot.slane %v7443, 1
    %v7508 = vrot.slane %v7444, 1
    %v7509 = vrot.slane %v7445, 1
    %v7510 = vrot.slane %v7446, 1
    %v7511 = vrot.slane %v7447, 1
    %v7512 = vrot.slane %v7448, 1
    %v7513 = vrot.slane %v7449, 1
    %v7514 = vrot.slane %v7450, 1
    %v7515 = vrot.slane %v7451, 1
    %v7516 = vrot.slane %v7452, 1
    %v7517 = vrot.slane %v7453, 1
    %v7518 = vrot.slane %v7454, 1
    %v7519 = vrot.slane %v7455, 1
    %v7520 = vrot.slane %v7456, 1
    %v7553 = vmul.f32 %v5868, %v7489
    %v7554 = vmul.f32 %v5869, %v7490
    %v7555 = vmul.f32 %v5870, %v7491
    %v7556 = vmul.f32 %v5871, %v7492
    %v7557 = vmul.f32 %v5872, %v7493
    %v7558 = vmul.f32 %v5873, %v7494
    %v7559 = vmul.f32 %v5874, %v7495
    %v7560 = vmul.f32 %v5875, %v7496
    %v7561 = vmul.f32 %v5876, %v7497
    %v7562 = vmul.f32 %v5877, %v7498
    %v7563 = vmul.f32 %v5878, %v7499
    %v7564 = vmul.f32 %v5879, %v7500
    %v7565 = vmul.f32 %v5880, %v7501
    %v7566 = vmul.f32 %v5881, %v7502
    %v7567 = vmul.f32 %v5882, %v7503
    %v7568 = vmul.f32 %v5883, %v7504
    %v7569 = vmul.f32 %v5884, %v7505
    %v7570 = vmul.f32 %v5885, %v7506
    %v7571 = vmul.f32 %v5886, %v7507
    %v7572 = vmul.f32 %v5887, %v7508
    %v7573 = vmul.f32 %v5888, %v7509
    %v7574 = vmul.f32 %v5889, %v7510
    %v7575 = vmul.f32 %v5890, %v7511
    %v7576 = vmul.f32 %v5891, %v7512
    %v7577 = vmul.f32 %v5892, %v7513
    %v7578 = vmul.f32 %v5893, %v7514
    %v7579 = vmul.f32 %v5894, %v7515
    %v7580 = vmul.f32 %v5895, %v7516
    %v7581 = vmul.f32 %v5896, %v7517
    %v7582 = vmul.f32 %v5897, %v7518
    %v7583 = vmul.f32 %v5898, %v7519
    %v7584 = vmul.f32 %v5899, %v7520
    %v7585 = vpack.c.bf16 %v7553, %v7553
    %v7586 = vpack.c.bf16 %v7554, %v7554
    %v7587 = vpack.c.bf16 %v7555, %v7555
    %v7588 = vpack.c.bf16 %v7556, %v7556
    %v7589 = vpack.c.bf16 %v7557, %v7557
    %v7590 = vpack.c.bf16 %v7558, %v7558
    %v7591 = vpack.c.bf16 %v7559, %v7559
    %v7592 = vpack.c.bf16 %v7560, %v7560
    %v7593 = vpack.c.bf16 %v7561, %v7561
    %v7594 = vpack.c.bf16 %v7562, %v7562
    %v7595 = vpack.c.bf16 %v7563, %v7563
    %v7596 = vpack.c.bf16 %v7564, %v7564
    %v7597 = vpack.c.bf16 %v7565, %v7565
    %v7598 = vpack.c.bf16 %v7566, %v7566
    %v7599 = vpack.c.bf16 %v7567, %v7567
    %v7600 = vpack.c.bf16 %v7568, %v7568
    %v7601 = vpack.c.bf16 %v7569, %v7569
    %v7602 = vpack.c.bf16 %v7570, %v7570
    %v7603 = vpack.c.bf16 %v7571, %v7571
    %v7604 = vpack.c.bf16 %v7572, %v7572
    %v7605 = vpack.c.bf16 %v7573, %v7573
    %v7606 = vpack.c.bf16 %v7574, %v7574
    %v7607 = vpack.c.bf16 %v7575, %v7575
    %v7608 = vpack.c.bf16 %v7576, %v7576
    %v7609 = vpack.c.bf16 %v7577, %v7577
    %v7610 = vpack.c.bf16 %v7578, %v7578
    %v7611 = vpack.c.bf16 %v7579, %v7579
    %v7612 = vpack.c.bf16 %v7580, %v7580
    %v7613 = vpack.c.bf16 %v7581, %v7581
    %v7614 = vpack.c.bf16 %v7582, %v7582
    %v7615 = vpack.c.bf16 %v7583, %v7583
    %v7616 = vpack.c.bf16 %v7584, %v7584
    %v7649 = vunpack.c.l.b16 %v7585
    %v7650 = vunpack.c.l.b16 %v7586
    %v7651 = vunpack.c.l.b16 %v7587
    %v7652 = vunpack.c.l.b16 %v7588
    %v7653 = vunpack.c.l.b16 %v7589
    %v7654 = vunpack.c.l.b16 %v7590
    %v7655 = vunpack.c.l.b16 %v7591
    %v7656 = vunpack.c.l.b16 %v7592
    %v7657 = vunpack.c.l.b16 %v7593
    %v7658 = vunpack.c.l.b16 %v7594
    %v7659 = vunpack.c.l.b16 %v7595
    %v7660 = vunpack.c.l.b16 %v7596
    %v7661 = vunpack.c.l.b16 %v7597
    %v7662 = vunpack.c.l.b16 %v7598
    %v7663 = vunpack.c.l.b16 %v7599
    %v7664 = vunpack.c.l.b16 %v7600
    %v7665 = vunpack.c.l.b16 %v7601
    %v7666 = vunpack.c.l.b16 %v7602
    %v7667 = vunpack.c.l.b16 %v7603
    %v7668 = vunpack.c.l.b16 %v7604
    %v7669 = vunpack.c.l.b16 %v7605
    %v7670 = vunpack.c.l.b16 %v7606
    %v7671 = vunpack.c.l.b16 %v7607
    %v7672 = vunpack.c.l.b16 %v7608
    %v7673 = vunpack.c.l.b16 %v7609
    %v7674 = vunpack.c.l.b16 %v7610
    %v7675 = vunpack.c.l.b16 %v7611
    %v7676 = vunpack.c.l.b16 %v7612
    %v7677 = vunpack.c.l.b16 %v7613
    %v7678 = vunpack.c.l.b16 %v7614
    %v7679 = vunpack.c.l.b16 %v7615
    %v7680 = vunpack.c.l.b16 %v7616
    %v7681 = vrot.slane %v7649, 7
    %v7682 = vrot.slane %v7650, 6
    %v7683 = vsel %vm836, %v7682, %v7681
    %v7684 = vrot.slane %v7651, 5
    %v7685 = vsel %vm839, %v7684, %v7683
    %v7686 = vrot.slane %v7652, 4
    %v7687 = vsel %vm842, %v7686, %v7685
    %v7688 = vrot.slane %v7653, 3
    %v7689 = vsel %vm845, %v7688, %v7687
    %v7690 = vrot.slane %v7654, 2
    %v7691 = vsel %vm848, %v7690, %v7689
    %v7692 = vrot.slane %v7655, 1
    %v7693 = vsel %vm851, %v7692, %v7691
    %v7694 = vsel %vm854, %v7656, %v7693
    %v7695 = vrot.slane %v7657, 7
    %v7696 = vrot.slane %v7658, 6
    %v7697 = vsel %vm836, %v7696, %v7695
    %v7698 = vrot.slane %v7659, 5
    %v7699 = vsel %vm839, %v7698, %v7697
    %v7700 = vrot.slane %v7660, 4
    %v7701 = vsel %vm842, %v7700, %v7699
    %v7702 = vrot.slane %v7661, 3
    %v7703 = vsel %vm845, %v7702, %v7701
    %v7704 = vrot.slane %v7662, 2
    %v7705 = vsel %vm848, %v7704, %v7703
    %v7706 = vrot.slane %v7663, 1
    %v7707 = vsel %vm851, %v7706, %v7705
    %v7708 = vsel %vm854, %v7664, %v7707
    %v7709 = vrot.slane %v7665, 7
    %v7710 = vrot.slane %v7666, 6
    %v7711 = vsel %vm836, %v7710, %v7709
    %v7712 = vrot.slane %v7667, 5
    %v7713 = vsel %vm839, %v7712, %v7711
    %v7714 = vrot.slane %v7668, 4
    %v7715 = vsel %vm842, %v7714, %v7713
    %v7716 = vrot.slane %v7669, 3
    %v7717 = vsel %vm845, %v7716, %v7715
    %v7718 = vrot.slane %v7670, 2
    %v7719 = vsel %vm848, %v7718, %v7717
    %v7720 = vrot.slane %v7671, 1
    %v7721 = vsel %vm851, %v7720, %v7719
    %v7722 = vsel %vm854, %v7672, %v7721
    %v7723 = vrot.slane %v7673, 7
    %v7724 = vrot.slane %v7674, 6
    %v7725 = vsel %vm836, %v7724, %v7723
    %v7726 = vrot.slane %v7675, 5
    %v7727 = vsel %vm839, %v7726, %v7725
    %v7728 = vrot.slane %v7676, 4
    %v7729 = vsel %vm842, %v7728, %v7727
    %v7730 = vrot.slane %v7677, 3
    %v7731 = vsel %vm845, %v7730, %v7729
    %v7732 = vrot.slane %v7678, 2
    %v7733 = vsel %vm848, %v7732, %v7731
    %v7734 = vrot.slane %v7679, 1
    %v7735 = vsel %vm851, %v7734, %v7733
    %v7736 = vsel %vm854, %v7680, %v7735
    %v7737 = vpack.c.b16 %v7708, %v7694
    %v7738 = vpack.c.b16 %v7736, %v7722
    %v7740 = vsel %vm900, %v7737, 0
    %v7743 = vsel %vm900, %v7738, 0
    %7745 = vmatprep.subr.bf16.mxu0 0
    %7746 = vmatpush1.bf16.msra.mxu0 %v912
    %7747 = vmatprep.subr.bf16.mxu0 0
    %7748 = vmatpush1.bf16.msra.mxu0 0
    %7749 = vmatprep.subr.bf16.mxu0 0
    %7750 = vmatpush1.bf16.msra.mxu0 0
    %7751 = vmatprep.subr.bf16.mxu0 0
    %7752 = vmatpush1.bf16.msra.mxu0 0
    %7753 = vmatprep.subr.bf16.mxu0 0
    %7754 = vmatpush1.bf16.msra.mxu0 0
    %7755 = vmatprep.subr.bf16.mxu0 0
    %7756 = vmatpush1.bf16.msra.mxu0 0
    %7757 = vmatprep.subr.bf16.mxu0 0
    %7758 = vmatpush1.bf16.msra.mxu0 0
    %7759 = vmatprep.subr.bf16.mxu0 0
    %7760 = vmatpush1.bf16.msra.mxu0 0
    %7761 = vmatprep.subr.bf16.mxu0 0
    %7762 = vmatpush1.bf16.msra.mxu0 0
    %7763 = vmatprep.subr.bf16.mxu0 0
    %7764 = vmatpush1.bf16.msra.mxu0 0
    %7765 = vmatprep.subr.bf16.mxu0 0
    %7766 = vmatpush1.bf16.msra.mxu0 0
    %7767 = vmatprep.subr.bf16.mxu0 0
    %7768 = vmatpush1.bf16.msra.mxu0 0
    %7769 = vmatprep.subr.bf16.mxu0 0
    %7770 = vmatpush1.bf16.msra.mxu0 0
    %7771 = vmatprep.subr.bf16.mxu0 0
    %7772 = vmatpush1.bf16.msra.mxu0 0
    %7773 = vmatprep.subr.bf16.mxu0 0
    %7774 = vmatpush1.bf16.msra.mxu0 0
    %7775 = vmatprep.subr.bf16.mxu0 0
    %7776 = vmatpush1.bf16.msra.mxu0 0
    %7777 = vmatprep.mubr.bf16.mxu0 0
    %7778 = vmatmul.mubr.bf16.gmra.mrb[0].mxu0 %v7740
    %v7779 = vpop.f32.mrb[0].mxu0
    %v7780 = vadd.f32 0.0, %v7779
    %v7781 = vpop.f32.mrb[0].mxu0
    %v7782 = vpop.f32.mrb[0].mxu0
    %v7783 = vadd.f32 0.0, %v7782
    %v7784 = vpop.f32.mrb[0].mxu0
    %7785 = vmatprep.mubr.bf16.mxu0 0
    %7786 = vmatmul.mubr.bf16.gmra.mrb[0].mxu0 %v7743
    %v7787 = vpop.f32.mrb[0].mxu0
    %v7788 = vadd.f32 0.0, %v7787
    %v7789 = vpop.f32.mrb[0].mxu0
    %v7790 = vpop.f32.mrb[0].mxu0
    %v7791 = vadd.f32 0.0, %v7790
    %v7792 = vpop.f32.mrb[0].mxu0
    %7793 = vdwg.mxu0
    %v7794 = vmax.f32 %v6845, %v7780
    %v7795 = vmax.f32 %v6846, %v7783
    %v7796 = vmax.f32 %v6847, %v7788
    %v7797 = vmax.f32 %v6848, %v7791
    %v7798 = vld [vmem:[%s3] sm:$0x1]
    %v7800 = vlaneseq
    %v7801 = vshrl.u32 %v7800, 7
    %v7802 = vsub.s32 0, %v7801
    %v7803 = vrot.slane %v7798, %v7802
    %v7805 = vadd.f32 %v7794, %v7803
    %v7806 = vadd.f32 %v7795, %v7803
    %v7807 = vadd.f32 %v7796, %v7803
    %v7808 = vadd.f32 %v7797, %v7803
    %v7809 = vmax.f32 %v7805, 0.0
    %v7810 = vmax.f32 %v7806, 0.0
    %v7811 = vmax.f32 %v7807, 0.0
    %v7812 = vmax.f32 %v7808, 0.0
    %7813 = vst [vmem:[#allocation2] sm:$0xff] %v7809
    %7814 = vst [vmem:[#allocation2 + $0x8] sm:$0xff] %v7810
    %7815 = vst [vmem:[#allocation2 + $0x10] sm:$0xff] %v7811
    %7816 = vst [vmem:[#allocation2 + $0x18] sm:$0xff] %v7812
    // Predicated region
    $region18: #{tpu_custom_call.1} parent=1 // pred_check
      _
    $region19: #{tpu_custom_call.1} parent=1 // pred_check_branch
      %7818 = sbr.rel (0) target = $region21
    $region20: #{tpu_custom_call.1} parent=1 // pred_region
      %s7820 = ssub.s32 512, 512
      %7821 = vsyncadd [#allocation3], %s7820
      %s7822 = sshll.u32 [#allocation2], 4
      %s7823 = int_to_ptr.vmem [resolvable:$true] %s7822
      %7828 = dma.vmem_to_hbm [thread:$0]  %s7823, 512, %s4, [#allocation3], 128, 128, 8
    $region21: #{tpu_custom_call.1} parent=1 // pred_fallthru
      _
    // Predicated region
    $region22: #{tpu_custom_call.1} parent=1 // pred_check
      _
    $region23: #{tpu_custom_call.1} parent=1 // pred_check_branch
      %7830 = sbr.rel (0) target = $region25
    $region24: #{tpu_custom_call.1} parent=1 // pred_region
      %7831 = dma.done [#allocation3], 512
    $region25: #{tpu_custom_call.1} parent=1 // pred_fallthru
      _
    %7832 = vsyncpa [#allocation3], 1

</llo_original>
